<compile_context>
chip_gen: v5e
topology: v5e:2x2
jax: 0.10.0
libtpu: 0.0.40
codegen_flags: <defaults>
</compile_context>

<pallas_src>
import jax
import jax.numpy as jnp
from jax.experimental import pallas as pl
from jax.experimental.pallas import tpu as pltpu


# ---------------------------------------------------------------------------
# Chip-aware tiling helpers.
# ---------------------------------------------------------------------------
def _tensorcores_per_chip():
    # v7x has 2 TensorCores per chip; v4/v5p megacore also report 2 here
    # (equally fine: the parallel grid axis is sharded across cores).
    try:
        kind = jax.devices()[0].device_kind.lower()
    except Exception:  # pragma: no cover - no device visible
        return 1
    if "v7" in kind or "tpu7" in kind or "v5p" in kind or kind.endswith("v4"):
        return 2
    return 1


_TENSORCORES = _tensorcores_per_chip()


def _ceil_to(n, m):
    return m * ((n + m - 1) // m)


def _pick_tm(m_pad, min_i_tiles=1, max_tm=512):
    """Largest batch tile <= max_tm that divides m_pad, is a multiple of 16
    (bf16 sublane friendly) and leaves >= min_i_tiles grid steps."""
    for tm in range(min(max_tm, m_pad) // 16 * 16, 0, -16):
        if m_pad % tm == 0 and m_pad // tm >= min_i_tiles:
            return tm
    return m_pad          # tiny batch: single full tile (full-dim block is OK)


def _pick_conv_tb(m_pad, min_steps=2):
    """Conv batch tile: big enough to amortize per-step overhead, small enough
    to keep intermediates a few MiB, >=2 grid steps when possible."""
    for tb in (32, 16, 8):
        if m_pad % tb == 0 and m_pad // tb >= min_steps:
            return tb
    return m_pad


def _pick_fc1_tk(k_dim, n_dim, itemsize, max_block_bytes=2 * 2 ** 20,
                 min_steps=8):
    """Largest lane-aligned (multiple of 128) divisor of k_dim whose w1 block
    stays under max_block_bytes and leaves >= min_steps K-steps."""
    assert k_dim % 128 == 0, "fc1 K dim must be lane aligned"
    divs = [128 * m for m in range(1, k_dim // 128 + 1) if k_dim % (128 * m) == 0]
    ok_bytes = [t for t in divs if t * n_dim * itemsize <= max_block_bytes]
    ok_both = [t for t in ok_bytes if k_dim // t >= min_steps]
    if ok_both:
        return max(ok_both)
    if ok_bytes:
        return max(ok_bytes)
    return 128


# ---------------------------------------------------------------------------
# Kernel 1: conv1 + bias + ReLU as ONE matmul per tile, lane-dense bf16 output
# in (h, w, c) flatten order.
# ---------------------------------------------------------------------------
def _conv_relu_kernel(x_ref, m_ref, b_ref, o_ref):
    # x_ref: (tb, Cin, H, W)            image tile (f32)
    # m_ref: (Cin*K*W, Wo*Cout)         flattened banded conv weight (f32, VMEM)
    # b_ref: (1, Wo*Cout)               bias tiled over wo
    # o_ref: (tb*Ho, Wo*Cout)           lane-dense bf16 output rows
    tb, cin, h_in, w_in = x_ref.shape
    kdepth, wo_cout = m_ref.shape
    ksz = kdepth // (cin * w_in)
    ho = h_in - ksz + 1

    xv = x_ref[...]                                    # tiny: tb*Cin*H*W floats
    # Stack the Cin*K sublane-shifted row windows along the lane axis so the
    # whole conv is a single MXU matmul (K-depth Cin*K*W, e.g. 140).
    slices = []
    for ci in range(cin):
        for kh in range(ksz):
            slices.append(xv[:, ci, kh:kh + ho, :])    # (tb, ho, W)
    xs = jnp.concatenate(slices, axis=-1).reshape(tb * ho, cin * ksz * w_in)
    acc = jnp.dot(xs, m_ref[...], preferred_element_type=jnp.float32)
    acc = acc + b_ref[...]
    o_ref[...] = jnp.maximum(acc, 0.0).astype(o_ref.dtype)


def conv_relu_banded(x, band, bias2d, *, tb):
    """x:(M,Cin,H,W) f32, band:(Cin*K*W, Wo*Cout) f32, bias2d:(1,Wo*Cout)
    -> (M*Ho, Wo*Cout) bf16 with rows in (sample, out_row) order."""
    m_pad, cin, h_in, w_in = x.shape
    kdepth, wo_cout = band.shape
    ksz = kdepth // (cin * w_in)
    assert kdepth == cin * ksz * w_in and m_pad % tb == 0
    ho = h_in - ksz + 1
    return pl.pallas_call(
        _conv_relu_kernel,
        out_shape=jax.ShapeDtypeStruct((m_pad * ho, wo_cout), jnp.bfloat16),
        grid_spec=pltpu.PrefetchScalarGridSpec(
            num_scalar_prefetch=0,
            grid=(m_pad // tb,),
            in_specs=[
                pl.BlockSpec((tb, cin, h_in, w_in), lambda b: (b, 0, 0, 0)),
                pl.BlockSpec((kdepth, wo_cout), lambda b: (0, 0)),
                pl.BlockSpec((1, wo_cout), lambda b: (0, 0)),
            ],
            out_specs=pl.BlockSpec((tb * ho, wo_cout), lambda b: (b, 0)),
        ),
        compiler_params=pltpu.CompilerParams(
            dimension_semantics=("parallel",)),
    )(x, band, bias2d)


# ---------------------------------------------------------------------------
# Kernel 2: fc1 (bf16 stream, f32 acc) + bias + ReLU + (dropout identity)
#           + fc2 + bias + log_softmax.
# ---------------------------------------------------------------------------
def _mlp_head_kernel(a_ref, w1_ref, b1_ref, w2_ref, b2_ref, o_ref, acc_ref):
    k = pl.program_id(1)

    @pl.when(k == 0)
    def _():
        # initialize the accumulator with the fc1 bias (no epilogue add)
        acc_ref[...] = jnp.broadcast_to(b1_ref[...], acc_ref.shape)

    # bf16 x bf16 -> f32 MXU accumulation
    acc_ref[...] += jnp.dot(a_ref[...], w1_ref[...],
                            preferred_element_type=jnp.float32)

    @pl.when(k == pl.num_programs(1) - 1)
    def _():
        h = jnp.maximum(acc_ref[...], 0.0)                 # relu(fc1)
        # dropout: eval-mode identity (see TODO at top)
        logits = jnp.dot(h, w2_ref[...],
                         preferred_element_type=jnp.float32) + b2_ref[...]
        m = jnp.max(logits, axis=-1, keepdims=True)
        s = logits - m
        lse = jnp.log(jnp.sum(jnp.exp(s), axis=-1, keepdims=True))
        o_ref[...] = (s - lse).astype(o_ref.dtype)


def mlp_head(a, w1, b1, w2, b2, *, tm, tk):
    """log_softmax(relu(a @ w1 + b1) @ w2 + b2).
    a:(M,K) bf16, w1:(K,N1) bf16, w2:(N1,N2) f32."""
    M, kf = a.shape
    kf2, n1 = w1.shape
    n1b, n2 = w2.shape
    assert kf == kf2 and n1 == n1b and M % tm == 0 and kf % tk == 0
    assert tk % 128 == 0 or tk == kf            # a's lane dim must be 128-aligned
    assert tm % 8 == 0 or tm == M
    grid = (M // tm, kf // tk)
    return pl.pallas_call(
        _mlp_head_kernel,
        out_shape=jax.ShapeDtypeStruct((M, n2), jnp.float32),
        grid_spec=pltpu.PrefetchScalarGridSpec(
            num_scalar_prefetch=0,
            grid=grid,
            in_specs=[
                pl.BlockSpec((tm, tk), lambda i, k: (i, k)),
                pl.BlockSpec((tk, n1), lambda i, k: (k, 0)),
                pl.BlockSpec((1, n1), lambda i, k: (0, 0)),
                pl.BlockSpec((n1, n2), lambda i, k: (0, 0)),
                pl.BlockSpec((1, n2), lambda i, k: (0, 0)),
            ],
            out_specs=pl.BlockSpec((tm, n2), lambda i, k: (i, 0)),
            scratch_shapes=[pltpu.VMEM((tm, n1), jnp.float32)],
        ),
        compiler_params=pltpu.CompilerParams(
            dimension_semantics=("parallel", "arbitrary")),
    )(a, w1, b1.reshape(1, n1), w2, b2.reshape(1, n2))


# ---------------------------------------------------------------------------
# One-time parameter layout prep (run outside the jitted forward).
# ---------------------------------------------------------------------------
def prepare_params(params, input_hw=(28, 28)):
    h_in, w_in = input_hw
    w = params["conv1_w"]                        # (Cout, Cin, K, K), PyTorch layout
    cout, cin, ksz, _ = w.shape
    ho, wo = h_in - ksz + 1, w_in - ksz + 1

    # Banded conv weight: band[ci, kh, iw, wo*Cout + c] = w[c, ci, kh, iw - wo]
    # for 0 <= iw - wo < K, else 0.  Flattened so conv1 is ONE (rows)x(band)
    # matmul whose output is already in (h, w, c) flatten order and lane-dense.
    wt = jnp.transpose(w, (1, 2, 3, 0))          # (Cin, K, K, Cout)
    iw = jnp.arange(w_in)[:, None]
    wo_idx = jnp.arange(wo)[None, :]
    kw = iw - wo_idx                             # (W, Wo)
    valid = (kw >= 0) & (kw < ksz)
    band = wt[:, :, jnp.clip(kw, 0, ksz - 1), :]             # (Cin, K, W, Wo, Cout)
    band = jnp.where(valid[None, None, :, :, None], band, 0.0)
    band = band.reshape(cin * ksz * w_in, wo * cout)         # (Cin*K*W, Wo*Cout)

    conv_bias = jnp.tile(params["conv1_b"], wo).reshape(1, wo * cout)

    # Permute fc1 weight rows from PyTorch's (c, h, w) flatten order to the
    # kernel's (h, w, c) order, then store bf16 (f32 MXU accumulation keeps
    # the error well inside tolerance, halves the dominant HBM stream).
    n1 = params["fc1_w"].shape[1]
    fc1_wp = (params["fc1_w"].reshape(cout, ho, wo, n1)
              .transpose(1, 2, 0, 3).reshape(ho * wo * cout, n1))
    fc1_wp = fc1_wp.astype(jnp.bfloat16)

    return {"conv_band": band, "conv_bias": conv_bias,
            "fc1_w": fc1_wp, "fc1_b": params["fc1_b"],
            "fc2_w": params["fc2_w"], "fc2_b": params["fc2_b"]}


# ---------------------------------------------------------------------------
# Full model forward (jit-able; prep contains only arrays).
# ---------------------------------------------------------------------------
def model_cnn_forward(x, prep):
    band, conv_b = prep["conv_band"], prep["conv_bias"]
    fc1_w, fc1_b = prep["fc1_w"], prep["fc1_b"]
    fc2_w, fc2_b = prep["fc2_w"], prep["fc2_b"]

    batch, cin, h_in, w_in = x.shape
    ksz = band.shape[0] // (cin * w_in)
    ho = h_in - ksz + 1
    wo_cout = band.shape[-1]
    k_fc = ho * wo_cout
    assert k_fc == fc1_w.shape[0]

    # Batch padding / tiling.  Padded rows are sliced off at the end (no
    # cross-row mixing in the network).  On 2-TC chips keep >=2 parallel batch
    # tiles so both cores stream the fc1 weight; on 1-TC chips use the largest
    # tile so the weight is streamed as few times as possible.
    cores = _TENSORCORES
    if batch <= 128:
        m_pad = _ceil_to(batch, 32 if cores >= 2 else 8)
    else:
        m_pad = _ceil_to(batch, 128)
    tm = _pick_tm(m_pad, min_i_tiles=cores)
    if m_pad != batch:
        x = jnp.concatenate(
            [x, jnp.zeros((m_pad - batch, cin, h_in, w_in), x.dtype)], axis=0)

    tb = _pick_conv_tb(m_pad)
    h = conv_relu_banded(x, band, conv_b, tb=tb)   # (m_pad*Ho, Wo*Cout) bf16
    # Flatten to (m_pad, 18432) in (h, w, c) order -- the only XLA glue between
    # kernels (bf16, so half the round-trip of rev 1).
    h = h.reshape(m_pad, k_fc)

    tk = _pick_fc1_tk(k_fc, fc1_w.shape[1],
                      itemsize=jnp.dtype(fc1_w.dtype).itemsize)   # 2304 -> 8 steps
    out = mlp_head(h, fc1_w, fc1_b, fc2_w, fc2_b, tm=tm, tk=tk)   # (m_pad, 10)
    return out[:batch]


# ---------------------------------------------------------------------------
# Plain-JAX reference (original PyTorch layouts, f32) and parameter init.
# ---------------------------------------------------------------------------
def reference_forward(x, params):
    y = jax.lax.conv_general_dilated(
        x, params["conv1_w"], window_strides=(1, 1), padding="VALID",
        dimension_numbers=("NCHW", "OIHW", "NCHW"),
        precision=jax.lax.Precision.HIGHEST)
    y = jnp.maximum(y + params["conv1_b"][None, :, None, None], 0.0)
    h = y.reshape(x.shape[0], -1)                          # (c, h, w) flatten
    h = jnp.maximum(
        jnp.dot(h, params["fc1_w"], precision=jax.lax.Precision.HIGHEST)
        + params["fc1_b"], 0.0)
    logits = (jnp.dot(h, params["fc2_w"], precision=jax.lax.Precision.HIGHEST)
              + params["fc2_b"])
    return jax.nn.log_softmax(logits, axis=-1)


def init_params(key):
    ks = jax.random.split(key, 6)
    return {
        # conv1: nn.Conv2d(1, 32, kernel_size=5)
        "conv1_w": jax.random.normal(ks[0], (32, 1, 5, 5), jnp.float32) * 0.1,
        "conv1_b": jax.random.normal(ks[1], (32,), jnp.float32) * 0.1,
        # fc1: Linear(32*24*24, 256)   (stored (in, out))
        "fc1_w": jax.random.normal(ks[2], (32 * 24 * 24, 256), jnp.float32) * 0.01,
        "fc1_b": jax.random.normal(ks[3], (256,), jnp.float32) * 0.01,
        # fc2: Linear(256, 10)
        "fc2_w": jax.random.normal(ks[4], (256, 10), jnp.float32) * 0.05,
        "fc2_b": jax.random.normal(ks[5], (10,), jnp.float32) * 0.05,
    }


if __name__ == "__main__":
    key = jax.random.PRNGKey(0)
    pkey, xkey = jax.random.split(key)
    params = init_params(pkey)
    # Input must be 1x28x28 so the 32*24*24 flatten is consistent (MNIST-like).
    x = jax.random.normal(xkey, (2, 1, 28, 28), jnp.float32)

    prep = prepare_params(params, input_hw=(28, 28))   # one-time layout prep
    fwd = jax.jit(model_cnn_forward)
    out = jax.block_until_ready(fwd(x, prep))

    assert out.shape == (2, 10) and out.dtype == jnp.float32
    # log_softmax rows must sum to 1 in probability space.
    assert jnp.allclose(jnp.sum(jnp.exp(out), axis=1), 1.0, atol=1e-4)
    # Numerical check vs the f32 reference; tolerance widened for the bf16
    # fc1 weight / activation stream (error observed/estimated well below this).
    ref = reference_forward(x, params)
    assert jnp.allclose(out, ref, atol=2e-2, rtol=2e-2), (
        float(jnp.max(jnp.abs(out - ref))))
    print("KERNEL_OK")
</pallas_src>

<mosaic_0001>
module attributes {stable_mosaic.version = 11 : i64} {
  func.func @_conv_relu_kernel(%arg0: i32, %arg1: memref<8x1x28x28xf32, #tpu.memory_space<vmem>>, %arg2: memref<140x768xf32, #tpu.memory_space<vmem>>, %arg3: memref<1x768xf32, #tpu.memory_space<vmem>>, %arg4: memref<192x768xbf16, #tpu.memory_space<vmem>>) attributes {dimension_semantics = [#tpu.dimension_semantics<parallel>], iteration_bounds = array<i64: 1>, scalar_prefetch = 0 : i64, scratch_operands = 0 : i64, tpu.core_type = #tpu.core_type<tc>, window_params = [{transform_indices = @transform_0, window_bounds = array<i64: 8, 1, 28, 28>}, {pipeline_mode = #tpu.pipeline_mode<synchronous>, transform_indices = @transform_1, window_bounds = array<i64: 140, 768>}, {pipeline_mode = #tpu.pipeline_mode<synchronous>, transform_indices = @transform_2, window_bounds = array<i64: 1, 768>}, {transform_indices = @transform_3, window_bounds = array<i64: 192, 768>}]} {
    %c0 = arith.constant 0 : index
    %c0_0 = arith.constant 0 : index
    %c0_1 = arith.constant 0 : index
    %c0_2 = arith.constant 0 : index
    %0 = vector.load %arg1[%c0, %c0_0, %c0_1, %c0_2] : memref<8x1x28x28xf32, #tpu.memory_space<vmem>>, vector<8x1x28x28xf32>
    %1 = vector.extract_strided_slice %0 {offsets = [0, 0, 0, 0], sizes = [8, 1, 24, 28], strides = [1, 1, 1, 1]} : vector<8x1x28x28xf32> to vector<8x1x24x28xf32>
    %2 = vector.shape_cast %1 : vector<8x1x24x28xf32> to vector<8x24x28xf32>
    %3 = vector.extract_strided_slice %0 {offsets = [0, 0, 1, 0], sizes = [8, 1, 24, 28], strides = [1, 1, 1, 1]} : vector<8x1x28x28xf32> to vector<8x1x24x28xf32>
    %4 = vector.shape_cast %3 : vector<8x1x24x28xf32> to vector<8x24x28xf32>
    %5 = vector.extract_strided_slice %0 {offsets = [0, 0, 2, 0], sizes = [8, 1, 24, 28], strides = [1, 1, 1, 1]} : vector<8x1x28x28xf32> to vector<8x1x24x28xf32>
    %6 = vector.shape_cast %5 : vector<8x1x24x28xf32> to vector<8x24x28xf32>
    %7 = vector.extract_strided_slice %0 {offsets = [0, 0, 3, 0], sizes = [8, 1, 24, 28], strides = [1, 1, 1, 1]} : vector<8x1x28x28xf32> to vector<8x1x24x28xf32>
    %8 = vector.shape_cast %7 : vector<8x1x24x28xf32> to vector<8x24x28xf32>
    %9 = vector.extract_strided_slice %0 {offsets = [0, 0, 4, 0], sizes = [8, 1, 24, 28], strides = [1, 1, 1, 1]} : vector<8x1x28x28xf32> to vector<8x1x24x28xf32>
    %10 = vector.shape_cast %9 : vector<8x1x24x28xf32> to vector<8x24x28xf32>
    %11 = tpu.concatenate %2, %4, %6, %8, %10 in 2 : vector<8x24x28xf32>, vector<8x24x28xf32>, vector<8x24x28xf32>, vector<8x24x28xf32>, vector<8x24x28xf32> -> vector<8x24x140xf32>
    %12 = vector.shape_cast %11 : vector<8x24x140xf32> to vector<192x140xf32>
    %c0_3 = arith.constant 0 : index
    %c0_4 = arith.constant 0 : index
    %13 = vector.load %arg2[%c0_3, %c0_4] : memref<140x768xf32, #tpu.memory_space<vmem>>, vector<140x768xf32>
    %cst = arith.constant dense<0.000000e+00> : vector<192x768xf32>
    %14 = tpu.matmul %12, %13, %cst {dimension_numbers = #tpu.dot_dimension_numbers<[1], [0], [0], [1], [0, 0, 1, 1], [], []>} : vector<192x140xf32>, vector<140x768xf32>, vector<192x768xf32> -> vector<192x768xf32>
    %c0_5 = arith.constant 0 : index
    %c0_6 = arith.constant 0 : index
    %15 = vector.load %arg3[%c0_5, %c0_6] : memref<1x768xf32, #tpu.memory_space<vmem>>, vector<1x768xf32>
    %16 = vector.broadcast %15 : vector<1x768xf32> to vector<192x768xf32>
    %17 = arith.addf %14, %16 : vector<192x768xf32>
    %cst_7 = arith.constant 0.000000e+00 : f32
    %18 = vector.broadcast %cst_7 : f32 to vector<192x768xf32>
    %19 = arith.maximumf %17, %18 : vector<192x768xf32>
    %20 = arith.truncf %19 : vector<192x768xf32> to vector<192x768xbf16>
    %c0_8 = arith.constant 0 : index
    %c0_9 = arith.constant 0 : index
    %21 = vector.load %arg4[%c0_8, %c0_9] : memref<192x768xbf16, #tpu.memory_space<vmem>>, vector<192x768xbf16>
    tpu.vector_store %arg4[%c0_8, %c0_9], %20 {strides = array<i32>} : memref<192x768xbf16, #tpu.memory_space<vmem>>, vector<192x768xbf16>,
    return
  }
  func.func @transform_0(%arg0: i32) -> (i32, i32, i32, i32) {
    %c0_i32 = arith.constant 0 : i32
    %c0_i32_0 = arith.constant 0 : i32
    %c0_i32_1 = arith.constant 0 : i32
    %c0_i32_2 = arith.constant 0 : i32
    return %arg0, %c0_i32, %c0_i32_0, %c0_i32_1 : i32, i32, i32, i32
  }
  func.func @transform_1(%arg0: i32) -> (i32, i32) {
    %c0_i32 = arith.constant 0 : i32
    %c0_i32_0 = arith.constant 0 : i32
    %c0_i32_1 = arith.constant 0 : i32
    return %c0_i32, %c0_i32_0 : i32, i32
  }
  func.func @transform_2(%arg0: i32) -> (i32, i32) {
    %c0_i32 = arith.constant 0 : i32
    %c0_i32_0 = arith.constant 0 : i32
    %c0_i32_1 = arith.constant 0 : i32
    return %c0_i32, %c0_i32_0 : i32, i32
  }
  func.func @transform_3(%arg0: i32) -> (i32, i32) {
    %c0_i32 = arith.constant 0 : i32
    %c0_i32_0 = arith.constant 0 : i32
    return %arg0, %c0_i32 : i32, i32
  }
}

module attributes {stable_mosaic.version = 11 : i64} {
  func.func @_mlp_head_kernel(%arg0: i32, %arg1: i32, %arg2: memref<8x2304xbf16, #tpu.memory_space<vmem>>, %arg3: memref<2304x256xbf16, #tpu.memory_space<vmem>>, %arg4: memref<1x256xf32, #tpu.memory_space<vmem>>, %arg5: memref<256x10xf32, #tpu.memory_space<vmem>>, %arg6: memref<1x10xf32, #tpu.memory_space<vmem>>, %arg7: memref<8x10xf32, #tpu.memory_space<vmem>>, %arg8: memref<8x256xf32, #tpu.memory_space<vmem>>) attributes {dimension_semantics = [#tpu.dimension_semantics<parallel>, #tpu.dimension_semantics<arbitrary>], iteration_bounds = array<i64: 1, 8>, scalar_prefetch = 0 : i64, scratch_operands = 1 : i64, tpu.core_type = #tpu.core_type<tc>, window_params = [{transform_indices = @transform_0, window_bounds = array<i64: 8, 2304>}, {transform_indices = @transform_1, window_bounds = array<i64: 2304, 256>}, {pipeline_mode = #tpu.pipeline_mode<synchronous>, transform_indices = @transform_2, window_bounds = array<i64: 1, 256>}, {pipeline_mode = #tpu.pipeline_mode<synchronous>, transform_indices = @transform_3, window_bounds = array<i64: 256, 10>}, {pipeline_mode = #tpu.pipeline_mode<synchronous>, transform_indices = @transform_4, window_bounds = array<i64: 1, 10>}, {transform_indices = @transform_5, window_bounds = array<i64: 8, 10>}]} {
    %c0_i32 = arith.constant 0 : i32
    %0 = arith.cmpi eq, %arg1, %c0_i32 : i32
    %1 = arith.extui %0 : i1 to i32
    %c0_i32_0 = arith.constant 0 : i32
    %2 = arith.cmpi ne, %1, %c0_i32_0 : i32
    scf.if %2 {
      %c0_9 = arith.constant 0 : index
      %c0_10 = arith.constant 0 : index
      %12 = vector.load %arg4[%c0_9, %c0_10] : memref<1x256xf32, #tpu.memory_space<vmem>>, vector<1x256xf32>
      %13 = vector.shape_cast %12 : vector<1x256xf32> to vector<1x256xf32>
      %14 = vector.broadcast %13 : vector<1x256xf32> to vector<8x256xf32>
      %c0_11 = arith.constant 0 : index
      %c0_12 = arith.constant 0 : index
      %15 = vector.load %arg8[%c0_11, %c0_12] : memref<8x256xf32, #tpu.memory_space<vmem>>, vector<8x256xf32>
      tpu.vector_store %arg8[%c0_11, %c0_12], %14 {strides = array<i32>} : memref<8x256xf32, #tpu.memory_space<vmem>>, vector<8x256xf32>,
    } else {
    }
    %c0 = arith.constant 0 : index
    %c0_1 = arith.constant 0 : index
    %3 = vector.load %arg8[%c0, %c0_1] : memref<8x256xf32, #tpu.memory_space<vmem>>, vector<8x256xf32>
    %c0_2 = arith.constant 0 : index
    %c0_3 = arith.constant 0 : index
    %4 = vector.load %arg2[%c0_2, %c0_3] : memref<8x2304xbf16, #tpu.memory_space<vmem>>, vector<8x2304xbf16>
    %c0_4 = arith.constant 0 : index
    %c0_5 = arith.constant 0 : index
    %5 = vector.load %arg3[%c0_4, %c0_5] : memref<2304x256xbf16, #tpu.memory_space<vmem>>, vector<2304x256xbf16>
    %cst = arith.constant dense<0.000000e+00> : vector<8x256xf32>
    %6 = tpu.matmul %4, %5, %cst {dimension_numbers = #tpu.dot_dimension_numbers<[1], [0], [0], [1], [0, 0, 1, 1], [], []>} : vector<8x2304xbf16>, vector<2304x256xbf16>, vector<8x256xf32> -> vector<8x256xf32>
    %7 = arith.addf %3, %6 : vector<8x256xf32>
    %c0_6 = arith.constant 0 : index
    %c0_7 = arith.constant 0 : index
    %8 = vector.load %arg8[%c0_6, %c0_7] : memref<8x256xf32, #tpu.memory_space<vmem>>, vector<8x256xf32>
    tpu.vector_store %arg8[%c0_6, %c0_7], %7 {strides = array<i32>} : memref<8x256xf32, #tpu.memory_space<vmem>>, vector<8x256xf32>,
    %c7_i32 = arith.constant 7 : i32
    %9 = arith.cmpi eq, %arg1, %c7_i32 : i32
    %10 = arith.extui %9 : i1 to i32
    %c0_i32_8 = arith.constant 0 : i32
    %11 = arith.cmpi ne, %10, %c0_i32_8 : i32
    scf.if %11 {
      %c0_9 = arith.constant 0 : index
      %c0_10 = arith.constant 0 : index
      %12 = vector.load %arg8[%c0_9, %c0_10] : memref<8x256xf32, #tpu.memory_space<vmem>>, vector<8x256xf32>
      %cst_11 = arith.constant 0.000000e+00 : f32
      %13 = vector.broadcast %cst_11 : f32 to vector<8x256xf32>
      %14 = arith.maximumf %12, %13 : vector<8x256xf32>
      %c0_12 = arith.constant 0 : index
      %c0_13 = arith.constant 0 : index
      %15 = vector.load %arg5[%c0_12, %c0_13] : memref<256x10xf32, #tpu.memory_space<vmem>>, vector<256x10xf32>
      %cst_14 = arith.constant dense<0.000000e+00> : vector<8x10xf32>
      %16 = tpu.matmul %14, %15, %cst_14 {dimension_numbers = #tpu.dot_dimension_numbers<[1], [0], [0], [1], [0, 0, 1, 1], [], []>} : vector<8x256xf32>, vector<256x10xf32>, vector<8x10xf32> -> vector<8x10xf32>
      %c0_15 = arith.constant 0 : index
      %c0_16 = arith.constant 0 : index
      %17 = vector.load %arg6[%c0_15, %c0_16] : memref<1x10xf32, #tpu.memory_space<vmem>>, vector<1x10xf32>
      %18 = vector.broadcast %17 : vector<1x10xf32> to vector<8x10xf32>
      %19 = arith.addf %16, %18 : vector<8x10xf32>
      %cst_17 = arith.constant dense<0xFF800000> : vector<8xf32>
      %20 = vector.multi_reduction <maximumf>, %19, %cst_17 [1] : vector<8x10xf32> to vector<8xf32>
      %21 = vector.shape_cast %20 : vector<8xf32> to vector<8x1xf32>
      %22 = vector.broadcast %21 : vector<8x1xf32> to vector<8x10xf32>
      %23 = arith.subf %19, %22 : vector<8x10xf32>
      %24 = math.exp %23 : vector<8x10xf32>
      %cst_18 = arith.constant dense<0.000000e+00> : vector<8xf32>
      %25 = vector.multi_reduction <add>, %24, %cst_18 [1] : vector<8x10xf32> to vector<8xf32>
      %26 = vector.shape_cast %25 : vector<8xf32> to vector<8x1xf32>
      %27 = math.log %26 : vector<8x1xf32>
      %28 = vector.broadcast %27 : vector<8x1xf32> to vector<8x10xf32>
      %29 = arith.subf %23, %28 : vector<8x10xf32>
      %c0_19 = arith.constant 0 : index
      %c0_20 = arith.constant 0 : index
      %30 = vector.load %arg7[%c0_19, %c0_20] : memref<8x10xf32, #tpu.memory_space<vmem>>, vector<8x10xf32>
      tpu.vector_store %arg7[%c0_19, %c0_20], %29 {strides = array<i32>} : memref<8x10xf32, #tpu.memory_space<vmem>>, vector<8x10xf32>,
    } else {
    }
    return
  }
  func.func @transform_0(%arg0: i32, %arg1: i32) -> (i32, i32) {
    %c0_i32 = arith.constant 0 : i32
    return %arg0, %arg1 : i32, i32
  }
  func.func @transform_1(%arg0: i32, %arg1: i32) -> (i32, i32) {
    %c0_i32 = arith.constant 0 : i32
    %c0_i32_0 = arith.constant 0 : i32
    return %arg1, %c0_i32 : i32, i32
  }
  func.func @transform_2(%arg0: i32, %arg1: i32) -> (i32, i32) {
    %c0_i32 = arith.constant 0 : i32
    %c0_i32_0 = arith.constant 0 : i32
    %c0_i32_1 = arith.constant 0 : i32
    return %c0_i32, %c0_i32_0 : i32, i32
  }
  func.func @transform_3(%arg0: i32, %arg1: i32) -> (i32, i32) {
    %c0_i32 = arith.constant 0 : i32
    %c0_i32_0 = arith.constant 0 : i32
    %c0_i32_1 = arith.constant 0 : i32
    return %c0_i32, %c0_i32_0 : i32, i32
  }
  func.func @transform_4(%arg0: i32, %arg1: i32) -> (i32, i32) {
    %c0_i32 = arith.constant 0 : i32
    %c0_i32_0 = arith.constant 0 : i32
    %c0_i32_1 = arith.constant 0 : i32
    return %c0_i32, %c0_i32_0 : i32, i32
  }
  func.func @transform_5(%arg0: i32, %arg1: i32) -> (i32, i32) {
    %c0_i32 = arith.constant 0 : i32
    %c0_i32_0 = arith.constant 0 : i32
    return %arg0, %c0_i32 : i32, i32
  }
}

</mosaic_0001>

<llo_original>
// kernel: model_cnn_forward.2
$region0: #{model_cnn_forward.2}
  #allocation0 [shape = 'u32[]', space=smem, size = 0x4, offset = 0x4, fixed_abs, tag = 'smem constant byte address 0x4 - core index']
  #allocation1 [shape = 'u32[72,128]{1,0:T(1,128)}', space=vmem, size = 0x9000, scoped, tag = 'internal scratch']
  %s0 = inlined_call_operand.vmem [shape: f32[8,1,28,28], index: 0, kind: input, shape index: {}]
  %s1 = inlined_call_operand.hbm [shape: f32[140,768], index: 1, kind: input, shape index: {}]
  %s2 = inlined_call_operand.hbm [shape: f32[1,768], index: 2, kind: input, shape index: {}]
  %s3 = inlined_call_operand.vmem [shape: bf16[192,768], index: 3, kind: output, shape index: {}]
  %s4 = sld [smem:[#allocation0]]
  $region30: #{model_cnn_forward.2} parent=0
    _
  %s6 = ssub.s32 1, %s4
  %s7 = scalar_select 0, %s6, %s4
  $region1: #{model_cnn_forward.2} parent=0
    #allocation2 [shape = 'u8[442368]{0}', space=vmem, size = 0x6c000, scoped, tag = 'input window, operand 1, single buffered']
    #allocation3 [shape = 's32[1]{0}', space=sflag, size = 0x4, scoped, tag = 'scoped memory for model_cnn_forward.2']
    #allocation4 [shape = 'u8[3072]{0}', space=vmem, size = 0xc00, scoped, tag = 'input window, operand 2, single buffered']
    #allocation5 [shape = 's32[1]{0}', space=sflag, size = 0x4, scoped, tag = 'scoped memory for model_cnn_forward.2']
    %8 = vsyncpa [#allocation3], 0
    %9 = vsyncpa [#allocation5], 0
    // Predicated region
    $region2: #{model_cnn_forward.2} parent=1 // pred_check
      _
    $region3: #{model_cnn_forward.2} parent=1 // pred_check_branch
      %11 = sbr.rel (0) target = $region5
    $region4: #{model_cnn_forward.2} parent=1 // pred_region
      _
    $region5: #{model_cnn_forward.2} parent=1 // pred_fallthru
      _
    // Predicated region
    $region6: #{model_cnn_forward.2} parent=1 // pred_check
      _
    $region7: #{model_cnn_forward.2} parent=1 // pred_check_branch
      %13 = sbr.rel (0) target = $region9
    $region8: #{model_cnn_forward.2} parent=1 // pred_region
      %15 = vsyncadd [#allocation3], 0
      %s16 = sshll.u32 %s1, 4
      %s17 = int_to_ptr.hbm [resolvable:$true] %s16
      %s18 = sshll.u32 [#allocation2], 4
      %s19 = int_to_ptr.vmem [resolvable:$true] %s18
      %24 = dma.hbm_to_vmem [thread:$0]  %s17, 13824, %s19, [#allocation3], 768, 768, 48
    $region9: #{model_cnn_forward.2} parent=1 // pred_fallthru
      _
    // Predicated region
    $region10: #{model_cnn_forward.2} parent=1 // pred_check
      _
    $region11: #{model_cnn_forward.2} parent=1 // pred_check_branch
      %26 = sbr.rel (0) target = $region13
    $region12: #{model_cnn_forward.2} parent=1 // pred_region
      %28 = vsyncadd [#allocation5], 0
      %s30 = sshll.u32 %s2, 4
      %s31 = int_to_ptr.hbm [resolvable:$true] %s30
      %s32 = sshll.u32 [#allocation4], 4
      %s33 = int_to_ptr.vmem [resolvable:$true] %s32
      %35 = dma.hbm_to_vmem [thread:$0]  %s31, 96, %s33, [#allocation5]
    $region13: #{model_cnn_forward.2} parent=1 // pred_fallthru
      _
    // Predicated region
    $region14: #{model_cnn_forward.2} parent=1 // pred_check
      _
    $region15: #{model_cnn_forward.2} parent=1 // pred_check_branch
      %37 = sbr.rel (0) target = $region17
    $region16: #{model_cnn_forward.2} parent=1 // pred_region
      %39 = dma.done [#allocation3], 13824
    $region17: #{model_cnn_forward.2} parent=1 // pred_fallthru
      _
    // Predicated region
    $region18: #{model_cnn_forward.2} parent=1 // pred_check
      _
    $region19: #{model_cnn_forward.2} parent=1 // pred_check_branch
      %41 = sbr.rel (0) target = $region21
    $region20: #{model_cnn_forward.2} parent=1 // pred_region
      %43 = dma.done [#allocation5], 96
    $region21: #{model_cnn_forward.2} parent=1 // pred_fallthru
      _
    %v44 = vld [vmem:[%s0] sm:$0xff]
    %v45 = vld [vmem:[%s0 + $0x8] sm:$0xff]
    %v46 = vld [vmem:[%s0 + $0x10] sm:$0xff]
    %v47 = vld [vmem:[%s0 + $0x18] sm:$0xf]
    %v48 = vld [vmem:[%s0 + $0x20] sm:$0xff]
    %v49 = vld [vmem:[%s0 + $0x28] sm:$0xff]
    %v50 = vld [vmem:[%s0 + $0x30] sm:$0xff]
    %v51 = vld [vmem:[%s0 + $0x38] sm:$0xf]
    %v52 = vld [vmem:[%s0 + $0x40] sm:$0xff]
    %v53 = vld [vmem:[%s0 + $0x48] sm:$0xff]
    %v54 = vld [vmem:[%s0 + $0x50] sm:$0xff]
    %v55 = vld [vmem:[%s0 + $0x58] sm:$0xf]
    %v56 = vld [vmem:[%s0 + $0x60] sm:$0xff]
    %v57 = vld [vmem:[%s0 + $0x68] sm:$0xff]
    %v58 = vld [vmem:[%s0 + $0x70] sm:$0xff]
    %v59 = vld [vmem:[%s0 + $0x78] sm:$0xf]
    %v60 = vld [vmem:[%s0 + $0x80] sm:$0xff]
    %v61 = vld [vmem:[%s0 + $0x88] sm:$0xff]
    %v62 = vld [vmem:[%s0 + $0x90] sm:$0xff]
    %v63 = vld [vmem:[%s0 + $0x98] sm:$0xf]
    %v64 = vld [vmem:[%s0 + $0xa0] sm:$0xff]
    %v65 = vld [vmem:[%s0 + $0xa8] sm:$0xff]
    %v66 = vld [vmem:[%s0 + $0xb0] sm:$0xff]
    %v67 = vld [vmem:[%s0 + $0xb8] sm:$0xf]
    %v68 = vld [vmem:[%s0 + $0xc0] sm:$0xff]
    %v69 = vld [vmem:[%s0 + $0xc8] sm:$0xff]
    %v70 = vld [vmem:[%s0 + $0xd0] sm:$0xff]
    %v71 = vld [vmem:[%s0 + $0xd8] sm:$0xf]
    %v72 = vld [vmem:[%s0 + $0xe0] sm:$0xff]
    %v73 = vld [vmem:[%s0 + $0xe8] sm:$0xff]
    %v74 = vld [vmem:[%s0 + $0xf0] sm:$0xff]
    %v75 = vld [vmem:[%s0 + $0xf8] sm:$0xf]
    %vm108 = vcmask 1046528
    %v109 = vrot.slane %v44, 1
    %v110 = vrot.slane %v45, 1
    %v111 = vsel %vm108, %v109, %v110
    %v112 = vrot.slane %v46, 1
    %v113 = vsel %vm108, %v110, %v112
    %v114 = vrot.slane %v47, 1
    %v115 = vsel %vm108, %v112, %v114
    %v116 = vrot.slane %v48, 1
    %v117 = vrot.slane %v49, 1
    %v118 = vsel %vm108, %v116, %v117
    %v119 = vrot.slane %v50, 1
    %v120 = vsel %vm108, %v117, %v119
    %v121 = vrot.slane %v51, 1
    %v122 = vsel %vm108, %v119, %v121
    %v123 = vrot.slane %v52, 1
    %v124 = vrot.slane %v53, 1
    %v125 = vsel %vm108, %v123, %v124
    %v126 = vrot.slane %v54, 1
    %v127 = vsel %vm108, %v124, %v126
    %v128 = vrot.slane %v55, 1
    %v129 = vsel %vm108, %v126, %v128
    %v130 = vrot.slane %v56, 1
    %v131 = vrot.slane %v57, 1
    %v132 = vsel %vm108, %v130, %v131
    %v133 = vrot.slane %v58, 1
    %v134 = vsel %vm108, %v131, %v133
    %v135 = vrot.slane %v59, 1
    %v136 = vsel %vm108, %v133, %v135
    %v137 = vrot.slane %v60, 1
    %v138 = vrot.slane %v61, 1
    %v139 = vsel %vm108, %v137, %v138
    %v140 = vrot.slane %v62, 1
    %v141 = vsel %vm108, %v138, %v140
    %v142 = vrot.slane %v63, 1
    %v143 = vsel %vm108, %v140, %v142
    %v144 = vrot.slane %v64, 1
    %v145 = vrot.slane %v65, 1
    %v146 = vsel %vm108, %v144, %v145
    %v147 = vrot.slane %v66, 1
    %v148 = vsel %vm108, %v145, %v147
    %v149 = vrot.slane %v67, 1
    %v150 = vsel %vm108, %v147, %v149
    %v151 = vrot.slane %v68, 1
    %v152 = vrot.slane %v69, 1
    %v153 = vsel %vm108, %v151, %v152
    %v154 = vrot.slane %v70, 1
    %v155 = vsel %vm108, %v152, %v154
    %v156 = vrot.slane %v71, 1
    %v157 = vsel %vm108, %v154, %v156
    %v158 = vrot.slane %v72, 1
    %v159 = vrot.slane %v73, 1
    %v160 = vsel %vm108, %v158, %v159
    %v161 = vrot.slane %v74, 1
    %v162 = vsel %vm108, %v159, %v161
    %v163 = vrot.slane %v75, 1
    %v164 = vsel %vm108, %v161, %v163
    %165 = vrot.lane.b32.xlu0 %v111, 28
    %v166 = vpop.permute.xlu0 %165
    %167 = vrot.lane.b32.xlu0 %v113, 28
    %v168 = vpop.permute.xlu0 %167
    %169 = vrot.lane.b32.xlu0 %v115, 28
    %v170 = vpop.permute.xlu0 %169
    %171 = vrot.lane.b32.xlu0 %v118, 28
    %v172 = vpop.permute.xlu0 %171
    %173 = vrot.lane.b32.xlu0 %v120, 28
    %v174 = vpop.permute.xlu0 %173
    %175 = vrot.lane.b32.xlu0 %v122, 28
    %v176 = vpop.permute.xlu0 %175
    %177 = vrot.lane.b32.xlu0 %v125, 28
    %v178 = vpop.permute.xlu0 %177
    %179 = vrot.lane.b32.xlu0 %v127, 28
    %v180 = vpop.permute.xlu0 %179
    %181 = vrot.lane.b32.xlu0 %v129, 28
    %v182 = vpop.permute.xlu0 %181
    %183 = vrot.lane.b32.xlu0 %v132, 28
    %v184 = vpop.permute.xlu0 %183
    %185 = vrot.lane.b32.xlu0 %v134, 28
    %v186 = vpop.permute.xlu0 %185
    %187 = vrot.lane.b32.xlu0 %v136, 28
    %v188 = vpop.permute.xlu0 %187
    %189 = vrot.lane.b32.xlu0 %v139, 28
    %v190 = vpop.permute.xlu0 %189
    %191 = vrot.lane.b32.xlu0 %v141, 28
    %v192 = vpop.permute.xlu0 %191
    %193 = vrot.lane.b32.xlu0 %v143, 28
    %v194 = vpop.permute.xlu0 %193
    %195 = vrot.lane.b32.xlu0 %v146, 28
    %v196 = vpop.permute.xlu0 %195
    %197 = vrot.lane.b32.xlu0 %v148, 28
    %v198 = vpop.permute.xlu0 %197
    %199 = vrot.lane.b32.xlu0 %v150, 28
    %v200 = vpop.permute.xlu0 %199
    %201 = vrot.lane.b32.xlu0 %v153, 28
    %v202 = vpop.permute.xlu0 %201
    %203 = vrot.lane.b32.xlu0 %v155, 28
    %v204 = vpop.permute.xlu0 %203
    %205 = vrot.lane.b32.xlu0 %v157, 28
    %v206 = vpop.permute.xlu0 %205
    %207 = vrot.lane.b32.xlu0 %v160, 28
    %v208 = vpop.permute.xlu0 %207
    %209 = vrot.lane.b32.xlu0 %v162, 28
    %v210 = vpop.permute.xlu0 %209
    %211 = vrot.lane.b32.xlu0 %v164, 28
    %v212 = vpop.permute.xlu0 %211
    %vm237 = vcmask 1045504
    %v238 = vrot.slane %v44, 2
    %v239 = vrot.slane %v45, 2
    %v240 = vsel %vm237, %v238, %v239
    %v241 = vrot.slane %v46, 2
    %v242 = vsel %vm237, %v239, %v241
    %v243 = vrot.slane %v47, 2
    %v244 = vsel %vm237, %v241, %v243
    %v245 = vrot.slane %v48, 2
    %v246 = vrot.slane %v49, 2
    %v247 = vsel %vm237, %v245, %v246
    %v248 = vrot.slane %v50, 2
    %v249 = vsel %vm237, %v246, %v248
    %v250 = vrot.slane %v51, 2
    %v251 = vsel %vm237, %v248, %v250
    %v252 = vrot.slane %v52, 2
    %v253 = vrot.slane %v53, 2
    %v254 = vsel %vm237, %v252, %v253
    %v255 = vrot.slane %v54, 2
    %v256 = vsel %vm237, %v253, %v255
    %v257 = vrot.slane %v55, 2
    %v258 = vsel %vm237, %v255, %v257
    %v259 = vrot.slane %v56, 2
    %v260 = vrot.slane %v57, 2
    %v261 = vsel %vm237, %v259, %v260
    %v262 = vrot.slane %v58, 2
    %v263 = vsel %vm237, %v260, %v262
    %v264 = vrot.slane %v59, 2
    %v265 = vsel %vm237, %v262, %v264
    %v266 = vrot.slane %v60, 2
    %v267 = vrot.slane %v61, 2
    %v268 = vsel %vm237, %v266, %v267
    %v269 = vrot.slane %v62, 2
    %v270 = vsel %vm237, %v267, %v269
    %v271 = vrot.slane %v63, 2
    %v272 = vsel %vm237, %v269, %v271
    %v273 = vrot.slane %v64, 2
    %v274 = vrot.slane %v65, 2
    %v275 = vsel %vm237, %v273, %v274
    %v276 = vrot.slane %v66, 2
    %v277 = vsel %vm237, %v274, %v276
    %v278 = vrot.slane %v67, 2
    %v279 = vsel %vm237, %v276, %v278
    %v280 = vrot.slane %v68, 2
    %v281 = vrot.slane %v69, 2
    %v282 = vsel %vm237, %v280, %v281
    %v283 = vrot.slane %v70, 2
    %v284 = vsel %vm237, %v281, %v283
    %v285 = vrot.slane %v71, 2
    %v286 = vsel %vm237, %v283, %v285
    %v287 = vrot.slane %v72, 2
    %v288 = vrot.slane %v73, 2
    %v289 = vsel %vm237, %v287, %v288
    %v290 = vrot.slane %v74, 2
    %v291 = vsel %vm237, %v288, %v290
    %v292 = vrot.slane %v75, 2
    %v293 = vsel %vm237, %v290, %v292
    %294 = vrot.lane.b32.xlu0 %v240, 56
    %v295 = vpop.permute.xlu0 %294
    %296 = vrot.lane.b32.xlu0 %v242, 56
    %v297 = vpop.permute.xlu0 %296
    %298 = vrot.lane.b32.xlu0 %v244, 56
    %v299 = vpop.permute.xlu0 %298
    %300 = vrot.lane.b32.xlu0 %v247, 56
    %v301 = vpop.permute.xlu0 %300
    %302 = vrot.lane.b32.xlu0 %v249, 56
    %v303 = vpop.permute.xlu0 %302
    %304 = vrot.lane.b32.xlu0 %v251, 56
    %v305 = vpop.permute.xlu0 %304
    %306 = vrot.lane.b32.xlu0 %v254, 56
    %v307 = vpop.permute.xlu0 %306
    %308 = vrot.lane.b32.xlu0 %v256, 56
    %v309 = vpop.permute.xlu0 %308
    %310 = vrot.lane.b32.xlu0 %v258, 56
    %v311 = vpop.permute.xlu0 %310
    %312 = vrot.lane.b32.xlu0 %v261, 56
    %v313 = vpop.permute.xlu0 %312
    %314 = vrot.lane.b32.xlu0 %v263, 56
    %v315 = vpop.permute.xlu0 %314
    %316 = vrot.lane.b32.xlu0 %v265, 56
    %v317 = vpop.permute.xlu0 %316
    %318 = vrot.lane.b32.xlu0 %v268, 56
    %v319 = vpop.permute.xlu0 %318
    %320 = vrot.lane.b32.xlu0 %v270, 56
    %v321 = vpop.permute.xlu0 %320
    %322 = vrot.lane.b32.xlu0 %v272, 56
    %v323 = vpop.permute.xlu0 %322
    %324 = vrot.lane.b32.xlu0 %v275, 56
    %v325 = vpop.permute.xlu0 %324
    %326 = vrot.lane.b32.xlu0 %v277, 56
    %v327 = vpop.permute.xlu0 %326
    %328 = vrot.lane.b32.xlu0 %v279, 56
    %v329 = vpop.permute.xlu0 %328
    %330 = vrot.lane.b32.xlu0 %v282, 56
    %v331 = vpop.permute.xlu0 %330
    %332 = vrot.lane.b32.xlu0 %v284, 56
    %v333 = vpop.permute.xlu0 %332
    %334 = vrot.lane.b32.xlu0 %v286, 56
    %v335 = vpop.permute.xlu0 %334
    %336 = vrot.lane.b32.xlu0 %v289, 56
    %v337 = vpop.permute.xlu0 %336
    %338 = vrot.lane.b32.xlu0 %v291, 56
    %v339 = vpop.permute.xlu0 %338
    %340 = vrot.lane.b32.xlu0 %v293, 56
    %v341 = vpop.permute.xlu0 %340
    %vm366 = vcmask 1044480
    %v367 = vrot.slane %v44, 3
    %v368 = vrot.slane %v45, 3
    %v369 = vsel %vm366, %v367, %v368
    %v370 = vrot.slane %v46, 3
    %v371 = vsel %vm366, %v368, %v370
    %v372 = vrot.slane %v47, 3
    %v373 = vsel %vm366, %v370, %v372
    %v374 = vrot.slane %v48, 3
    %v375 = vrot.slane %v49, 3
    %v376 = vsel %vm366, %v374, %v375
    %v377 = vrot.slane %v50, 3
    %v378 = vsel %vm366, %v375, %v377
    %v379 = vrot.slane %v51, 3
    %v380 = vsel %vm366, %v377, %v379
    %v381 = vrot.slane %v52, 3
    %v382 = vrot.slane %v53, 3
    %v383 = vsel %vm366, %v381, %v382
    %v384 = vrot.slane %v54, 3
    %v385 = vsel %vm366, %v382, %v384
    %v386 = vrot.slane %v55, 3
    %v387 = vsel %vm366, %v384, %v386
    %v388 = vrot.slane %v56, 3
    %v389 = vrot.slane %v57, 3
    %v390 = vsel %vm366, %v388, %v389
    %v391 = vrot.slane %v58, 3
    %v392 = vsel %vm366, %v389, %v391
    %v393 = vrot.slane %v59, 3
    %v394 = vsel %vm366, %v391, %v393
    %v395 = vrot.slane %v60, 3
    %v396 = vrot.slane %v61, 3
    %v397 = vsel %vm366, %v395, %v396
    %v398 = vrot.slane %v62, 3
    %v399 = vsel %vm366, %v396, %v398
    %v400 = vrot.slane %v63, 3
    %v401 = vsel %vm366, %v398, %v400
    %v402 = vrot.slane %v64, 3
    %v403 = vrot.slane %v65, 3
    %v404 = vsel %vm366, %v402, %v403
    %v405 = vrot.slane %v66, 3
    %v406 = vsel %vm366, %v403, %v405
    %v407 = vrot.slane %v67, 3
    %v408 = vsel %vm366, %v405, %v407
    %v409 = vrot.slane %v68, 3
    %v410 = vrot.slane %v69, 3
    %v411 = vsel %vm366, %v409, %v410
    %v412 = vrot.slane %v70, 3
    %v413 = vsel %vm366, %v410, %v412
    %v414 = vrot.slane %v71, 3
    %v415 = vsel %vm366, %v412, %v414
    %v416 = vrot.slane %v72, 3
    %v417 = vrot.slane %v73, 3
    %v418 = vsel %vm366, %v416, %v417
    %v419 = vrot.slane %v74, 3
    %v420 = vsel %vm366, %v417, %v419
    %v421 = vrot.slane %v75, 3
    %v422 = vsel %vm366, %v419, %v421
    %423 = vrot.lane.b32.xlu0 %v369, 84
    %v424 = vpop.permute.xlu0 %423
    %425 = vrot.lane.b32.xlu0 %v371, 84
    %v426 = vpop.permute.xlu0 %425
    %427 = vrot.lane.b32.xlu0 %v373, 84
    %v428 = vpop.permute.xlu0 %427
    %429 = vrot.lane.b32.xlu0 %v376, 84
    %v430 = vpop.permute.xlu0 %429
    %431 = vrot.lane.b32.xlu0 %v378, 84
    %v432 = vpop.permute.xlu0 %431
    %433 = vrot.lane.b32.xlu0 %v380, 84
    %v434 = vpop.permute.xlu0 %433
    %435 = vrot.lane.b32.xlu0 %v383, 84
    %v436 = vpop.permute.xlu0 %435
    %437 = vrot.lane.b32.xlu0 %v385, 84
    %v438 = vpop.permute.xlu0 %437
    %439 = vrot.lane.b32.xlu0 %v387, 84
    %v440 = vpop.permute.xlu0 %439
    %441 = vrot.lane.b32.xlu0 %v390, 84
    %v442 = vpop.permute.xlu0 %441
    %443 = vrot.lane.b32.xlu0 %v392, 84
    %v444 = vpop.permute.xlu0 %443
    %445 = vrot.lane.b32.xlu0 %v394, 84
    %v446 = vpop.permute.xlu0 %445
    %447 = vrot.lane.b32.xlu0 %v397, 84
    %v448 = vpop.permute.xlu0 %447
    %449 = vrot.lane.b32.xlu0 %v399, 84
    %v450 = vpop.permute.xlu0 %449
    %451 = vrot.lane.b32.xlu0 %v401, 84
    %v452 = vpop.permute.xlu0 %451
    %453 = vrot.lane.b32.xlu0 %v404, 84
    %v454 = vpop.permute.xlu0 %453
    %455 = vrot.lane.b32.xlu0 %v406, 84
    %v456 = vpop.permute.xlu0 %455
    %457 = vrot.lane.b32.xlu0 %v408, 84
    %v458 = vpop.permute.xlu0 %457
    %459 = vrot.lane.b32.xlu0 %v411, 84
    %v460 = vpop.permute.xlu0 %459
    %461 = vrot.lane.b32.xlu0 %v413, 84
    %v462 = vpop.permute.xlu0 %461
    %463 = vrot.lane.b32.xlu0 %v415, 84
    %v464 = vpop.permute.xlu0 %463
    %465 = vrot.lane.b32.xlu0 %v418, 84
    %v466 = vpop.permute.xlu0 %465
    %467 = vrot.lane.b32.xlu0 %v420, 84
    %v468 = vpop.permute.xlu0 %467
    %469 = vrot.lane.b32.xlu0 %v422, 84
    %v470 = vpop.permute.xlu0 %469
    %vm495 = vcmask 1043456
    %v496 = vrot.slane %v44, 4
    %v497 = vrot.slane %v45, 4
    %v498 = vsel %vm495, %v496, %v497
    %v499 = vrot.slane %v46, 4
    %v500 = vsel %vm495, %v497, %v499
    %v501 = vrot.slane %v47, 4
    %v502 = vsel %vm495, %v499, %v501
    %v503 = vrot.slane %v48, 4
    %v504 = vrot.slane %v49, 4
    %v505 = vsel %vm495, %v503, %v504
    %v506 = vrot.slane %v50, 4
    %v507 = vsel %vm495, %v504, %v506
    %v508 = vrot.slane %v51, 4
    %v509 = vsel %vm495, %v506, %v508
    %v510 = vrot.slane %v52, 4
    %v511 = vrot.slane %v53, 4
    %v512 = vsel %vm495, %v510, %v511
    %v513 = vrot.slane %v54, 4
    %v514 = vsel %vm495, %v511, %v513
    %v515 = vrot.slane %v55, 4
    %v516 = vsel %vm495, %v513, %v515
    %v517 = vrot.slane %v56, 4
    %v518 = vrot.slane %v57, 4
    %v519 = vsel %vm495, %v517, %v518
    %v520 = vrot.slane %v58, 4
    %v521 = vsel %vm495, %v518, %v520
    %v522 = vrot.slane %v59, 4
    %v523 = vsel %vm495, %v520, %v522
    %v524 = vrot.slane %v60, 4
    %v525 = vrot.slane %v61, 4
    %v526 = vsel %vm495, %v524, %v525
    %v527 = vrot.slane %v62, 4
    %v528 = vsel %vm495, %v525, %v527
    %v529 = vrot.slane %v63, 4
    %v530 = vsel %vm495, %v527, %v529
    %v531 = vrot.slane %v64, 4
    %v532 = vrot.slane %v65, 4
    %v533 = vsel %vm495, %v531, %v532
    %v534 = vrot.slane %v66, 4
    %v535 = vsel %vm495, %v532, %v534
    %v536 = vrot.slane %v67, 4
    %v537 = vsel %vm495, %v534, %v536
    %v538 = vrot.slane %v68, 4
    %v539 = vrot.slane %v69, 4
    %v540 = vsel %vm495, %v538, %v539
    %v541 = vrot.slane %v70, 4
    %v542 = vsel %vm495, %v539, %v541
    %v543 = vrot.slane %v71, 4
    %v544 = vsel %vm495, %v541, %v543
    %v545 = vrot.slane %v72, 4
    %v546 = vrot.slane %v73, 4
    %v547 = vsel %vm495, %v545, %v546
    %v548 = vrot.slane %v74, 4
    %v549 = vsel %vm495, %v546, %v548
    %v550 = vrot.slane %v75, 4
    %v551 = vsel %vm495, %v548, %v550
    %552 = vrot.lane.b32.xlu0 %v498, 112
    %v553 = vpop.permute.xlu0 %552
    %554 = vrot.lane.b32.xlu0 %v500, 112
    %v555 = vpop.permute.xlu0 %554
    %556 = vrot.lane.b32.xlu0 %v502, 112
    %v557 = vpop.permute.xlu0 %556
    %558 = vrot.lane.b32.xlu0 %v505, 112
    %v559 = vpop.permute.xlu0 %558
    %560 = vrot.lane.b32.xlu0 %v507, 112
    %v561 = vpop.permute.xlu0 %560
    %562 = vrot.lane.b32.xlu0 %v509, 112
    %v563 = vpop.permute.xlu0 %562
    %564 = vrot.lane.b32.xlu0 %v512, 112
    %v565 = vpop.permute.xlu0 %564
    %566 = vrot.lane.b32.xlu0 %v514, 112
    %v567 = vpop.permute.xlu0 %566
    %568 = vrot.lane.b32.xlu0 %v516, 112
    %v569 = vpop.permute.xlu0 %568
    %570 = vrot.lane.b32.xlu0 %v519, 112
    %v571 = vpop.permute.xlu0 %570
    %572 = vrot.lane.b32.xlu0 %v521, 112
    %v573 = vpop.permute.xlu0 %572
    %574 = vrot.lane.b32.xlu0 %v523, 112
    %v575 = vpop.permute.xlu0 %574
    %576 = vrot.lane.b32.xlu0 %v526, 112
    %v577 = vpop.permute.xlu0 %576
    %578 = vrot.lane.b32.xlu0 %v528, 112
    %v579 = vpop.permute.xlu0 %578
    %580 = vrot.lane.b32.xlu0 %v530, 112
    %v581 = vpop.permute.xlu0 %580
    %582 = vrot.lane.b32.xlu0 %v533, 112
    %v583 = vpop.permute.xlu0 %582
    %584 = vrot.lane.b32.xlu0 %v535, 112
    %v585 = vpop.permute.xlu0 %584
    %586 = vrot.lane.b32.xlu0 %v537, 112
    %v587 = vpop.permute.xlu0 %586
    %588 = vrot.lane.b32.xlu0 %v540, 112
    %v589 = vpop.permute.xlu0 %588
    %590 = vrot.lane.b32.xlu0 %v542, 112
    %v591 = vpop.permute.xlu0 %590
    %592 = vrot.lane.b32.xlu0 %v544, 112
    %v593 = vpop.permute.xlu0 %592
    %594 = vrot.lane.b32.xlu0 %v547, 112
    %v595 = vpop.permute.xlu0 %594
    %596 = vrot.lane.b32.xlu0 %v549, 112
    %v597 = vpop.permute.xlu0 %596
    %598 = vrot.lane.b32.xlu0 %v551, 112
    %v599 = vpop.permute.xlu0 %598
    %vm624 = vcmask 228352
    %v625 = vsel %vm624, %v44, %v166
    %v626 = vsel %vm624, %v45, %v168
    %v627 = vsel %vm624, %v46, %v170
    %v628 = vsel %vm624, %v48, %v172
    %v629 = vsel %vm624, %v49, %v174
    %v630 = vsel %vm624, %v50, %v176
    %v631 = vsel %vm624, %v52, %v178
    %v632 = vsel %vm624, %v53, %v180
    %v633 = vsel %vm624, %v54, %v182
    %v634 = vsel %vm624, %v56, %v184
    %v635 = vsel %vm624, %v57, %v186
    %v636 = vsel %vm624, %v58, %v188
    %v637 = vsel %vm624, %v60, %v190
    %v638 = vsel %vm624, %v61, %v192
    %v639 = vsel %vm624, %v62, %v194
    %v640 = vsel %vm624, %v64, %v196
    %v641 = vsel %vm624, %v65, %v198
    %v642 = vsel %vm624, %v66, %v200
    %v643 = vsel %vm624, %v68, %v202
    %v644 = vsel %vm624, %v69, %v204
    %v645 = vsel %vm624, %v70, %v206
    %v646 = vsel %vm624, %v72, %v208
    %v647 = vsel %vm624, %v73, %v210
    %v648 = vsel %vm624, %v74, %v212
    %vm649 = vcmask 457728
    %v650 = vsel %vm649, %v625, %v295
    %v651 = vsel %vm649, %v626, %v297
    %v652 = vsel %vm649, %v627, %v299
    %v653 = vsel %vm649, %v628, %v301
    %v654 = vsel %vm649, %v629, %v303
    %v655 = vsel %vm649, %v630, %v305
    %v656 = vsel %vm649, %v631, %v307
    %v657 = vsel %vm649, %v632, %v309
    %v658 = vsel %vm649, %v633, %v311
    %v659 = vsel %vm649, %v634, %v313
    %v660 = vsel %vm649, %v635, %v315
    %v661 = vsel %vm649, %v636, %v317
    %v662 = vsel %vm649, %v637, %v319
    %v663 = vsel %vm649, %v638, %v321
    %v664 = vsel %vm649, %v639, %v323
    %v665 = vsel %vm649, %v640, %v325
    %v666 = vsel %vm649, %v641, %v327
    %v667 = vsel %vm649, %v642, %v329
    %v668 = vsel %vm649, %v643, %v331
    %v669 = vsel %vm649, %v644, %v333
    %v670 = vsel %vm649, %v645, %v335
    %v671 = vsel %vm649, %v646, %v337
    %v672 = vsel %vm649, %v647, %v339
    %v673 = vsel %vm649, %v648, %v341
    %vm674 = vcmask 687104
    %v675 = vsel %vm674, %v650, %v424
    %v676 = vsel %vm674, %v651, %v426
    %v677 = vsel %vm674, %v652, %v428
    %v678 = vsel %vm674, %v653, %v430
    %v679 = vsel %vm674, %v654, %v432
    %v680 = vsel %vm674, %v655, %v434
    %v681 = vsel %vm674, %v656, %v436
    %v682 = vsel %vm674, %v657, %v438
    %v683 = vsel %vm674, %v658, %v440
    %v684 = vsel %vm674, %v659, %v442
    %v685 = vsel %vm674, %v660, %v444
    %v686 = vsel %vm674, %v661, %v446
    %v687 = vsel %vm674, %v662, %v448
    %v688 = vsel %vm674, %v663, %v450
    %v689 = vsel %vm674, %v664, %v452
    %v690 = vsel %vm674, %v665, %v454
    %v691 = vsel %vm674, %v666, %v456
    %v692 = vsel %vm674, %v667, %v458
    %v693 = vsel %vm674, %v668, %v460
    %v694 = vsel %vm674, %v669, %v462
    %v695 = vsel %vm674, %v670, %v464
    %v696 = vsel %vm674, %v671, %v466
    %v697 = vsel %vm674, %v672, %v468
    %v698 = vsel %vm674, %v673, %v470
    %vm699 = vcmask 916480
    %v700 = vsel %vm699, %v675, %v553
    %v701 = vsel %vm699, %v676, %v555
    %v702 = vsel %vm699, %v677, %v557
    %v703 = vsel %vm699, %v678, %v559
    %v704 = vsel %vm699, %v679, %v561
    %v705 = vsel %vm699, %v680, %v563
    %v706 = vsel %vm699, %v681, %v565
    %v707 = vsel %vm699, %v682, %v567
    %v708 = vsel %vm699, %v683, %v569
    %v709 = vsel %vm699, %v684, %v571
    %v710 = vsel %vm699, %v685, %v573
    %v711 = vsel %vm699, %v686, %v575
    %v712 = vsel %vm699, %v687, %v577
    %v713 = vsel %vm699, %v688, %v579
    %v714 = vsel %vm699, %v689, %v581
    %v715 = vsel %vm699, %v690, %v583
    %v716 = vsel %vm699, %v691, %v585
    %v717 = vsel %vm699, %v692, %v587
    %v718 = vsel %vm699, %v693, %v589
    %v719 = vsel %vm699, %v694, %v591
    %v720 = vsel %vm699, %v695, %v593
    %v721 = vsel %vm699, %v696, %v595
    %v722 = vsel %vm699, %v697, %v597
    %v723 = vsel %vm699, %v698, %v599
    %v724 = vld [vmem:[#allocation2] sm:$0xff]
    %v725 = vld [vmem:[#allocation2 + $0x8] sm:$0xff]
    %v726 = vld [vmem:[#allocation2 + $0x10] sm:$0xff]
    %v727 = vld [vmem:[#allocation2 + $0x18] sm:$0xff]
    %v728 = vld [vmem:[#allocation2 + $0x20] sm:$0xff]
    %v729 = vld [vmem:[#allocation2 + $0x28] sm:$0xff]
    %v730 = vld [vmem:[#allocation2 + $0x30] sm:$0xff]
    %v731 = vld [vmem:[#allocation2 + $0x38] sm:$0xff]
    %v732 = vld [vmem:[#allocation2 + $0x40] sm:$0xff]
    %v733 = vld [vmem:[#allocation2 + $0x48] sm:$0xff]
    %v734 = vld [vmem:[#allocation2 + $0x50] sm:$0xff]
    %v735 = vld [vmem:[#allocation2 + $0x58] sm:$0xff]
    %v736 = vld [vmem:[#allocation2 + $0x60] sm:$0xff]
    %v737 = vld [vmem:[#allocation2 + $0x68] sm:$0xff]
    %v738 = vld [vmem:[#allocation2 + $0x70] sm:$0xff]
    %v739 = vld [vmem:[#allocation2 + $0x78] sm:$0xff]
    %v740 = vld [vmem:[#allocation2 + $0x80] sm:$0xff]
    %v741 = vld [vmem:[#allocation2 + $0x88] sm:$0xff]
    %v742 = vld [vmem:[#allocation2 + $0x90] sm:$0xff]
    %v743 = vld [vmem:[#allocation2 + $0x98] sm:$0xff]
    %v744 = vld [vmem:[#allocation2 + $0xa0] sm:$0xff]
    %v745 = vld [vmem:[#allocation2 + $0xa8] sm:$0xff]
    %v746 = vld [vmem:[#allocation2 + $0xb0] sm:$0xff]
    %v747 = vld [vmem:[#allocation2 + $0xb8] sm:$0xff]
    %v748 = vld [vmem:[#allocation2 + $0xc0] sm:$0xff]
    %v749 = vld [vmem:[#allocation2 + $0xc8] sm:$0xff]
    %v750 = vld [vmem:[#allocation2 + $0xd0] sm:$0xff]
    %v751 = vld [vmem:[#allocation2 + $0xd8] sm:$0xff]
    %v752 = vld [vmem:[#allocation2 + $0xe0] sm:$0xff]
    %v753 = vld [vmem:[#allocation2 + $0xe8] sm:$0xff]
    %v754 = vld [vmem:[#allocation2 + $0xf0] sm:$0xff]
    %v755 = vld [vmem:[#allocation2 + $0xf8] sm:$0xff]
    %v756 = vld [vmem:[#allocation2 + $0x100] sm:$0xff]
    %v757 = vld [vmem:[#allocation2 + $0x108] sm:$0xff]
    %v758 = vld [vmem:[#allocation2 + $0x110] sm:$0xff]
    %v759 = vld [vmem:[#allocation2 + $0x118] sm:$0xff]
    %v760 = vld [vmem:[#allocation2 + $0x120] sm:$0xff]
    %v761 = vld [vmem:[#allocation2 + $0x128] sm:$0xff]
    %v762 = vld [vmem:[#allocation2 + $0x130] sm:$0xff]
    %v763 = vld [vmem:[#allocation2 + $0x138] sm:$0xff]
    %v764 = vld [vmem:[#allocation2 + $0x140] sm:$0xff]
    %v765 = vld [vmem:[#allocation2 + $0x148] sm:$0xff]
    %v766 = vld [vmem:[#allocation2 + $0x150] sm:$0xff]
    %v767 = vld [vmem:[#allocation2 + $0x158] sm:$0xff]
    %v768 = vld [vmem:[#allocation2 + $0x160] sm:$0xff]
    %v769 = vld [vmem:[#allocation2 + $0x168] sm:$0xff]
    %v770 = vld [vmem:[#allocation2 + $0x170] sm:$0xff]
    %v771 = vld [vmem:[#allocation2 + $0x178] sm:$0xff]
    %v772 = vld [vmem:[#allocation2 + $0x180] sm:$0xff]
    %v773 = vld [vmem:[#allocation2 + $0x188] sm:$0xff]
    %v774 = vld [vmem:[#allocation2 + $0x190] sm:$0xff]
    %v775 = vld [vmem:[#allocation2 + $0x198] sm:$0xff]
    %v776 = vld [vmem:[#allocation2 + $0x1a0] sm:$0xff]
    %v777 = vld [vmem:[#allocation2 + $0x1a8] sm:$0xff]
    %v778 = vld [vmem:[#allocation2 + $0x1b0] sm:$0xff]
    %v779 = vld [vmem:[#allocation2 + $0x1b8] sm:$0xff]
    %v780 = vld [vmem:[#allocation2 + $0x1c0] sm:$0xff]
    %v781 = vld [vmem:[#allocation2 + $0x1c8] sm:$0xff]
    %v782 = vld [vmem:[#allocation2 + $0x1d0] sm:$0xff]
    %v783 = vld [vmem:[#allocation2 + $0x1d8] sm:$0xff]
    %v784 = vld [vmem:[#allocation2 + $0x1e0] sm:$0xff]
    %v785 = vld [vmem:[#allocation2 + $0x1e8] sm:$0xff]
    %v786 = vld [vmem:[#allocation2 + $0x1f0] sm:$0xff]
    %v787 = vld [vmem:[#allocation2 + $0x1f8] sm:$0xff]
    %v788 = vld [vmem:[#allocation2 + $0x200] sm:$0xff]
    %v789 = vld [vmem:[#allocation2 + $0x208] sm:$0xff]
    %v790 = vld [vmem:[#allocation2 + $0x210] sm:$0xff]
    %v791 = vld [vmem:[#allocation2 + $0x218] sm:$0xff]
    %v792 = vld [vmem:[#allocation2 + $0x220] sm:$0xff]
    %v793 = vld [vmem:[#allocation2 + $0x228] sm:$0xff]
    %v794 = vld [vmem:[#allocation2 + $0x230] sm:$0xff]
    %v795 = vld [vmem:[#allocation2 + $0x238] sm:$0xff]
    %v796 = vld [vmem:[#allocation2 + $0x240] sm:$0xff]
    %v797 = vld [vmem:[#allocation2 + $0x248] sm:$0xff]
    %v798 = vld [vmem:[#allocation2 + $0x250] sm:$0xff]
    %v799 = vld [vmem:[#allocation2 + $0x258] sm:$0xff]
    %v800 = vld [vmem:[#allocation2 + $0x260] sm:$0xff]
    %v801 = vld [vmem:[#allocation2 + $0x268] sm:$0xff]
    %v802 = vld [vmem:[#allocation2 + $0x270] sm:$0xff]
    %v803 = vld [vmem:[#allocation2 + $0x278] sm:$0xff]
    %v804 = vld [vmem:[#allocation2 + $0x280] sm:$0xff]
    %v805 = vld [vmem:[#allocation2 + $0x288] sm:$0xff]
    %v806 = vld [vmem:[#allocation2 + $0x290] sm:$0xff]
    %v807 = vld [vmem:[#allocation2 + $0x298] sm:$0xff]
    %v808 = vld [vmem:[#allocation2 + $0x2a0] sm:$0xff]
    %v809 = vld [vmem:[#allocation2 + $0x2a8] sm:$0xff]
    %v810 = vld [vmem:[#allocation2 + $0x2b0] sm:$0xff]
    %v811 = vld [vmem:[#allocation2 + $0x2b8] sm:$0xff]
    %v812 = vld [vmem:[#allocation2 + $0x2c0] sm:$0xff]
    %v813 = vld [vmem:[#allocation2 + $0x2c8] sm:$0xff]
    %v814 = vld [vmem:[#allocation2 + $0x2d0] sm:$0xff]
    %v815 = vld [vmem:[#allocation2 + $0x2d8] sm:$0xff]
    %v816 = vld [vmem:[#allocation2 + $0x2e0] sm:$0xff]
    %v817 = vld [vmem:[#allocation2 + $0x2e8] sm:$0xff]
    %v818 = vld [vmem:[#allocation2 + $0x2f0] sm:$0xff]
    %v819 = vld [vmem:[#allocation2 + $0x2f8] sm:$0xff]
    %v820 = vld [vmem:[#allocation2 + $0x300] sm:$0xff]
    %v821 = vld [vmem:[#allocation2 + $0x308] sm:$0xff]
    %v822 = vld [vmem:[#allocation2 + $0x310] sm:$0xff]
    %v823 = vld [vmem:[#allocation2 + $0x318] sm:$0xff]
    %v824 = vld [vmem:[#allocation2 + $0x320] sm:$0xff]
    %v825 = vld [vmem:[#allocation2 + $0x328] sm:$0xff]
    %v826 = vld [vmem:[#allocation2 + $0x330] sm:$0xf]
    %v827 = vld [vmem:[#allocation2 + $0x338] sm:$0xf]
    %v828 = vld [vmem:[#allocation2 + $0x340] sm:$0xf]
    %v829 = vld [vmem:[#allocation2 + $0x348] sm:$0xf]
    %v830 = vld [vmem:[#allocation2 + $0x350] sm:$0xf]
    %v831 = vld [vmem:[#allocation2 + $0x358] sm:$0xf]
    %v832 = vld [vmem:[#allocation4] sm:$0x3f]
    %v834 = vperm.slane %v832, 0
    %v835 = vperm.slane %v832, 1
    %v836 = vperm.slane %v832, 2
    %v837 = vperm.slane %v832, 3
    %v838 = vperm.slane %v832, 4
    %v839 = vperm.slane %v832, 5
    %vm846 = vcmask 97280
    %v847 = vsel %vm846, %v553, 0
    %v849 = vsel %vm846, %v555, 0
    %v851 = vsel %vm846, %v557, 0
    %v853 = vsel %vm846, %v559, 0
    %v855 = vsel %vm846, %v561, 0
    %v857 = vsel %vm846, %v563, 0
    %v859 = vsel %vm846, %v565, 0
    %v861 = vsel %vm846, %v567, 0
    %v863 = vsel %vm846, %v569, 0
    %v865 = vsel %vm846, %v571, 0
    %v867 = vsel %vm846, %v573, 0
    %v869 = vsel %vm846, %v575, 0
    %v871 = vsel %vm846, %v577, 0
    %v873 = vsel %vm846, %v579, 0
    %v875 = vsel %vm846, %v581, 0
    %v877 = vsel %vm846, %v583, 0
    %v879 = vsel %vm846, %v585, 0
    %v881 = vsel %vm846, %v587, 0
    %v883 = vsel %vm846, %v589, 0
    %v885 = vsel %vm846, %v591, 0
    %v887 = vsel %vm846, %v593, 0
    %v889 = vsel %vm846, %v595, 0
    %v891 = vsel %vm846, %v597, 0
    %v893 = vsel %vm846, %v599, 0
    %v896 = vsel %vm495, %v826, 0
    %v899 = vsel %vm495, %v827, 0
    %v902 = vsel %vm495, %v828, 0
    %v905 = vsel %vm495, %v829, 0
    %v908 = vsel %vm495, %v830, 0
    %v911 = vsel %vm495, %v831, 0
    %913 = vmatpush.msra.mxu0 %v814
    %914 = vmatpush.msra.mxu0 %v808
    %915 = vmatpush.msra.mxu0 %v802
    %916 = vmatpush.msra.mxu0 %v796
    %917 = vmatpush.msra.mxu0 %v790
    %918 = vmatpush.msra.mxu0 %v784
    %919 = vmatpush.msra.mxu0 %v778
    %920 = vmatpush.msra.mxu0 %v772
    %921 = vmatpush.msra.mxu0 %v766
    %922 = vmatpush.msra.mxu0 %v760
    %923 = vmatpush.msra.mxu0 %v754
    %924 = vmatpush.msra.mxu0 %v748
    %925 = vmatpush.msra.mxu0 %v742
    %926 = vmatpush.msra.mxu0 %v736
    %927 = vmatpush.msra.mxu0 %v730
    %928 = vmatpush.msra.mxu0 %v724
    %929 = vmatmul.f32.gmra.mxu0 %v700
    %v930 = vpop.f32.mrf.mxu0
    %v931 = vadd.f32 %v834, %v930
    %932 = vmatmul.f32.gmra.mxu0 %v701
    %v933 = vpop.f32.mrf.mxu0
    %v934 = vadd.f32 %v834, %v933
    %935 = vmatmul.f32.gmra.mxu0 %v702
    %v936 = vpop.f32.mrf.mxu0
    %v937 = vadd.f32 %v834, %v936
    %938 = vmatmul.f32.gmra.mxu0 %v703
    %v939 = vpop.f32.mrf.mxu0
    %v940 = vadd.f32 %v834, %v939
    %941 = vmatmul.f32.gmra.mxu0 %v704
    %v942 = vpop.f32.mrf.mxu0
    %v943 = vadd.f32 %v834, %v942
    %944 = vmatmul.f32.gmra.mxu0 %v705
    %v945 = vpop.f32.mrf.mxu0
    %v946 = vadd.f32 %v834, %v945
    %947 = vmatmul.f32.gmra.mxu0 %v706
    %v948 = vpop.f32.mrf.mxu0
    %v949 = vadd.f32 %v834, %v948
    %950 = vmatmul.f32.gmra.mxu0 %v707
    %v951 = vpop.f32.mrf.mxu0
    %v952 = vadd.f32 %v834, %v951
    %953 = vmatmul.f32.gmra.mxu0 %v708
    %v954 = vpop.f32.mrf.mxu0
    %v955 = vadd.f32 %v834, %v954
    %956 = vmatmul.f32.gmra.mxu0 %v709
    %v957 = vpop.f32.mrf.mxu0
    %v958 = vadd.f32 %v834, %v957
    %959 = vmatmul.f32.gmra.mxu0 %v710
    %v960 = vpop.f32.mrf.mxu0
    %v961 = vadd.f32 %v834, %v960
    %962 = vmatmul.f32.gmra.mxu0 %v711
    %v963 = vpop.f32.mrf.mxu0
    %v964 = vadd.f32 %v834, %v963
    %965 = vmatmul.f32.gmra.mxu0 %v712
    %v966 = vpop.f32.mrf.mxu0
    %v967 = vadd.f32 %v834, %v966
    %968 = vmatmul.f32.gmra.mxu0 %v713
    %v969 = vpop.f32.mrf.mxu0
    %v970 = vadd.f32 %v834, %v969
    %971 = vmatmul.f32.gmra.mxu0 %v714
    %v972 = vpop.f32.mrf.mxu0
    %v973 = vadd.f32 %v834, %v972
    %974 = vmatmul.f32.gmra.mxu0 %v715
    %v975 = vpop.f32.mrf.mxu0
    %v976 = vadd.f32 %v834, %v975
    %977 = vmatmul.f32.gmra.mxu0 %v716
    %v978 = vpop.f32.mrf.mxu0
    %v979 = vadd.f32 %v834, %v978
    %980 = vmatmul.f32.gmra.mxu0 %v717
    %v981 = vpop.f32.mrf.mxu0
    %v982 = vadd.f32 %v834, %v981
    %983 = vmatmul.f32.gmra.mxu0 %v718
    %v984 = vpop.f32.mrf.mxu0
    %v985 = vadd.f32 %v834, %v984
    %986 = vmatmul.f32.gmra.mxu0 %v719
    %v987 = vpop.f32.mrf.mxu0
    %v988 = vadd.f32 %v834, %v987
    %989 = vmatmul.f32.gmra.mxu0 %v720
    %v990 = vpop.f32.mrf.mxu0
    %v991 = vadd.f32 %v834, %v990
    %992 = vmatmul.f32.gmra.mxu0 %v721
    %v993 = vpop.f32.mrf.mxu0
    %v994 = vadd.f32 %v834, %v993
    %995 = vmatmul.f32.gmra.mxu0 %v722
    %v996 = vpop.f32.mrf.mxu0
    %v997 = vadd.f32 %v834, %v996
    %998 = vmatmul.f32.gmra.mxu0 %v723
    %v999 = vpop.f32.mrf.mxu0
    %v1000 = vadd.f32 %v834, %v999
    %1001 = vdwg.mxu0
    %1002 = vmatpush.msra.mxu0 0.0
    %1003 = vmatpush.msra.mxu0 0.0
    %1004 = vmatpush.msra.mxu0 0.0
    %1005 = vmatpush.msra.mxu0 0.0
    %1006 = vmatpush.msra.mxu0 0.0
    %1007 = vmatpush.msra.mxu0 0.0
    %1008 = vmatpush.msra.mxu0 0.0
    %1009 = vmatpush.msra.mxu0 0.0
    %1010 = vmatpush.msra.mxu0 0.0
    %1011 = vmatpush.msra.mxu0 0.0
    %1012 = vmatpush.msra.mxu0 0.0
    %1013 = vmatpush.msra.mxu0 0.0
    %1014 = vmatpush.msra.mxu0 0.0
    %1015 = vmatpush.msra.mxu0 0.0
    %1016 = vmatpush.msra.mxu0 %v896
    %1017 = vmatpush.msra.mxu0 %v820
    %1018 = vmatmul.f32.gmra.mxu0 %v847
    %v1019 = vpop.f32.mrf.mxu0
    %v1020 = vadd.f32 %v931, %v1019
    %1021 = vmatmul.f32.gmra.mxu0 %v849
    %v1022 = vpop.f32.mrf.mxu0
    %v1023 = vadd.f32 %v934, %v1022
    %1024 = vmatmul.f32.gmra.mxu0 %v851
    %v1025 = vpop.f32.mrf.mxu0
    %v1026 = vadd.f32 %v937, %v1025
    %1027 = vmatmul.f32.gmra.mxu0 %v853
    %v1028 = vpop.f32.mrf.mxu0
    %v1029 = vadd.f32 %v940, %v1028
    %1030 = vmatmul.f32.gmra.mxu0 %v855
    %v1031 = vpop.f32.mrf.mxu0
    %v1032 = vadd.f32 %v943, %v1031
    %1033 = vmatmul.f32.gmra.mxu0 %v857
    %v1034 = vpop.f32.mrf.mxu0
    %v1035 = vadd.f32 %v946, %v1034
    %1036 = vmatmul.f32.gmra.mxu0 %v859
    %v1037 = vpop.f32.mrf.mxu0
    %v1038 = vadd.f32 %v949, %v1037
    %1039 = vmatmul.f32.gmra.mxu0 %v861
    %v1040 = vpop.f32.mrf.mxu0
    %v1041 = vadd.f32 %v952, %v1040
    %1042 = vmatmul.f32.gmra.mxu0 %v863
    %v1043 = vpop.f32.mrf.mxu0
    %v1044 = vadd.f32 %v955, %v1043
    %1045 = vmatmul.f32.gmra.mxu0 %v865
    %v1046 = vpop.f32.mrf.mxu0
    %v1047 = vadd.f32 %v958, %v1046
    %1048 = vmatmul.f32.gmra.mxu0 %v867
    %v1049 = vpop.f32.mrf.mxu0
    %v1050 = vadd.f32 %v961, %v1049
    %1051 = vmatmul.f32.gmra.mxu0 %v869
    %v1052 = vpop.f32.mrf.mxu0
    %v1053 = vadd.f32 %v964, %v1052
    %1054 = vmatmul.f32.gmra.mxu0 %v871
    %v1055 = vpop.f32.mrf.mxu0
    %v1056 = vadd.f32 %v967, %v1055
    %1057 = vmatmul.f32.gmra.mxu0 %v873
    %v1058 = vpop.f32.mrf.mxu0
    %v1059 = vadd.f32 %v970, %v1058
    %1060 = vmatmul.f32.gmra.mxu0 %v875
    %v1061 = vpop.f32.mrf.mxu0
    %v1062 = vadd.f32 %v973, %v1061
    %1063 = vmatmul.f32.gmra.mxu0 %v877
    %v1064 = vpop.f32.mrf.mxu0
    %v1065 = vadd.f32 %v976, %v1064
    %1066 = vmatmul.f32.gmra.mxu0 %v879
    %v1067 = vpop.f32.mrf.mxu0
    %v1068 = vadd.f32 %v979, %v1067
    %1069 = vmatmul.f32.gmra.mxu0 %v881
    %v1070 = vpop.f32.mrf.mxu0
    %v1071 = vadd.f32 %v982, %v1070
    %1072 = vmatmul.f32.gmra.mxu0 %v883
    %v1073 = vpop.f32.mrf.mxu0
    %v1074 = vadd.f32 %v985, %v1073
    %1075 = vmatmul.f32.gmra.mxu0 %v885
    %v1076 = vpop.f32.mrf.mxu0
    %v1077 = vadd.f32 %v988, %v1076
    %1078 = vmatmul.f32.gmra.mxu0 %v887
    %v1079 = vpop.f32.mrf.mxu0
    %v1080 = vadd.f32 %v991, %v1079
    %1081 = vmatmul.f32.gmra.mxu0 %v889
    %v1082 = vpop.f32.mrf.mxu0
    %v1083 = vadd.f32 %v994, %v1082
    %1084 = vmatmul.f32.gmra.mxu0 %v891
    %v1085 = vpop.f32.mrf.mxu0
    %v1086 = vadd.f32 %v997, %v1085
    %1087 = vmatmul.f32.gmra.mxu0 %v893
    %v1088 = vpop.f32.mrf.mxu0
    %v1089 = vadd.f32 %v1000, %v1088
    %1090 = vdwg.mxu0
    %1091 = vmatpush.msra.mxu0 %v815
    %1092 = vmatpush.msra.mxu0 %v809
    %1093 = vmatpush.msra.mxu0 %v803
    %1094 = vmatpush.msra.mxu0 %v797
    %1095 = vmatpush.msra.mxu0 %v791
    %1096 = vmatpush.msra.mxu0 %v785
    %1097 = vmatpush.msra.mxu0 %v779
    %1098 = vmatpush.msra.mxu0 %v773
    %1099 = vmatpush.msra.mxu0 %v767
    %1100 = vmatpush.msra.mxu0 %v761
    %1101 = vmatpush.msra.mxu0 %v755
    %1102 = vmatpush.msra.mxu0 %v749
    %1103 = vmatpush.msra.mxu0 %v743
    %1104 = vmatpush.msra.mxu0 %v737
    %1105 = vmatpush.msra.mxu0 %v731
    %1106 = vmatpush.msra.mxu0 %v725
    %1107 = vmatmul.f32.gmra.mxu0 %v700
    %v1108 = vpop.f32.mrf.mxu0
    %v1109 = vadd.f32 %v835, %v1108
    %1110 = vmatmul.f32.gmra.mxu0 %v701
    %v1111 = vpop.f32.mrf.mxu0
    %v1112 = vadd.f32 %v835, %v1111
    %1113 = vmatmul.f32.gmra.mxu0 %v702
    %v1114 = vpop.f32.mrf.mxu0
    %v1115 = vadd.f32 %v835, %v1114
    %1116 = vmatmul.f32.gmra.mxu0 %v703
    %v1117 = vpop.f32.mrf.mxu0
    %v1118 = vadd.f32 %v835, %v1117
    %1119 = vmatmul.f32.gmra.mxu0 %v704
    %v1120 = vpop.f32.mrf.mxu0
    %v1121 = vadd.f32 %v835, %v1120
    %1122 = vmatmul.f32.gmra.mxu0 %v705
    %v1123 = vpop.f32.mrf.mxu0
    %v1124 = vadd.f32 %v835, %v1123
    %1125 = vmatmul.f32.gmra.mxu0 %v706
    %v1126 = vpop.f32.mrf.mxu0
    %v1127 = vadd.f32 %v835, %v1126
    %1128 = vmatmul.f32.gmra.mxu0 %v707
    %v1129 = vpop.f32.mrf.mxu0
    %v1130 = vadd.f32 %v835, %v1129
    %1131 = vmatmul.f32.gmra.mxu0 %v708
    %v1132 = vpop.f32.mrf.mxu0
    %v1133 = vadd.f32 %v835, %v1132
    %1134 = vmatmul.f32.gmra.mxu0 %v709
    %v1135 = vpop.f32.mrf.mxu0
    %v1136 = vadd.f32 %v835, %v1135
    %1137 = vmatmul.f32.gmra.mxu0 %v710
    %v1138 = vpop.f32.mrf.mxu0
    %v1139 = vadd.f32 %v835, %v1138
    %1140 = vmatmul.f32.gmra.mxu0 %v711
    %v1141 = vpop.f32.mrf.mxu0
    %v1142 = vadd.f32 %v835, %v1141
    %1143 = vmatmul.f32.gmra.mxu0 %v712
    %v1144 = vpop.f32.mrf.mxu0
    %v1145 = vadd.f32 %v835, %v1144
    %1146 = vmatmul.f32.gmra.mxu0 %v713
    %v1147 = vpop.f32.mrf.mxu0
    %v1148 = vadd.f32 %v835, %v1147
    %1149 = vmatmul.f32.gmra.mxu0 %v714
    %v1150 = vpop.f32.mrf.mxu0
    %v1151 = vadd.f32 %v835, %v1150
    %1152 = vmatmul.f32.gmra.mxu0 %v715
    %v1153 = vpop.f32.mrf.mxu0
    %v1154 = vadd.f32 %v835, %v1153
    %1155 = vmatmul.f32.gmra.mxu0 %v716
    %v1156 = vpop.f32.mrf.mxu0
    %v1157 = vadd.f32 %v835, %v1156
    %1158 = vmatmul.f32.gmra.mxu0 %v717
    %v1159 = vpop.f32.mrf.mxu0
    %v1160 = vadd.f32 %v835, %v1159
    %1161 = vmatmul.f32.gmra.mxu0 %v718
    %v1162 = vpop.f32.mrf.mxu0
    %v1163 = vadd.f32 %v835, %v1162
    %1164 = vmatmul.f32.gmra.mxu0 %v719
    %v1165 = vpop.f32.mrf.mxu0
    %v1166 = vadd.f32 %v835, %v1165
    %1167 = vmatmul.f32.gmra.mxu0 %v720
    %v1168 = vpop.f32.mrf.mxu0
    %v1169 = vadd.f32 %v835, %v1168
    %1170 = vmatmul.f32.gmra.mxu0 %v721
    %v1171 = vpop.f32.mrf.mxu0
    %v1172 = vadd.f32 %v835, %v1171
    %1173 = vmatmul.f32.gmra.mxu0 %v722
    %v1174 = vpop.f32.mrf.mxu0
    %v1175 = vadd.f32 %v835, %v1174
    %1176 = vmatmul.f32.gmra.mxu0 %v723
    %v1177 = vpop.f32.mrf.mxu0
    %v1178 = vadd.f32 %v835, %v1177
    %1179 = vdwg.mxu0
    %1180 = vmatpush.msra.mxu0 0.0
    %1181 = vmatpush.msra.mxu0 0.0
    %1182 = vmatpush.msra.mxu0 0.0
    %1183 = vmatpush.msra.mxu0 0.0
    %1184 = vmatpush.msra.mxu0 0.0
    %1185 = vmatpush.msra.mxu0 0.0
    %1186 = vmatpush.msra.mxu0 0.0
    %1187 = vmatpush.msra.mxu0 0.0
    %1188 = vmatpush.msra.mxu0 0.0
    %1189 = vmatpush.msra.mxu0 0.0
    %1190 = vmatpush.msra.mxu0 0.0
    %1191 = vmatpush.msra.mxu0 0.0
    %1192 = vmatpush.msra.mxu0 0.0
    %1193 = vmatpush.msra.mxu0 0.0
    %1194 = vmatpush.msra.mxu0 %v899
    %1195 = vmatpush.msra.mxu0 %v821
    %1196 = vmatmul.f32.gmra.mxu0 %v847
    %v1197 = vpop.f32.mrf.mxu0
    %v1198 = vadd.f32 %v1109, %v1197
    %1199 = vmatmul.f32.gmra.mxu0 %v849
    %v1200 = vpop.f32.mrf.mxu0
    %v1201 = vadd.f32 %v1112, %v1200
    %1202 = vmatmul.f32.gmra.mxu0 %v851
    %v1203 = vpop.f32.mrf.mxu0
    %v1204 = vadd.f32 %v1115, %v1203
    %1205 = vmatmul.f32.gmra.mxu0 %v853
    %v1206 = vpop.f32.mrf.mxu0
    %v1207 = vadd.f32 %v1118, %v1206
    %1208 = vmatmul.f32.gmra.mxu0 %v855
    %v1209 = vpop.f32.mrf.mxu0
    %v1210 = vadd.f32 %v1121, %v1209
    %1211 = vmatmul.f32.gmra.mxu0 %v857
    %v1212 = vpop.f32.mrf.mxu0
    %v1213 = vadd.f32 %v1124, %v1212
    %1214 = vmatmul.f32.gmra.mxu0 %v859
    %v1215 = vpop.f32.mrf.mxu0
    %v1216 = vadd.f32 %v1127, %v1215
    %1217 = vmatmul.f32.gmra.mxu0 %v861
    %v1218 = vpop.f32.mrf.mxu0
    %v1219 = vadd.f32 %v1130, %v1218
    %1220 = vmatmul.f32.gmra.mxu0 %v863
    %v1221 = vpop.f32.mrf.mxu0
    %v1222 = vadd.f32 %v1133, %v1221
    %1223 = vmatmul.f32.gmra.mxu0 %v865
    %v1224 = vpop.f32.mrf.mxu0
    %v1225 = vadd.f32 %v1136, %v1224
    %1226 = vmatmul.f32.gmra.mxu0 %v867
    %v1227 = vpop.f32.mrf.mxu0
    %v1228 = vadd.f32 %v1139, %v1227
    %1229 = vmatmul.f32.gmra.mxu0 %v869
    %v1230 = vpop.f32.mrf.mxu0
    %v1231 = vadd.f32 %v1142, %v1230
    %1232 = vmatmul.f32.gmra.mxu0 %v871
    %v1233 = vpop.f32.mrf.mxu0
    %v1234 = vadd.f32 %v1145, %v1233
    %1235 = vmatmul.f32.gmra.mxu0 %v873
    %v1236 = vpop.f32.mrf.mxu0
    %v1237 = vadd.f32 %v1148, %v1236
    %1238 = vmatmul.f32.gmra.mxu0 %v875
    %v1239 = vpop.f32.mrf.mxu0
    %v1240 = vadd.f32 %v1151, %v1239
    %1241 = vmatmul.f32.gmra.mxu0 %v877
    %v1242 = vpop.f32.mrf.mxu0
    %v1243 = vadd.f32 %v1154, %v1242
    %1244 = vmatmul.f32.gmra.mxu0 %v879
    %v1245 = vpop.f32.mrf.mxu0
    %v1246 = vadd.f32 %v1157, %v1245
    %1247 = vmatmul.f32.gmra.mxu0 %v881
    %v1248 = vpop.f32.mrf.mxu0
    %v1249 = vadd.f32 %v1160, %v1248
    %1250 = vmatmul.f32.gmra.mxu0 %v883
    %v1251 = vpop.f32.mrf.mxu0
    %v1252 = vadd.f32 %v1163, %v1251
    %1253 = vmatmul.f32.gmra.mxu0 %v885
    %v1254 = vpop.f32.mrf.mxu0
    %v1255 = vadd.f32 %v1166, %v1254
    %1256 = vmatmul.f32.gmra.mxu0 %v887
    %v1257 = vpop.f32.mrf.mxu0
    %v1258 = vadd.f32 %v1169, %v1257
    %1259 = vmatmul.f32.gmra.mxu0 %v889
    %v1260 = vpop.f32.mrf.mxu0
    %v1261 = vadd.f32 %v1172, %v1260
    %1262 = vmatmul.f32.gmra.mxu0 %v891
    %v1263 = vpop.f32.mrf.mxu0
    %v1264 = vadd.f32 %v1175, %v1263
    %1265 = vmatmul.f32.gmra.mxu0 %v893
    %v1266 = vpop.f32.mrf.mxu0
    %v1267 = vadd.f32 %v1178, %v1266
    %1268 = vdwg.mxu0
    %1269 = vmatpush.msra.mxu0 %v816
    %1270 = vmatpush.msra.mxu0 %v810
    %1271 = vmatpush.msra.mxu0 %v804
    %1272 = vmatpush.msra.mxu0 %v798
    %1273 = vmatpush.msra.mxu0 %v792
    %1274 = vmatpush.msra.mxu0 %v786
    %1275 = vmatpush.msra.mxu0 %v780
    %1276 = vmatpush.msra.mxu0 %v774
    %1277 = vmatpush.msra.mxu0 %v768
    %1278 = vmatpush.msra.mxu0 %v762
    %1279 = vmatpush.msra.mxu0 %v756
    %1280 = vmatpush.msra.mxu0 %v750
    %1281 = vmatpush.msra.mxu0 %v744
    %1282 = vmatpush.msra.mxu0 %v738
    %1283 = vmatpush.msra.mxu0 %v732
    %1284 = vmatpush.msra.mxu0 %v726
    %1285 = vmatmul.f32.gmra.mxu0 %v700
    %v1286 = vpop.f32.mrf.mxu0
    %v1287 = vadd.f32 %v836, %v1286
    %1288 = vmatmul.f32.gmra.mxu0 %v701
    %v1289 = vpop.f32.mrf.mxu0
    %v1290 = vadd.f32 %v836, %v1289
    %1291 = vmatmul.f32.gmra.mxu0 %v702
    %v1292 = vpop.f32.mrf.mxu0
    %v1293 = vadd.f32 %v836, %v1292
    %1294 = vmatmul.f32.gmra.mxu0 %v703
    %v1295 = vpop.f32.mrf.mxu0
    %v1296 = vadd.f32 %v836, %v1295
    %1297 = vmatmul.f32.gmra.mxu0 %v704
    %v1298 = vpop.f32.mrf.mxu0
    %v1299 = vadd.f32 %v836, %v1298
    %1300 = vmatmul.f32.gmra.mxu0 %v705
    %v1301 = vpop.f32.mrf.mxu0
    %v1302 = vadd.f32 %v836, %v1301
    %1303 = vmatmul.f32.gmra.mxu0 %v706
    %v1304 = vpop.f32.mrf.mxu0
    %v1305 = vadd.f32 %v836, %v1304
    %1306 = vmatmul.f32.gmra.mxu0 %v707
    %v1307 = vpop.f32.mrf.mxu0
    %v1308 = vadd.f32 %v836, %v1307
    %1309 = vmatmul.f32.gmra.mxu0 %v708
    %v1310 = vpop.f32.mrf.mxu0
    %v1311 = vadd.f32 %v836, %v1310
    %1312 = vmatmul.f32.gmra.mxu0 %v709
    %v1313 = vpop.f32.mrf.mxu0
    %v1314 = vadd.f32 %v836, %v1313
    %1315 = vmatmul.f32.gmra.mxu0 %v710
    %v1316 = vpop.f32.mrf.mxu0
    %v1317 = vadd.f32 %v836, %v1316
    %1318 = vmatmul.f32.gmra.mxu0 %v711
    %v1319 = vpop.f32.mrf.mxu0
    %v1320 = vadd.f32 %v836, %v1319
    %1321 = vmatmul.f32.gmra.mxu0 %v712
    %v1322 = vpop.f32.mrf.mxu0
    %v1323 = vadd.f32 %v836, %v1322
    %1324 = vmatmul.f32.gmra.mxu0 %v713
    %v1325 = vpop.f32.mrf.mxu0
    %v1326 = vadd.f32 %v836, %v1325
    %1327 = vmatmul.f32.gmra.mxu0 %v714
    %v1328 = vpop.f32.mrf.mxu0
    %v1329 = vadd.f32 %v836, %v1328
    %1330 = vmatmul.f32.gmra.mxu0 %v715
    %v1331 = vpop.f32.mrf.mxu0
    %v1332 = vadd.f32 %v836, %v1331
    %1333 = vmatmul.f32.gmra.mxu0 %v716
    %v1334 = vpop.f32.mrf.mxu0
    %v1335 = vadd.f32 %v836, %v1334
    %1336 = vmatmul.f32.gmra.mxu0 %v717
    %v1337 = vpop.f32.mrf.mxu0
    %v1338 = vadd.f32 %v836, %v1337
    %1339 = vmatmul.f32.gmra.mxu0 %v718
    %v1340 = vpop.f32.mrf.mxu0
    %v1341 = vadd.f32 %v836, %v1340
    %1342 = vmatmul.f32.gmra.mxu0 %v719
    %v1343 = vpop.f32.mrf.mxu0
    %v1344 = vadd.f32 %v836, %v1343
    %1345 = vmatmul.f32.gmra.mxu0 %v720
    %v1346 = vpop.f32.mrf.mxu0
    %v1347 = vadd.f32 %v836, %v1346
    %1348 = vmatmul.f32.gmra.mxu0 %v721
    %v1349 = vpop.f32.mrf.mxu0
    %v1350 = vadd.f32 %v836, %v1349
    %1351 = vmatmul.f32.gmra.mxu0 %v722
    %v1352 = vpop.f32.mrf.mxu0
    %v1353 = vadd.f32 %v836, %v1352
    %1354 = vmatmul.f32.gmra.mxu0 %v723
    %v1355 = vpop.f32.mrf.mxu0
    %v1356 = vadd.f32 %v836, %v1355
    %1357 = vdwg.mxu0
    %1358 = vmatpush.msra.mxu0 0.0
    %1359 = vmatpush.msra.mxu0 0.0
    %1360 = vmatpush.msra.mxu0 0.0
    %1361 = vmatpush.msra.mxu0 0.0
    %1362 = vmatpush.msra.mxu0 0.0
    %1363 = vmatpush.msra.mxu0 0.0
    %1364 = vmatpush.msra.mxu0 0.0
    %1365 = vmatpush.msra.mxu0 0.0
    %1366 = vmatpush.msra.mxu0 0.0
    %1367 = vmatpush.msra.mxu0 0.0
    %1368 = vmatpush.msra.mxu0 0.0
    %1369 = vmatpush.msra.mxu0 0.0
    %1370 = vmatpush.msra.mxu0 0.0
    %1371 = vmatpush.msra.mxu0 0.0
    %1372 = vmatpush.msra.mxu0 %v902
    %1373 = vmatpush.msra.mxu0 %v822
    %1374 = vmatmul.f32.gmra.mxu0 %v847
    %v1375 = vpop.f32.mrf.mxu0
    %v1376 = vadd.f32 %v1287, %v1375
    %1377 = vmatmul.f32.gmra.mxu0 %v849
    %v1378 = vpop.f32.mrf.mxu0
    %v1379 = vadd.f32 %v1290, %v1378
    %1380 = vmatmul.f32.gmra.mxu0 %v851
    %v1381 = vpop.f32.mrf.mxu0
    %v1382 = vadd.f32 %v1293, %v1381
    %1383 = vmatmul.f32.gmra.mxu0 %v853
    %v1384 = vpop.f32.mrf.mxu0
    %v1385 = vadd.f32 %v1296, %v1384
    %1386 = vmatmul.f32.gmra.mxu0 %v855
    %v1387 = vpop.f32.mrf.mxu0
    %v1388 = vadd.f32 %v1299, %v1387
    %1389 = vmatmul.f32.gmra.mxu0 %v857
    %v1390 = vpop.f32.mrf.mxu0
    %v1391 = vadd.f32 %v1302, %v1390
    %1392 = vmatmul.f32.gmra.mxu0 %v859
    %v1393 = vpop.f32.mrf.mxu0
    %v1394 = vadd.f32 %v1305, %v1393
    %1395 = vmatmul.f32.gmra.mxu0 %v861
    %v1396 = vpop.f32.mrf.mxu0
    %v1397 = vadd.f32 %v1308, %v1396
    %1398 = vmatmul.f32.gmra.mxu0 %v863
    %v1399 = vpop.f32.mrf.mxu0
    %v1400 = vadd.f32 %v1311, %v1399
    %1401 = vmatmul.f32.gmra.mxu0 %v865
    %v1402 = vpop.f32.mrf.mxu0
    %v1403 = vadd.f32 %v1314, %v1402
    %1404 = vmatmul.f32.gmra.mxu0 %v867
    %v1405 = vpop.f32.mrf.mxu0
    %v1406 = vadd.f32 %v1317, %v1405
    %1407 = vmatmul.f32.gmra.mxu0 %v869
    %v1408 = vpop.f32.mrf.mxu0
    %v1409 = vadd.f32 %v1320, %v1408
    %1410 = vmatmul.f32.gmra.mxu0 %v871
    %v1411 = vpop.f32.mrf.mxu0
    %v1412 = vadd.f32 %v1323, %v1411
    %1413 = vmatmul.f32.gmra.mxu0 %v873
    %v1414 = vpop.f32.mrf.mxu0
    %v1415 = vadd.f32 %v1326, %v1414
    %1416 = vmatmul.f32.gmra.mxu0 %v875
    %v1417 = vpop.f32.mrf.mxu0
    %v1418 = vadd.f32 %v1329, %v1417
    %1419 = vmatmul.f32.gmra.mxu0 %v877
    %v1420 = vpop.f32.mrf.mxu0
    %v1421 = vadd.f32 %v1332, %v1420
    %1422 = vmatmul.f32.gmra.mxu0 %v879
    %v1423 = vpop.f32.mrf.mxu0
    %v1424 = vadd.f32 %v1335, %v1423
    %1425 = vmatmul.f32.gmra.mxu0 %v881
    %v1426 = vpop.f32.mrf.mxu0
    %v1427 = vadd.f32 %v1338, %v1426
    %1428 = vmatmul.f32.gmra.mxu0 %v883
    %v1429 = vpop.f32.mrf.mxu0
    %v1430 = vadd.f32 %v1341, %v1429
    %1431 = vmatmul.f32.gmra.mxu0 %v885
    %v1432 = vpop.f32.mrf.mxu0
    %v1433 = vadd.f32 %v1344, %v1432
    %1434 = vmatmul.f32.gmra.mxu0 %v887
    %v1435 = vpop.f32.mrf.mxu0
    %v1436 = vadd.f32 %v1347, %v1435
    %1437 = vmatmul.f32.gmra.mxu0 %v889
    %v1438 = vpop.f32.mrf.mxu0
    %v1439 = vadd.f32 %v1350, %v1438
    %1440 = vmatmul.f32.gmra.mxu0 %v891
    %v1441 = vpop.f32.mrf.mxu0
    %v1442 = vadd.f32 %v1353, %v1441
    %1443 = vmatmul.f32.gmra.mxu0 %v893
    %v1444 = vpop.f32.mrf.mxu0
    %v1445 = vadd.f32 %v1356, %v1444
    %1446 = vdwg.mxu0
    %1447 = vmatpush.msra.mxu0 %v817
    %1448 = vmatpush.msra.mxu0 %v811
    %1449 = vmatpush.msra.mxu0 %v805
    %1450 = vmatpush.msra.mxu0 %v799
    %1451 = vmatpush.msra.mxu0 %v793
    %1452 = vmatpush.msra.mxu0 %v787
    %1453 = vmatpush.msra.mxu0 %v781
    %1454 = vmatpush.msra.mxu0 %v775
    %1455 = vmatpush.msra.mxu0 %v769
    %1456 = vmatpush.msra.mxu0 %v763
    %1457 = vmatpush.msra.mxu0 %v757
    %1458 = vmatpush.msra.mxu0 %v751
    %1459 = vmatpush.msra.mxu0 %v745
    %1460 = vmatpush.msra.mxu0 %v739
    %1461 = vmatpush.msra.mxu0 %v733
    %1462 = vmatpush.msra.mxu0 %v727
    %1463 = vmatmul.f32.gmra.mxu0 %v700
    %v1464 = vpop.f32.mrf.mxu0
    %v1465 = vadd.f32 %v837, %v1464
    %1466 = vmatmul.f32.gmra.mxu0 %v701
    %v1467 = vpop.f32.mrf.mxu0
    %v1468 = vadd.f32 %v837, %v1467
    %1469 = vmatmul.f32.gmra.mxu0 %v702
    %v1470 = vpop.f32.mrf.mxu0
    %v1471 = vadd.f32 %v837, %v1470
    %1472 = vmatmul.f32.gmra.mxu0 %v703
    %v1473 = vpop.f32.mrf.mxu0
    %v1474 = vadd.f32 %v837, %v1473
    %1475 = vmatmul.f32.gmra.mxu0 %v704
    %v1476 = vpop.f32.mrf.mxu0
    %v1477 = vadd.f32 %v837, %v1476
    %1478 = vmatmul.f32.gmra.mxu0 %v705
    %v1479 = vpop.f32.mrf.mxu0
    %v1480 = vadd.f32 %v837, %v1479
    %1481 = vmatmul.f32.gmra.mxu0 %v706
    %v1482 = vpop.f32.mrf.mxu0
    %v1483 = vadd.f32 %v837, %v1482
    %1484 = vmatmul.f32.gmra.mxu0 %v707
    %v1485 = vpop.f32.mrf.mxu0
    %v1486 = vadd.f32 %v837, %v1485
    %1487 = vmatmul.f32.gmra.mxu0 %v708
    %v1488 = vpop.f32.mrf.mxu0
    %v1489 = vadd.f32 %v837, %v1488
    %1490 = vmatmul.f32.gmra.mxu0 %v709
    %v1491 = vpop.f32.mrf.mxu0
    %v1492 = vadd.f32 %v837, %v1491
    %1493 = vmatmul.f32.gmra.mxu0 %v710
    %v1494 = vpop.f32.mrf.mxu0
    %v1495 = vadd.f32 %v837, %v1494
    %1496 = vmatmul.f32.gmra.mxu0 %v711
    %v1497 = vpop.f32.mrf.mxu0
    %v1498 = vadd.f32 %v837, %v1497
    %1499 = vmatmul.f32.gmra.mxu0 %v712
    %v1500 = vpop.f32.mrf.mxu0
    %v1501 = vadd.f32 %v837, %v1500
    %1502 = vmatmul.f32.gmra.mxu0 %v713
    %v1503 = vpop.f32.mrf.mxu0
    %v1504 = vadd.f32 %v837, %v1503
    %1505 = vmatmul.f32.gmra.mxu0 %v714
    %v1506 = vpop.f32.mrf.mxu0
    %v1507 = vadd.f32 %v837, %v1506
    %1508 = vmatmul.f32.gmra.mxu0 %v715
    %v1509 = vpop.f32.mrf.mxu0
    %v1510 = vadd.f32 %v837, %v1509
    %1511 = vmatmul.f32.gmra.mxu0 %v716
    %v1512 = vpop.f32.mrf.mxu0
    %v1513 = vadd.f32 %v837, %v1512
    %1514 = vmatmul.f32.gmra.mxu0 %v717
    %v1515 = vpop.f32.mrf.mxu0
    %v1516 = vadd.f32 %v837, %v1515
    %1517 = vmatmul.f32.gmra.mxu0 %v718
    %v1518 = vpop.f32.mrf.mxu0
    %v1519 = vadd.f32 %v837, %v1518
    %1520 = vmatmul.f32.gmra.mxu0 %v719
    %v1521 = vpop.f32.mrf.mxu0
    %v1522 = vadd.f32 %v837, %v1521
    %1523 = vmatmul.f32.gmra.mxu0 %v720
    %v1524 = vpop.f32.mrf.mxu0
    %v1525 = vadd.f32 %v837, %v1524
    %1526 = vmatmul.f32.gmra.mxu0 %v721
    %v1527 = vpop.f32.mrf.mxu0
    %v1528 = vadd.f32 %v837, %v1527
    %1529 = vmatmul.f32.gmra.mxu0 %v722
    %v1530 = vpop.f32.mrf.mxu0
    %v1531 = vadd.f32 %v837, %v1530
    %1532 = vmatmul.f32.gmra.mxu0 %v723
    %v1533 = vpop.f32.mrf.mxu0
    %v1534 = vadd.f32 %v837, %v1533
    %1535 = vdwg.mxu0
    %1536 = vmatpush.msra.mxu0 0.0
    %1537 = vmatpush.msra.mxu0 0.0
    %1538 = vmatpush.msra.mxu0 0.0
    %1539 = vmatpush.msra.mxu0 0.0
    %1540 = vmatpush.msra.mxu0 0.0
    %1541 = vmatpush.msra.mxu0 0.0
    %1542 = vmatpush.msra.mxu0 0.0
    %1543 = vmatpush.msra.mxu0 0.0
    %1544 = vmatpush.msra.mxu0 0.0
    %1545 = vmatpush.msra.mxu0 0.0
    %1546 = vmatpush.msra.mxu0 0.0
    %1547 = vmatpush.msra.mxu0 0.0
    %1548 = vmatpush.msra.mxu0 0.0
    %1549 = vmatpush.msra.mxu0 0.0
    %1550 = vmatpush.msra.mxu0 %v905
    %1551 = vmatpush.msra.mxu0 %v823
    %1552 = vmatmul.f32.gmra.mxu0 %v847
    %v1553 = vpop.f32.mrf.mxu0
    %v1554 = vadd.f32 %v1465, %v1553
    %1555 = vmatmul.f32.gmra.mxu0 %v849
    %v1556 = vpop.f32.mrf.mxu0
    %v1557 = vadd.f32 %v1468, %v1556
    %1558 = vmatmul.f32.gmra.mxu0 %v851
    %v1559 = vpop.f32.mrf.mxu0
    %v1560 = vadd.f32 %v1471, %v1559
    %1561 = vmatmul.f32.gmra.mxu0 %v853
    %v1562 = vpop.f32.mrf.mxu0
    %v1563 = vadd.f32 %v1474, %v1562
    %1564 = vmatmul.f32.gmra.mxu0 %v855
    %v1565 = vpop.f32.mrf.mxu0
    %v1566 = vadd.f32 %v1477, %v1565
    %1567 = vmatmul.f32.gmra.mxu0 %v857
    %v1568 = vpop.f32.mrf.mxu0
    %v1569 = vadd.f32 %v1480, %v1568
    %1570 = vmatmul.f32.gmra.mxu0 %v859
    %v1571 = vpop.f32.mrf.mxu0
    %v1572 = vadd.f32 %v1483, %v1571
    %1573 = vmatmul.f32.gmra.mxu0 %v861
    %v1574 = vpop.f32.mrf.mxu0
    %v1575 = vadd.f32 %v1486, %v1574
    %1576 = vmatmul.f32.gmra.mxu0 %v863
    %v1577 = vpop.f32.mrf.mxu0
    %v1578 = vadd.f32 %v1489, %v1577
    %1579 = vmatmul.f32.gmra.mxu0 %v865
    %v1580 = vpop.f32.mrf.mxu0
    %v1581 = vadd.f32 %v1492, %v1580
    %1582 = vmatmul.f32.gmra.mxu0 %v867
    %v1583 = vpop.f32.mrf.mxu0
    %v1584 = vadd.f32 %v1495, %v1583
    %1585 = vmatmul.f32.gmra.mxu0 %v869
    %v1586 = vpop.f32.mrf.mxu0
    %v1587 = vadd.f32 %v1498, %v1586
    %1588 = vmatmul.f32.gmra.mxu0 %v871
    %v1589 = vpop.f32.mrf.mxu0
    %v1590 = vadd.f32 %v1501, %v1589
    %1591 = vmatmul.f32.gmra.mxu0 %v873
    %v1592 = vpop.f32.mrf.mxu0
    %v1593 = vadd.f32 %v1504, %v1592
    %1594 = vmatmul.f32.gmra.mxu0 %v875
    %v1595 = vpop.f32.mrf.mxu0
    %v1596 = vadd.f32 %v1507, %v1595
    %1597 = vmatmul.f32.gmra.mxu0 %v877
    %v1598 = vpop.f32.mrf.mxu0
    %v1599 = vadd.f32 %v1510, %v1598
    %1600 = vmatmul.f32.gmra.mxu0 %v879
    %v1601 = vpop.f32.mrf.mxu0
    %v1602 = vadd.f32 %v1513, %v1601
    %1603 = vmatmul.f32.gmra.mxu0 %v881
    %v1604 = vpop.f32.mrf.mxu0
    %v1605 = vadd.f32 %v1516, %v1604
    %1606 = vmatmul.f32.gmra.mxu0 %v883
    %v1607 = vpop.f32.mrf.mxu0
    %v1608 = vadd.f32 %v1519, %v1607
    %1609 = vmatmul.f32.gmra.mxu0 %v885
    %v1610 = vpop.f32.mrf.mxu0
    %v1611 = vadd.f32 %v1522, %v1610
    %1612 = vmatmul.f32.gmra.mxu0 %v887
    %v1613 = vpop.f32.mrf.mxu0
    %v1614 = vadd.f32 %v1525, %v1613
    %1615 = vmatmul.f32.gmra.mxu0 %v889
    %v1616 = vpop.f32.mrf.mxu0
    %v1617 = vadd.f32 %v1528, %v1616
    %1618 = vmatmul.f32.gmra.mxu0 %v891
    %v1619 = vpop.f32.mrf.mxu0
    %v1620 = vadd.f32 %v1531, %v1619
    %1621 = vmatmul.f32.gmra.mxu0 %v893
    %v1622 = vpop.f32.mrf.mxu0
    %v1623 = vadd.f32 %v1534, %v1622
    %1624 = vdwg.mxu0
    %1625 = vmatpush.msra.mxu0 %v818
    %1626 = vmatpush.msra.mxu0 %v812
    %1627 = vmatpush.msra.mxu0 %v806
    %1628 = vmatpush.msra.mxu0 %v800
    %1629 = vmatpush.msra.mxu0 %v794
    %1630 = vmatpush.msra.mxu0 %v788
    %1631 = vmatpush.msra.mxu0 %v782
    %1632 = vmatpush.msra.mxu0 %v776
    %1633 = vmatpush.msra.mxu0 %v770
    %1634 = vmatpush.msra.mxu0 %v764
    %1635 = vmatpush.msra.mxu0 %v758
    %1636 = vmatpush.msra.mxu0 %v752
    %1637 = vmatpush.msra.mxu0 %v746
    %1638 = vmatpush.msra.mxu0 %v740
    %1639 = vmatpush.msra.mxu0 %v734
    %1640 = vmatpush.msra.mxu0 %v728
    %1641 = vmatmul.f32.gmra.mxu0 %v700
    %v1642 = vpop.f32.mrf.mxu0
    %v1643 = vadd.f32 %v838, %v1642
    %1644 = vmatmul.f32.gmra.mxu0 %v701
    %v1645 = vpop.f32.mrf.mxu0
    %v1646 = vadd.f32 %v838, %v1645
    %1647 = vmatmul.f32.gmra.mxu0 %v702
    %v1648 = vpop.f32.mrf.mxu0
    %v1649 = vadd.f32 %v838, %v1648
    %1650 = vmatmul.f32.gmra.mxu0 %v703
    %v1651 = vpop.f32.mrf.mxu0
    %v1652 = vadd.f32 %v838, %v1651
    %1653 = vmatmul.f32.gmra.mxu0 %v704
    %v1654 = vpop.f32.mrf.mxu0
    %v1655 = vadd.f32 %v838, %v1654
    %1656 = vmatmul.f32.gmra.mxu0 %v705
    %v1657 = vpop.f32.mrf.mxu0
    %v1658 = vadd.f32 %v838, %v1657
    %1659 = vmatmul.f32.gmra.mxu0 %v706
    %v1660 = vpop.f32.mrf.mxu0
    %v1661 = vadd.f32 %v838, %v1660
    %1662 = vmatmul.f32.gmra.mxu0 %v707
    %v1663 = vpop.f32.mrf.mxu0
    %v1664 = vadd.f32 %v838, %v1663
    %1665 = vmatmul.f32.gmra.mxu0 %v708
    %v1666 = vpop.f32.mrf.mxu0
    %v1667 = vadd.f32 %v838, %v1666
    %1668 = vmatmul.f32.gmra.mxu0 %v709
    %v1669 = vpop.f32.mrf.mxu0
    %v1670 = vadd.f32 %v838, %v1669
    %1671 = vmatmul.f32.gmra.mxu0 %v710
    %v1672 = vpop.f32.mrf.mxu0
    %v1673 = vadd.f32 %v838, %v1672
    %1674 = vmatmul.f32.gmra.mxu0 %v711
    %v1675 = vpop.f32.mrf.mxu0
    %v1676 = vadd.f32 %v838, %v1675
    %1677 = vmatmul.f32.gmra.mxu0 %v712
    %v1678 = vpop.f32.mrf.mxu0
    %v1679 = vadd.f32 %v838, %v1678
    %1680 = vmatmul.f32.gmra.mxu0 %v713
    %v1681 = vpop.f32.mrf.mxu0
    %v1682 = vadd.f32 %v838, %v1681
    %1683 = vmatmul.f32.gmra.mxu0 %v714
    %v1684 = vpop.f32.mrf.mxu0
    %v1685 = vadd.f32 %v838, %v1684
    %1686 = vmatmul.f32.gmra.mxu0 %v715
    %v1687 = vpop.f32.mrf.mxu0
    %v1688 = vadd.f32 %v838, %v1687
    %1689 = vmatmul.f32.gmra.mxu0 %v716
    %v1690 = vpop.f32.mrf.mxu0
    %v1691 = vadd.f32 %v838, %v1690
    %1692 = vmatmul.f32.gmra.mxu0 %v717
    %v1693 = vpop.f32.mrf.mxu0
    %v1694 = vadd.f32 %v838, %v1693
    %1695 = vmatmul.f32.gmra.mxu0 %v718
    %v1696 = vpop.f32.mrf.mxu0
    %v1697 = vadd.f32 %v838, %v1696
    %1698 = vmatmul.f32.gmra.mxu0 %v719
    %v1699 = vpop.f32.mrf.mxu0
    %v1700 = vadd.f32 %v838, %v1699
    %1701 = vmatmul.f32.gmra.mxu0 %v720
    %v1702 = vpop.f32.mrf.mxu0
    %v1703 = vadd.f32 %v838, %v1702
    %1704 = vmatmul.f32.gmra.mxu0 %v721
    %v1705 = vpop.f32.mrf.mxu0
    %v1706 = vadd.f32 %v838, %v1705
    %1707 = vmatmul.f32.gmra.mxu0 %v722
    %v1708 = vpop.f32.mrf.mxu0
    %v1709 = vadd.f32 %v838, %v1708
    %1710 = vmatmul.f32.gmra.mxu0 %v723
    %v1711 = vpop.f32.mrf.mxu0
    %v1712 = vadd.f32 %v838, %v1711
    %1713 = vdwg.mxu0
    %1714 = vmatpush.msra.mxu0 0.0
    %1715 = vmatpush.msra.mxu0 0.0
    %1716 = vmatpush.msra.mxu0 0.0
    %1717 = vmatpush.msra.mxu0 0.0
    %1718 = vmatpush.msra.mxu0 0.0
    %1719 = vmatpush.msra.mxu0 0.0
    %1720 = vmatpush.msra.mxu0 0.0
    %1721 = vmatpush.msra.mxu0 0.0
    %1722 = vmatpush.msra.mxu0 0.0
    %1723 = vmatpush.msra.mxu0 0.0
    %1724 = vmatpush.msra.mxu0 0.0
    %1725 = vmatpush.msra.mxu0 0.0
    %1726 = vmatpush.msra.mxu0 0.0
    %1727 = vmatpush.msra.mxu0 0.0
    %1728 = vmatpush.msra.mxu0 %v908
    %1729 = vmatpush.msra.mxu0 %v824
    %1730 = vmatmul.f32.gmra.mxu0 %v847
    %v1731 = vpop.f32.mrf.mxu0
    %v1732 = vadd.f32 %v1643, %v1731
    %1733 = vmatmul.f32.gmra.mxu0 %v849
    %v1734 = vpop.f32.mrf.mxu0
    %v1735 = vadd.f32 %v1646, %v1734
    %1736 = vmatmul.f32.gmra.mxu0 %v851
    %v1737 = vpop.f32.mrf.mxu0
    %v1738 = vadd.f32 %v1649, %v1737
    %1739 = vmatmul.f32.gmra.mxu0 %v853
    %v1740 = vpop.f32.mrf.mxu0
    %v1741 = vadd.f32 %v1652, %v1740
    %1742 = vmatmul.f32.gmra.mxu0 %v855
    %v1743 = vpop.f32.mrf.mxu0
    %v1744 = vadd.f32 %v1655, %v1743
    %1745 = vmatmul.f32.gmra.mxu0 %v857
    %v1746 = vpop.f32.mrf.mxu0
    %v1747 = vadd.f32 %v1658, %v1746
    %1748 = vmatmul.f32.gmra.mxu0 %v859
    %v1749 = vpop.f32.mrf.mxu0
    %v1750 = vadd.f32 %v1661, %v1749
    %1751 = vmatmul.f32.gmra.mxu0 %v861
    %v1752 = vpop.f32.mrf.mxu0
    %v1753 = vadd.f32 %v1664, %v1752
    %1754 = vmatmul.f32.gmra.mxu0 %v863
    %v1755 = vpop.f32.mrf.mxu0
    %v1756 = vadd.f32 %v1667, %v1755
    %1757 = vmatmul.f32.gmra.mxu0 %v865
    %v1758 = vpop.f32.mrf.mxu0
    %v1759 = vadd.f32 %v1670, %v1758
    %1760 = vmatmul.f32.gmra.mxu0 %v867
    %v1761 = vpop.f32.mrf.mxu0
    %v1762 = vadd.f32 %v1673, %v1761
    %1763 = vmatmul.f32.gmra.mxu0 %v869
    %v1764 = vpop.f32.mrf.mxu0
    %v1765 = vadd.f32 %v1676, %v1764
    %1766 = vmatmul.f32.gmra.mxu0 %v871
    %v1767 = vpop.f32.mrf.mxu0
    %v1768 = vadd.f32 %v1679, %v1767
    %1769 = vmatmul.f32.gmra.mxu0 %v873
    %v1770 = vpop.f32.mrf.mxu0
    %v1771 = vadd.f32 %v1682, %v1770
    %1772 = vmatmul.f32.gmra.mxu0 %v875
    %v1773 = vpop.f32.mrf.mxu0
    %v1774 = vadd.f32 %v1685, %v1773
    %1775 = vmatmul.f32.gmra.mxu0 %v877
    %v1776 = vpop.f32.mrf.mxu0
    %v1777 = vadd.f32 %v1688, %v1776
    %1778 = vmatmul.f32.gmra.mxu0 %v879
    %v1779 = vpop.f32.mrf.mxu0
    %v1780 = vadd.f32 %v1691, %v1779
    %1781 = vmatmul.f32.gmra.mxu0 %v881
    %v1782 = vpop.f32.mrf.mxu0
    %v1783 = vadd.f32 %v1694, %v1782
    %1784 = vmatmul.f32.gmra.mxu0 %v883
    %v1785 = vpop.f32.mrf.mxu0
    %v1786 = vadd.f32 %v1697, %v1785
    %1787 = vmatmul.f32.gmra.mxu0 %v885
    %v1788 = vpop.f32.mrf.mxu0
    %v1789 = vadd.f32 %v1700, %v1788
    %1790 = vmatmul.f32.gmra.mxu0 %v887
    %v1791 = vpop.f32.mrf.mxu0
    %v1792 = vadd.f32 %v1703, %v1791
    %1793 = vmatmul.f32.gmra.mxu0 %v889
    %v1794 = vpop.f32.mrf.mxu0
    %v1795 = vadd.f32 %v1706, %v1794
    %1796 = vmatmul.f32.gmra.mxu0 %v891
    %v1797 = vpop.f32.mrf.mxu0
    %v1798 = vadd.f32 %v1709, %v1797
    %1799 = vmatmul.f32.gmra.mxu0 %v893
    %v1800 = vpop.f32.mrf.mxu0
    %v1801 = vadd.f32 %v1712, %v1800
    %1802 = vdwg.mxu0
    %1803 = vmatpush.msra.mxu0 %v819
    %1804 = vmatpush.msra.mxu0 %v813
    %1805 = vmatpush.msra.mxu0 %v807
    %1806 = vmatpush.msra.mxu0 %v801
    %1807 = vmatpush.msra.mxu0 %v795
    %1808 = vmatpush.msra.mxu0 %v789
    %1809 = vmatpush.msra.mxu0 %v783
    %1810 = vmatpush.msra.mxu0 %v777
    %1811 = vmatpush.msra.mxu0 %v771
    %1812 = vmatpush.msra.mxu0 %v765
    %1813 = vmatpush.msra.mxu0 %v759
    %1814 = vmatpush.msra.mxu0 %v753
    %1815 = vmatpush.msra.mxu0 %v747
    %1816 = vmatpush.msra.mxu0 %v741
    %1817 = vmatpush.msra.mxu0 %v735
    %1818 = vmatpush.msra.mxu0 %v729
    %1819 = vmatmul.f32.gmra.mxu0 %v700
    %v1820 = vpop.f32.mrf.mxu0
    %v1821 = vadd.f32 %v839, %v1820
    %1822 = vmatmul.f32.gmra.mxu0 %v701
    %v1823 = vpop.f32.mrf.mxu0
    %v1824 = vadd.f32 %v839, %v1823
    %1825 = vmatmul.f32.gmra.mxu0 %v702
    %v1826 = vpop.f32.mrf.mxu0
    %v1827 = vadd.f32 %v839, %v1826
    %1828 = vmatmul.f32.gmra.mxu0 %v703
    %v1829 = vpop.f32.mrf.mxu0
    %v1830 = vadd.f32 %v839, %v1829
    %1831 = vmatmul.f32.gmra.mxu0 %v704
    %v1832 = vpop.f32.mrf.mxu0
    %v1833 = vadd.f32 %v839, %v1832
    %1834 = vmatmul.f32.gmra.mxu0 %v705
    %v1835 = vpop.f32.mrf.mxu0
    %v1836 = vadd.f32 %v839, %v1835
    %1837 = vmatmul.f32.gmra.mxu0 %v706
    %v1838 = vpop.f32.mrf.mxu0
    %v1839 = vadd.f32 %v839, %v1838
    %1840 = vmatmul.f32.gmra.mxu0 %v707
    %v1841 = vpop.f32.mrf.mxu0
    %v1842 = vadd.f32 %v839, %v1841
    %1843 = vmatmul.f32.gmra.mxu0 %v708
    %v1844 = vpop.f32.mrf.mxu0
    %v1845 = vadd.f32 %v839, %v1844
    %1846 = vmatmul.f32.gmra.mxu0 %v709
    %v1847 = vpop.f32.mrf.mxu0
    %v1848 = vadd.f32 %v839, %v1847
    %1849 = vmatmul.f32.gmra.mxu0 %v710
    %v1850 = vpop.f32.mrf.mxu0
    %v1851 = vadd.f32 %v839, %v1850
    %1852 = vmatmul.f32.gmra.mxu0 %v711
    %v1853 = vpop.f32.mrf.mxu0
    %v1854 = vadd.f32 %v839, %v1853
    %1855 = vmatmul.f32.gmra.mxu0 %v712
    %v1856 = vpop.f32.mrf.mxu0
    %v1857 = vadd.f32 %v839, %v1856
    %1858 = vmatmul.f32.gmra.mxu0 %v713
    %v1859 = vpop.f32.mrf.mxu0
    %v1860 = vadd.f32 %v839, %v1859
    %1861 = vmatmul.f32.gmra.mxu0 %v714
    %v1862 = vpop.f32.mrf.mxu0
    %v1863 = vadd.f32 %v839, %v1862
    %1864 = vmatmul.f32.gmra.mxu0 %v715
    %v1865 = vpop.f32.mrf.mxu0
    %v1866 = vadd.f32 %v839, %v1865
    %1867 = vmatmul.f32.gmra.mxu0 %v716
    %v1868 = vpop.f32.mrf.mxu0
    %v1869 = vadd.f32 %v839, %v1868
    %1870 = vmatmul.f32.gmra.mxu0 %v717
    %v1871 = vpop.f32.mrf.mxu0
    %v1872 = vadd.f32 %v839, %v1871
    %1873 = vmatmul.f32.gmra.mxu0 %v718
    %v1874 = vpop.f32.mrf.mxu0
    %v1875 = vadd.f32 %v839, %v1874
    %1876 = vmatmul.f32.gmra.mxu0 %v719
    %v1877 = vpop.f32.mrf.mxu0
    %v1878 = vadd.f32 %v839, %v1877
    %1879 = vmatmul.f32.gmra.mxu0 %v720
    %v1880 = vpop.f32.mrf.mxu0
    %v1881 = vadd.f32 %v839, %v1880
    %1882 = vmatmul.f32.gmra.mxu0 %v721
    %v1883 = vpop.f32.mrf.mxu0
    %v1884 = vadd.f32 %v839, %v1883
    %1885 = vmatmul.f32.gmra.mxu0 %v722
    %v1886 = vpop.f32.mrf.mxu0
    %v1887 = vadd.f32 %v839, %v1886
    %1888 = vmatmul.f32.gmra.mxu0 %v723
    %v1889 = vpop.f32.mrf.mxu0
    %v1890 = vadd.f32 %v839, %v1889
    %1891 = vdwg.mxu0
    %1892 = vmatpush.msra.mxu0 0.0
    %1893 = vmatpush.msra.mxu0 0.0
    %1894 = vmatpush.msra.mxu0 0.0
    %1895 = vmatpush.msra.mxu0 0.0
    %1896 = vmatpush.msra.mxu0 0.0
    %1897 = vmatpush.msra.mxu0 0.0
    %1898 = vmatpush.msra.mxu0 0.0
    %1899 = vmatpush.msra.mxu0 0.0
    %1900 = vmatpush.msra.mxu0 0.0
    %1901 = vmatpush.msra.mxu0 0.0
    %1902 = vmatpush.msra.mxu0 0.0
    %1903 = vmatpush.msra.mxu0 0.0
    %1904 = vmatpush.msra.mxu0 0.0
    %1905 = vmatpush.msra.mxu0 0.0
    %1906 = vmatpush.msra.mxu0 %v911
    %1907 = vmatpush.msra.mxu0 %v825
    %1908 = vmatmul.f32.gmra.mxu0 %v847
    %v1909 = vpop.f32.mrf.mxu0
    %v1910 = vadd.f32 %v1821, %v1909
    %1911 = vmatmul.f32.gmra.mxu0 %v849
    %v1912 = vpop.f32.mrf.mxu0
    %v1913 = vadd.f32 %v1824, %v1912
    %1914 = vmatmul.f32.gmra.mxu0 %v851
    %v1915 = vpop.f32.mrf.mxu0
    %v1916 = vadd.f32 %v1827, %v1915
    %1917 = vmatmul.f32.gmra.mxu0 %v853
    %v1918 = vpop.f32.mrf.mxu0
    %v1919 = vadd.f32 %v1830, %v1918
    %1920 = vmatmul.f32.gmra.mxu0 %v855
    %v1921 = vpop.f32.mrf.mxu0
    %v1922 = vadd.f32 %v1833, %v1921
    %1923 = vmatmul.f32.gmra.mxu0 %v857
    %v1924 = vpop.f32.mrf.mxu0
    %v1925 = vadd.f32 %v1836, %v1924
    %1926 = vmatmul.f32.gmra.mxu0 %v859
    %v1927 = vpop.f32.mrf.mxu0
    %v1928 = vadd.f32 %v1839, %v1927
    %1929 = vmatmul.f32.gmra.mxu0 %v861
    %v1930 = vpop.f32.mrf.mxu0
    %v1931 = vadd.f32 %v1842, %v1930
    %1932 = vmatmul.f32.gmra.mxu0 %v863
    %v1933 = vpop.f32.mrf.mxu0
    %v1934 = vadd.f32 %v1845, %v1933
    %1935 = vmatmul.f32.gmra.mxu0 %v865
    %v1936 = vpop.f32.mrf.mxu0
    %v1937 = vadd.f32 %v1848, %v1936
    %1938 = vmatmul.f32.gmra.mxu0 %v867
    %v1939 = vpop.f32.mrf.mxu0
    %v1940 = vadd.f32 %v1851, %v1939
    %1941 = vmatmul.f32.gmra.mxu0 %v869
    %v1942 = vpop.f32.mrf.mxu0
    %v1943 = vadd.f32 %v1854, %v1942
    %1944 = vmatmul.f32.gmra.mxu0 %v871
    %v1945 = vpop.f32.mrf.mxu0
    %v1946 = vadd.f32 %v1857, %v1945
    %1947 = vmatmul.f32.gmra.mxu0 %v873
    %v1948 = vpop.f32.mrf.mxu0
    %v1949 = vadd.f32 %v1860, %v1948
    %1950 = vmatmul.f32.gmra.mxu0 %v875
    %v1951 = vpop.f32.mrf.mxu0
    %v1952 = vadd.f32 %v1863, %v1951
    %1953 = vmatmul.f32.gmra.mxu0 %v877
    %v1954 = vpop.f32.mrf.mxu0
    %v1955 = vadd.f32 %v1866, %v1954
    %1956 = vmatmul.f32.gmra.mxu0 %v879
    %v1957 = vpop.f32.mrf.mxu0
    %v1958 = vadd.f32 %v1869, %v1957
    %1959 = vmatmul.f32.gmra.mxu0 %v881
    %v1960 = vpop.f32.mrf.mxu0
    %v1961 = vadd.f32 %v1872, %v1960
    %1962 = vmatmul.f32.gmra.mxu0 %v883
    %v1963 = vpop.f32.mrf.mxu0
    %v1964 = vadd.f32 %v1875, %v1963
    %1965 = vmatmul.f32.gmra.mxu0 %v885
    %v1966 = vpop.f32.mrf.mxu0
    %v1967 = vadd.f32 %v1878, %v1966
    %1968 = vmatmul.f32.gmra.mxu0 %v887
    %v1969 = vpop.f32.mrf.mxu0
    %v1970 = vadd.f32 %v1881, %v1969
    %1971 = vmatmul.f32.gmra.mxu0 %v889
    %v1972 = vpop.f32.mrf.mxu0
    %v1973 = vadd.f32 %v1884, %v1972
    %1974 = vmatmul.f32.gmra.mxu0 %v891
    %v1975 = vpop.f32.mrf.mxu0
    %v1976 = vadd.f32 %v1887, %v1975
    %1977 = vmatmul.f32.gmra.mxu0 %v893
    %v1978 = vpop.f32.mrf.mxu0
    %v1979 = vadd.f32 %v1890, %v1978
    %1980 = vdwg.mxu0
    %v1981 = vmax.f32 %v1020, 0.0
    %v1982 = vmax.f32 %v1198, 0.0
    %v1983 = vmax.f32 %v1376, 0.0
    %v1984 = vmax.f32 %v1554, 0.0
    %v1985 = vmax.f32 %v1732, 0.0
    %v1986 = vmax.f32 %v1910, 0.0
    %v1987 = vmax.f32 %v1023, 0.0
    %v1988 = vmax.f32 %v1201, 0.0
    %v1989 = vmax.f32 %v1379, 0.0
    %v1990 = vmax.f32 %v1557, 0.0
    %v1991 = vmax.f32 %v1735, 0.0
    %v1992 = vmax.f32 %v1913, 0.0
    %v1993 = vmax.f32 %v1026, 0.0
    %v1994 = vmax.f32 %v1204, 0.0
    %v1995 = vmax.f32 %v1382, 0.0
    %v1996 = vmax.f32 %v1560, 0.0
    %v1997 = vmax.f32 %v1738, 0.0
    %v1998 = vmax.f32 %v1916, 0.0
    %v1999 = vmax.f32 %v1029, 0.0
    %v2000 = vmax.f32 %v1207, 0.0
    %v2001 = vmax.f32 %v1385, 0.0
    %v2002 = vmax.f32 %v1563, 0.0
    %v2003 = vmax.f32 %v1741, 0.0
    %v2004 = vmax.f32 %v1919, 0.0
    %v2005 = vmax.f32 %v1032, 0.0
    %v2006 = vmax.f32 %v1210, 0.0
    %v2007 = vmax.f32 %v1388, 0.0
    %v2008 = vmax.f32 %v1566, 0.0
    %v2009 = vmax.f32 %v1744, 0.0
    %v2010 = vmax.f32 %v1922, 0.0
    %v2011 = vmax.f32 %v1035, 0.0
    %v2012 = vmax.f32 %v1213, 0.0
    %v2013 = vmax.f32 %v1391, 0.0
    %v2014 = vmax.f32 %v1569, 0.0
    %v2015 = vmax.f32 %v1747, 0.0
    %v2016 = vmax.f32 %v1925, 0.0
    %v2017 = vmax.f32 %v1038, 0.0
    %v2018 = vmax.f32 %v1216, 0.0
    %v2019 = vmax.f32 %v1394, 0.0
    %v2020 = vmax.f32 %v1572, 0.0
    %v2021 = vmax.f32 %v1750, 0.0
    %v2022 = vmax.f32 %v1928, 0.0
    %v2023 = vmax.f32 %v1041, 0.0
    %v2024 = vmax.f32 %v1219, 0.0
    %v2025 = vmax.f32 %v1397, 0.0
    %v2026 = vmax.f32 %v1575, 0.0
    %v2027 = vmax.f32 %v1753, 0.0
    %v2028 = vmax.f32 %v1931, 0.0
    %v2029 = vmax.f32 %v1044, 0.0
    %v2030 = vmax.f32 %v1222, 0.0
    %v2031 = vmax.f32 %v1400, 0.0
    %v2032 = vmax.f32 %v1578, 0.0
    %v2033 = vmax.f32 %v1756, 0.0
    %v2034 = vmax.f32 %v1934, 0.0
    %v2035 = vmax.f32 %v1047, 0.0
    %v2036 = vmax.f32 %v1225, 0.0
    %v2037 = vmax.f32 %v1403, 0.0
    %v2038 = vmax.f32 %v1581, 0.0
    %v2039 = vmax.f32 %v1759, 0.0
    %v2040 = vmax.f32 %v1937, 0.0
    %v2041 = vmax.f32 %v1050, 0.0
    %v2042 = vmax.f32 %v1228, 0.0
    %v2043 = vmax.f32 %v1406, 0.0
    %v2044 = vmax.f32 %v1584, 0.0
    %v2045 = vmax.f32 %v1762, 0.0
    %v2046 = vmax.f32 %v1940, 0.0
    %v2047 = vmax.f32 %v1053, 0.0
    %v2048 = vmax.f32 %v1231, 0.0
    %v2049 = vmax.f32 %v1409, 0.0
    %v2050 = vmax.f32 %v1587, 0.0
    %v2051 = vmax.f32 %v1765, 0.0
    %v2052 = vmax.f32 %v1943, 0.0
    %v2053 = vmax.f32 %v1056, 0.0
    %v2054 = vmax.f32 %v1234, 0.0
    %v2055 = vmax.f32 %v1412, 0.0
    %v2056 = vmax.f32 %v1590, 0.0
    %v2057 = vmax.f32 %v1768, 0.0
    %v2058 = vmax.f32 %v1946, 0.0
    %v2059 = vmax.f32 %v1059, 0.0
    %v2060 = vmax.f32 %v1237, 0.0
    %v2061 = vmax.f32 %v1415, 0.0
    %v2062 = vmax.f32 %v1593, 0.0
    %v2063 = vmax.f32 %v1771, 0.0
    %v2064 = vmax.f32 %v1949, 0.0
    %v2065 = vmax.f32 %v1062, 0.0
    %v2066 = vmax.f32 %v1240, 0.0
    %v2067 = vmax.f32 %v1418, 0.0
    %v2068 = vmax.f32 %v1596, 0.0
    %v2069 = vmax.f32 %v1774, 0.0
    %v2070 = vmax.f32 %v1952, 0.0
    %v2071 = vmax.f32 %v1065, 0.0
    %v2072 = vmax.f32 %v1243, 0.0
    %v2073 = vmax.f32 %v1421, 0.0
    %v2074 = vmax.f32 %v1599, 0.0
    %v2075 = vmax.f32 %v1777, 0.0
    %v2076 = vmax.f32 %v1955, 0.0
    %v2077 = vmax.f32 %v1068, 0.0
    %v2078 = vmax.f32 %v1246, 0.0
    %v2079 = vmax.f32 %v1424, 0.0
    %v2080 = vmax.f32 %v1602, 0.0
    %v2081 = vmax.f32 %v1780, 0.0
    %v2082 = vmax.f32 %v1958, 0.0
    %v2083 = vmax.f32 %v1071, 0.0
    %v2084 = vmax.f32 %v1249, 0.0
    %v2085 = vmax.f32 %v1427, 0.0
    %v2086 = vmax.f32 %v1605, 0.0
    %v2087 = vmax.f32 %v1783, 0.0
    %v2088 = vmax.f32 %v1961, 0.0
    %v2089 = vmax.f32 %v1074, 0.0
    %v2090 = vmax.f32 %v1252, 0.0
    %v2091 = vmax.f32 %v1430, 0.0
    %v2092 = vmax.f32 %v1608, 0.0
    %v2093 = vmax.f32 %v1786, 0.0
    %v2094 = vmax.f32 %v1964, 0.0
    %v2095 = vmax.f32 %v1077, 0.0
    %v2096 = vmax.f32 %v1255, 0.0
    %v2097 = vmax.f32 %v1433, 0.0
    %v2098 = vmax.f32 %v1611, 0.0
    %v2099 = vmax.f32 %v1789, 0.0
    %v2100 = vmax.f32 %v1967, 0.0
    %v2101 = vmax.f32 %v1080, 0.0
    %v2102 = vmax.f32 %v1258, 0.0
    %v2103 = vmax.f32 %v1436, 0.0
    %v2104 = vmax.f32 %v1614, 0.0
    %v2105 = vmax.f32 %v1792, 0.0
    %v2106 = vmax.f32 %v1970, 0.0
    %v2107 = vmax.f32 %v1083, 0.0
    %v2108 = vmax.f32 %v1261, 0.0
    %v2109 = vmax.f32 %v1439, 0.0
    %v2110 = vmax.f32 %v1617, 0.0
    %v2111 = vmax.f32 %v1795, 0.0
    %v2112 = vmax.f32 %v1973, 0.0
    %v2113 = vmax.f32 %v1086, 0.0
    %v2114 = vmax.f32 %v1264, 0.0
    %v2115 = vmax.f32 %v1442, 0.0
    %v2116 = vmax.f32 %v1620, 0.0
    %v2117 = vmax.f32 %v1798, 0.0
    %v2118 = vmax.f32 %v1976, 0.0
    %v2119 = vmax.f32 %v1089, 0.0
    %v2120 = vmax.f32 %v1267, 0.0
    %v2121 = vmax.f32 %v1445, 0.0
    %v2122 = vmax.f32 %v1623, 0.0
    %v2123 = vmax.f32 %v1801, 0.0
    %v2124 = vmax.f32 %v1979, 0.0
    %v2125 = vpack.c.bf16 %v1982, %v1981
    %v2126 = vpack.c.bf16 %v1984, %v1983
    %v2127 = vpack.c.bf16 %v1986, %v1985
    %v2128 = vpack.c.bf16 %v1988, %v1987
    %v2129 = vpack.c.bf16 %v1990, %v1989
    %v2130 = vpack.c.bf16 %v1992, %v1991
    %v2131 = vpack.c.bf16 %v1994, %v1993
    %v2132 = vpack.c.bf16 %v1996, %v1995
    %v2133 = vpack.c.bf16 %v1998, %v1997
    %v2134 = vpack.c.bf16 %v2000, %v1999
    %v2135 = vpack.c.bf16 %v2002, %v2001
    %v2136 = vpack.c.bf16 %v2004, %v2003
    %v2137 = vpack.c.bf16 %v2006, %v2005
    %v2138 = vpack.c.bf16 %v2008, %v2007
    %v2139 = vpack.c.bf16 %v2010, %v2009
    %v2140 = vpack.c.bf16 %v2012, %v2011
    %v2141 = vpack.c.bf16 %v2014, %v2013
    %v2142 = vpack.c.bf16 %v2016, %v2015
    %v2143 = vpack.c.bf16 %v2018, %v2017
    %v2144 = vpack.c.bf16 %v2020, %v2019
    %v2145 = vpack.c.bf16 %v2022, %v2021
    %v2146 = vpack.c.bf16 %v2024, %v2023
    %v2147 = vpack.c.bf16 %v2026, %v2025
    %v2148 = vpack.c.bf16 %v2028, %v2027
    %v2149 = vpack.c.bf16 %v2030, %v2029
    %v2150 = vpack.c.bf16 %v2032, %v2031
    %v2151 = vpack.c.bf16 %v2034, %v2033
    %v2152 = vpack.c.bf16 %v2036, %v2035
    %v2153 = vpack.c.bf16 %v2038, %v2037
    %v2154 = vpack.c.bf16 %v2040, %v2039
    %v2155 = vpack.c.bf16 %v2042, %v2041
    %v2156 = vpack.c.bf16 %v2044, %v2043
    %v2157 = vpack.c.bf16 %v2046, %v2045
    %v2158 = vpack.c.bf16 %v2048, %v2047
    %v2159 = vpack.c.bf16 %v2050, %v2049
    %v2160 = vpack.c.bf16 %v2052, %v2051
    %v2161 = vpack.c.bf16 %v2054, %v2053
    %v2162 = vpack.c.bf16 %v2056, %v2055
    %v2163 = vpack.c.bf16 %v2058, %v2057
    %v2164 = vpack.c.bf16 %v2060, %v2059
    %v2165 = vpack.c.bf16 %v2062, %v2061
    %v2166 = vpack.c.bf16 %v2064, %v2063
    %v2167 = vpack.c.bf16 %v2066, %v2065
    %v2168 = vpack.c.bf16 %v2068, %v2067
    %v2169 = vpack.c.bf16 %v2070, %v2069
    %v2170 = vpack.c.bf16 %v2072, %v2071
    %v2171 = vpack.c.bf16 %v2074, %v2073
    %v2172 = vpack.c.bf16 %v2076, %v2075
    %v2173 = vpack.c.bf16 %v2078, %v2077
    %v2174 = vpack.c.bf16 %v2080, %v2079
    %v2175 = vpack.c.bf16 %v2082, %v2081
    %v2176 = vpack.c.bf16 %v2084, %v2083
    %v2177 = vpack.c.bf16 %v2086, %v2085
    %v2178 = vpack.c.bf16 %v2088, %v2087
    %v2179 = vpack.c.bf16 %v2090, %v2089
    %v2180 = vpack.c.bf16 %v2092, %v2091
    %v2181 = vpack.c.bf16 %v2094, %v2093
    %v2182 = vpack.c.bf16 %v2096, %v2095
    %v2183 = vpack.c.bf16 %v2098, %v2097
    %v2184 = vpack.c.bf16 %v2100, %v2099
    %v2185 = vpack.c.bf16 %v2102, %v2101
    %v2186 = vpack.c.bf16 %v2104, %v2103
    %v2187 = vpack.c.bf16 %v2106, %v2105
    %v2188 = vpack.c.bf16 %v2108, %v2107
    %v2189 = vpack.c.bf16 %v2110, %v2109
    %v2190 = vpack.c.bf16 %v2112, %v2111
    %v2191 = vpack.c.bf16 %v2114, %v2113
    %v2192 = vpack.c.bf16 %v2116, %v2115
    %v2193 = vpack.c.bf16 %v2118, %v2117
    %v2194 = vpack.c.bf16 %v2120, %v2119
    %v2195 = vpack.c.bf16 %v2122, %v2121
    %v2196 = vpack.c.bf16 %v2124, %v2123
    %2197 = vst [vmem:[%s3] sm:$0xff] %v2125
    %2198 = vst [vmem:[%s3 + $0x8] sm:$0xff] %v2126
    %2199 = vst [vmem:[%s3 + $0x10] sm:$0xff] %v2127
    %2200 = vst [vmem:[%s3 + $0x18] sm:$0xff] %v2128
    %2201 = vst [vmem:[%s3 + $0x20] sm:$0xff] %v2129
    %2202 = vst [vmem:[%s3 + $0x28] sm:$0xff] %v2130
    %2203 = vst [vmem:[%s3 + $0x30] sm:$0xff] %v2131
    %2204 = vst [vmem:[%s3 + $0x38] sm:$0xff] %v2132
    %2205 = vst [vmem:[%s3 + $0x40] sm:$0xff] %v2133
    %2206 = vst [vmem:[%s3 + $0x48] sm:$0xff] %v2134
    %2207 = vst [vmem:[%s3 + $0x50] sm:$0xff] %v2135
    %2208 = vst [vmem:[%s3 + $0x58] sm:$0xff] %v2136
    %2209 = vst [vmem:[%s3 + $0x60] sm:$0xff] %v2137
    %2210 = vst [vmem:[%s3 + $0x68] sm:$0xff] %v2138
    %2211 = vst [vmem:[%s3 + $0x70] sm:$0xff] %v2139
    %2212 = vst [vmem:[%s3 + $0x78] sm:$0xff] %v2140
    %2213 = vst [vmem:[%s3 + $0x80] sm:$0xff] %v2141
    %2214 = vst [vmem:[%s3 + $0x88] sm:$0xff] %v2142
    %2215 = vst [vmem:[%s3 + $0x90] sm:$0xff] %v2143
    %2216 = vst [vmem:[%s3 + $0x98] sm:$0xff] %v2144
    %2217 = vst [vmem:[%s3 + $0xa0] sm:$0xff] %v2145
    %2218 = vst [vmem:[%s3 + $0xa8] sm:$0xff] %v2146
    %2219 = vst [vmem:[%s3 + $0xb0] sm:$0xff] %v2147
    %2220 = vst [vmem:[%s3 + $0xb8] sm:$0xff] %v2148
    %2221 = vst [vmem:[%s3 + $0xc0] sm:$0xff] %v2149
    %2222 = vst [vmem:[%s3 + $0xc8] sm:$0xff] %v2150
    %2223 = vst [vmem:[%s3 + $0xd0] sm:$0xff] %v2151
    %2224 = vst [vmem:[%s3 + $0xd8] sm:$0xff] %v2152
    %2225 = vst [vmem:[%s3 + $0xe0] sm:$0xff] %v2153
    %2226 = vst [vmem:[%s3 + $0xe8] sm:$0xff] %v2154
    %2227 = vst [vmem:[%s3 + $0xf0] sm:$0xff] %v2155
    %2228 = vst [vmem:[%s3 + $0xf8] sm:$0xff] %v2156
    %2229 = vst [vmem:[%s3 + $0x100] sm:$0xff] %v2157
    %2230 = vst [vmem:[%s3 + $0x108] sm:$0xff] %v2158
    %2231 = vst [vmem:[%s3 + $0x110] sm:$0xff] %v2159
    %2232 = vst [vmem:[%s3 + $0x118] sm:$0xff] %v2160
    %2233 = vst [vmem:[%s3 + $0x120] sm:$0xff] %v2161
    %2234 = vst [vmem:[%s3 + $0x128] sm:$0xff] %v2162
    %2235 = vst [vmem:[%s3 + $0x130] sm:$0xff] %v2163
    %2236 = vst [vmem:[%s3 + $0x138] sm:$0xff] %v2164
    %2237 = vst [vmem:[%s3 + $0x140] sm:$0xff] %v2165
    %2238 = vst [vmem:[%s3 + $0x148] sm:$0xff] %v2166
    %2239 = vst [vmem:[%s3 + $0x150] sm:$0xff] %v2167
    %2240 = vst [vmem:[%s3 + $0x158] sm:$0xff] %v2168
    %2241 = vst [vmem:[%s3 + $0x160] sm:$0xff] %v2169
    %2242 = vst [vmem:[%s3 + $0x168] sm:$0xff] %v2170
    %2243 = vst [vmem:[%s3 + $0x170] sm:$0xff] %v2171
    %2244 = vst [vmem:[%s3 + $0x178] sm:$0xff] %v2172
    %2245 = vst [vmem:[%s3 + $0x180] sm:$0xff] %v2173
    %2246 = vst [vmem:[%s3 + $0x188] sm:$0xff] %v2174
    %2247 = vst [vmem:[%s3 + $0x190] sm:$0xff] %v2175
    %2248 = vst [vmem:[%s3 + $0x198] sm:$0xff] %v2176
    %2249 = vst [vmem:[%s3 + $0x1a0] sm:$0xff] %v2177
    %2250 = vst [vmem:[%s3 + $0x1a8] sm:$0xff] %v2178
    %2251 = vst [vmem:[%s3 + $0x1b0] sm:$0xff] %v2179
    %2252 = vst [vmem:[%s3 + $0x1b8] sm:$0xff] %v2180
    %2253 = vst [vmem:[%s3 + $0x1c0] sm:$0xff] %v2181
    %2254 = vst [vmem:[%s3 + $0x1c8] sm:$0xff] %v2182
    %2255 = vst [vmem:[%s3 + $0x1d0] sm:$0xff] %v2183
    %2256 = vst [vmem:[%s3 + $0x1d8] sm:$0xff] %v2184
    %2257 = vst [vmem:[%s3 + $0x1e0] sm:$0xff] %v2185
    %2258 = vst [vmem:[%s3 + $0x1e8] sm:$0xff] %v2186
    %2259 = vst [vmem:[%s3 + $0x1f0] sm:$0xff] %v2187
    %2260 = vst [vmem:[%s3 + $0x1f8] sm:$0xff] %v2188
    %2261 = vst [vmem:[%s3 + $0x200] sm:$0xff] %v2189
    %2262 = vst [vmem:[%s3 + $0x208] sm:$0xff] %v2190
    %2263 = vst [vmem:[%s3 + $0x210] sm:$0xff] %v2191
    %2264 = vst [vmem:[%s3 + $0x218] sm:$0xff] %v2192
    %2265 = vst [vmem:[%s3 + $0x220] sm:$0xff] %v2193
    %2266 = vst [vmem:[%s3 + $0x228] sm:$0xff] %v2194
    %2267 = vst [vmem:[%s3 + $0x230] sm:$0xff] %v2195
    %2268 = vst [vmem:[%s3 + $0x238] sm:$0xff] %v2196
    // Predicated region
    $region22: #{model_cnn_forward.2} parent=1 // pred_check
      _
    $region23: #{model_cnn_forward.2} parent=1 // pred_check_branch
      %2270 = sbr.rel (0) target = $region25
    $region24: #{model_cnn_forward.2} parent=1 // pred_region
      _
    $region25: #{model_cnn_forward.2} parent=1 // pred_fallthru
      _
    // Predicated region
    $region26: #{model_cnn_forward.2} parent=1 // pred_check
      _
    $region27: #{model_cnn_forward.2} parent=1 // pred_check_branch
      %2272 = sbr.rel (0) target = $region29
    $region28: #{model_cnn_forward.2} parent=1 // pred_region
      _
    $region29: #{model_cnn_forward.2} parent=1 // pred_fallthru
      _
    %2273 = vsyncpa [#allocation3], 1
    %2274 = vsyncpa [#allocation5], 1

// kernel: model_cnn_forward.3
$region0: #{model_cnn_forward.3}
  #allocation0 [shape = 'u32[]', space=smem, size = 0x4, offset = 0x4, fixed_abs, tag = 'smem constant byte address 0x4 - core index']
  #allocation1 [shape = 'u32[72,128]{1,0:T(1,128)}', space=vmem, size = 0x9000, scoped, tag = 'internal scratch']
  #allocation2 [shape = 'f32[8,256]{1,0:T(8,128)}', space=vmem, size = 0x2000, scoped, tag = 'scratch operand']
  %s0 = inlined_call_operand.vmem [shape: bf16[8,18432], index: 0, kind: input, shape index: {}]
  %s1 = inlined_call_operand.hbm [shape: bf16[18432,256], index: 1, kind: input, shape index: {}]
  %s2 = inlined_call_operand.hbm [shape: f32[1,256], index: 2, kind: input, shape index: {}]
  %s3 = inlined_call_operand.vmem [shape: f32[256,10], index: 3, kind: input, shape index: {}]
  %s4 = inlined_call_operand.hbm [shape: f32[1,10], index: 4, kind: input, shape index: {}]
  %s5 = inlined_call_operand.vmem [shape: f32[8,10], index: 5, kind: output, shape index: {}]
  %s6 = sld [smem:[#allocation0]]
  $region73: #{model_cnn_forward.3} parent=0
    _
  %s8 = ssub.s32 1, %s6
  %s9 = scalar_select 0, %s8, %s6
  $region1: #{model_cnn_forward.3} parent=0
    #allocation3 [shape = 'u8[2359296]{0}', space=vmem, size = 0x240000, scoped, tag = 'input window, operand 1']
    #allocation4 [shape = 's32[2]{0}', space=sflag, size = 0x8, scoped, tag = 'scoped memory for model_cnn_forward.3']
    #allocation5 [shape = 'u8[1024]{0}', space=vmem, size = 0x400, scoped, tag = 'input window, operand 2, single buffered']
    #allocation6 [shape = 's32[1]{0}', space=sflag, size = 0x4, scoped, tag = 'scoped memory for model_cnn_forward.3']
    #allocation7 [shape = 'u8[512]{0}', space=vmem, size = 0x400, scoped, tag = 'input window, operand 4, single buffered']
    %10 = vsyncpa [#allocation4], 0
    %s11 = scalar_lea.sflag [#allocation4], 1
    %12 = vsyncpa %s11, 0
    %13 = vsyncpa [#allocation6], 0
    loop: start=0, step=1, limit=10
    $region2: #{model_cnn_forward.3} parent=1 // loop_pre_header
      _
    $region3: #{model_cnn_forward.3} parent=1 // loop_header
      %s15 = sphi 0, %s19
      %p16 = scmp.ge.s32.totalorder %s15, 10
      %s22 = sphi 0, %s34
      %s23 = sphi 0, %s30
      %s24 = sphi 0, %s22
      %s25 = sphi 0, %s23
      %s26 = sphi 0, %s24
      %s27 = sphi 0, %s25
      %s39 = sphi 0, %s41
      %s42 = sphi 0, %s39
      %s43 = sphi 0, %s42
      %s59 = sphi 0, %s43
      %s65 = sphi 0, %s67
      %s68 = sphi 0, %s65
      %s69 = sphi 0, %s68
      %s85 = sphi 0, %s69
      %s89 = sphi 0, %s89
      %s91 = sphi 0, %s89
      %s92 = sphi 0, %s91
      %s106 = sphi 0, %s92
      %s110 = sphi 0, %s110
      %s112 = sphi 0, %s110
      %s113 = sphi 0, %s112
      %s127 = sphi 0, %s113
      %s131 = sphi 0, %s131
      %s133 = sphi 0, %s131
      %s134 = sphi 0, %s133
      %s148 = sphi 0, %s134
      %s154 = sphi 0, %s156
      %s157 = sphi 0, %s154
      %s158 = sphi 0, %s157
      %s174 = sphi 0, %s158
    $region4: #{model_cnn_forward.3} parent=1 // loop_header_branch
      %18 = sbr.rel (%p16) target = $region8
    $region5: #{model_cnn_forward.3} parent=1 // loop_body
      %s20 = ssub.s32 %s15, 1
      %s21 = ssub.s32 %s15, 2
      %s28 = sadd.s32 1, %s23
      %p29 = scmp.ge.s32.totalorder %s28, 8
      %s30 = scalar_select %p29, 0, %s28
      %s31 = sadd.s32 1, %s22
      %s32 = scalar_select %p29, %s31, %s22
      %p33 = scmp.ge.s32.totalorder %s32, 1
      %s34 = scalar_select %p33, 0, %s32
      %s35 = ssub.s32 %s22, %s34
      %s36 = ssub.s32 %s23, %s30
      %s37 = sor.u32 %s35, %s36
      %p38 = scmp.eq.s32.totalorder %s37, 0
      %s40 = sadd.s32 %s39, 1
      %s41 = scalar_select %p38, %s39, %s40
      %p44 = pneg %p38
      %p45 = scmp.eq.s32.totalorder %s15, 7
      %p46 = por %p44, %p45
      %p47 = scmp.ne.s32.totalorder %s39, %s42
      %p48 = scmp.eq.s32.totalorder %s15, 0
      %p49 = por %p47, %p48
      %p50 = scmp.ne.s32.totalorder %s39, %s42
      %p51 = scmp.eq.s32.totalorder %s20, 7
      %p52 = por %p50, %p51
      %p53 = scmp.ne.s32.totalorder %s42, %s43
      %p54 = scmp.eq.s32.totalorder %s20, 0
      %p55 = por %p53, %p54
      %p56 = scmp.ne.s32.totalorder %s42, %s43
      %p57 = scmp.eq.s32.totalorder %s21, 7
      %p58 = por %p56, %p57
      %p60 = scmp.ne.s32.totalorder %s43, %s59
      %p61 = scmp.eq.s32.totalorder %s21, 0
      %p62 = por %p60, %p61
      %s63 = ssub.s32 %s23, %s30
      %p64 = scmp.eq.s32.totalorder %s63, 0
      %s66 = sadd.s32 %s65, 1
      %s67 = scalar_select %p64, %s65, %s66
      %p70 = pneg %p64
      %p71 = scmp.eq.s32.totalorder %s15, 7
      %p72 = por %p70, %p71
      %p73 = scmp.ne.s32.totalorder %s65, %s68
      %p74 = scmp.eq.s32.totalorder %s15, 0
      %p75 = por %p73, %p74
      %p76 = scmp.ne.s32.totalorder %s65, %s68
      %p77 = scmp.eq.s32.totalorder %s20, 7
      %p78 = por %p76, %p77
      %p79 = scmp.ne.s32.totalorder %s68, %s69
      %p80 = scmp.eq.s32.totalorder %s20, 0
      %p81 = por %p79, %p80
      %p82 = scmp.ne.s32.totalorder %s68, %s69
      %p83 = scmp.eq.s32.totalorder %s21, 7
      %p84 = por %p82, %p83
      %p86 = scmp.ne.s32.totalorder %s69, %s85
      %p87 = scmp.eq.s32.totalorder %s21, 0
      %p88 = por %p86, %p87
      %s90 = sadd.s32 %s89, 1
      %p93 = scmp.eq.s32.totalorder %s15, 7
      %p94 = scmp.ne.s32.totalorder %s89, %s91
      %p95 = scmp.eq.s32.totalorder %s15, 0
      %p96 = por %p94, %p95
      %p97 = scmp.ne.s32.totalorder %s89, %s91
      %p98 = scmp.eq.s32.totalorder %s20, 7
      %p99 = por %p97, %p98
      %p100 = scmp.ne.s32.totalorder %s91, %s92
      %p101 = scmp.eq.s32.totalorder %s20, 0
      %p102 = por %p100, %p101
      %p103 = scmp.ne.s32.totalorder %s91, %s92
      %p104 = scmp.eq.s32.totalorder %s21, 7
      %p105 = por %p103, %p104
      %p107 = scmp.ne.s32.totalorder %s92, %s106
      %p108 = scmp.eq.s32.totalorder %s21, 0
      %p109 = por %p107, %p108
      %s111 = sadd.s32 %s110, 1
      %p114 = scmp.eq.s32.totalorder %s15, 7
      %p115 = scmp.ne.s32.totalorder %s110, %s112
      %p116 = scmp.eq.s32.totalorder %s15, 0
      %p117 = por %p115, %p116
      %p118 = scmp.ne.s32.totalorder %s110, %s112
      %p119 = scmp.eq.s32.totalorder %s20, 7
      %p120 = por %p118, %p119
      %p121 = scmp.ne.s32.totalorder %s112, %s113
      %p122 = scmp.eq.s32.totalorder %s20, 0
      %p123 = por %p121, %p122
      %p124 = scmp.ne.s32.totalorder %s112, %s113
      %p125 = scmp.eq.s32.totalorder %s21, 7
      %p126 = por %p124, %p125
      %p128 = scmp.ne.s32.totalorder %s113, %s127
      %p129 = scmp.eq.s32.totalorder %s21, 0
      %p130 = por %p128, %p129
      %s132 = sadd.s32 %s131, 1
      %p135 = scmp.eq.s32.totalorder %s15, 7
      %p136 = scmp.ne.s32.totalorder %s131, %s133
      %p137 = scmp.eq.s32.totalorder %s15, 0
      %p138 = por %p136, %p137
      %p139 = scmp.ne.s32.totalorder %s131, %s133
      %p140 = scmp.eq.s32.totalorder %s20, 7
      %p141 = por %p139, %p140
      %p142 = scmp.ne.s32.totalorder %s133, %s134
      %p143 = scmp.eq.s32.totalorder %s20, 0
      %p144 = por %p142, %p143
      %p145 = scmp.ne.s32.totalorder %s133, %s134
      %p146 = scmp.eq.s32.totalorder %s21, 7
      %p147 = por %p145, %p146
      %p149 = scmp.ne.s32.totalorder %s134, %s148
      %p150 = scmp.eq.s32.totalorder %s21, 0
      %p151 = por %p149, %p150
      %s152 = ssub.s32 %s22, %s34
      %p153 = scmp.eq.s32.totalorder %s152, 0
      %s155 = sadd.s32 %s154, 1
      %s156 = scalar_select %p153, %s154, %s155
      %p159 = pneg %p153
      %p160 = scmp.eq.s32.totalorder %s15, 7
      %p161 = por %p159, %p160
      %p162 = scmp.ne.s32.totalorder %s154, %s157
      %p163 = scmp.eq.s32.totalorder %s15, 0
      %p164 = por %p162, %p163
      %p165 = scmp.ne.s32.totalorder %s154, %s157
      %p166 = scmp.eq.s32.totalorder %s20, 7
      %p167 = por %p165, %p166
      %p168 = scmp.ne.s32.totalorder %s157, %s158
      %p169 = scmp.eq.s32.totalorder %s20, 0
      %p170 = por %p168, %p169
      %p171 = scmp.ne.s32.totalorder %s157, %s158
      %p172 = scmp.eq.s32.totalorder %s21, 7
      %p173 = por %p171, %p172
      %p175 = scmp.ne.s32.totalorder %s158, %s174
      %p176 = scmp.eq.s32.totalorder %s21, 0
      %p177 = por %p175, %p176
      %p178 = scmp.le.s32.totalorder 1, %s15
      %p179 = scmp.lt.s32.totalorder %s15, 9
      %p180 = pnand %p178, %p179
      %p181 = pneg %p180
      // Predicated region
      $region9: #{model_cnn_forward.3} parent=5 // pred_check
        _
      $region10: #{model_cnn_forward.3} parent=5 // pred_check_branch
        %183 = sbr.rel (%p180) target = $region12
      $region11: #{model_cnn_forward.3} parent=5 // pred_region
        %s184 = ssub.s32 %s15, 1
        // Predicated region
        $region13: #{model_cnn_forward.3} parent=11 // pred_check
          %p185 = pneg %p102
        $region14: #{model_cnn_forward.3} parent=11 // pred_check_branch
          %187 = sbr.rel (%p185) target = $region16
        $region15: #{model_cnn_forward.3} parent=11 // pred_region
          %189 = vsyncadd [#allocation6], 0
          %s191 = sshll.u32 %s2, 4
          %s192 = int_to_ptr.hbm [resolvable:$true] %s191
          %s193 = sshll.u32 [#allocation5], 4
          %s194 = int_to_ptr.vmem [resolvable:$true] %s193
          %196 = dma.hbm_to_vmem [thread:$0]  %s192, 32, %s194, [#allocation6]
        $region16: #{model_cnn_forward.3} parent=11 // pred_fallthru
          _
        // Predicated region
        $region17: #{model_cnn_forward.3} parent=11 // pred_check
          %p197 = pneg %p123
        $region18: #{model_cnn_forward.3} parent=11 // pred_check_branch
          %199 = sbr.rel (%p197) target = $region20
        $region19: #{model_cnn_forward.3} parent=11 // pred_region
          _
        $region20: #{model_cnn_forward.3} parent=11 // pred_fallthru
          _
        // Predicated region
        $region21: #{model_cnn_forward.3} parent=11 // pred_check
          %p200 = pneg %p144
        $region22: #{model_cnn_forward.3} parent=11 // pred_check_branch
          %202 = sbr.rel (%p200) target = $region24
        $region23: #{model_cnn_forward.3} parent=11 // pred_region
          %204 = vsyncadd [#allocation6], 0
          %s206 = sshll.u32 %s4, 4
          %s207 = int_to_ptr.hbm [resolvable:$true] %s206
          %s208 = sshll.u32 [#allocation7], 4
          %s209 = int_to_ptr.vmem [resolvable:$true] %s208
          %211 = dma.hbm_to_vmem [thread:$0]  %s207, 16, %s209, [#allocation6]
        $region24: #{model_cnn_forward.3} parent=11 // pred_fallthru
          _
      $region12: #{model_cnn_forward.3} parent=5 // pred_fallthru
        _
      %p212 = scmp.lt.s32.totalorder %s15, 8
      // Predicated region
      $region25: #{model_cnn_forward.3} parent=5 // pred_check
        %p213 = pneg %p212
      $region26: #{model_cnn_forward.3} parent=5 // pred_check_branch
        %215 = sbr.rel (%p213) target = $region28
      $region27: #{model_cnn_forward.3} parent=5 // pred_region
        // Predicated region
        $region29: #{model_cnn_forward.3} parent=27 // pred_check
          %p216 = pneg %p49
        $region30: #{model_cnn_forward.3} parent=27 // pred_check_branch
          %218 = sbr.rel (%p216) target = $region32
        $region31: #{model_cnn_forward.3} parent=27 // pred_region
          %s219 = smul.u32 18, %s23
          %p220 = scmp.lt.s32.totalorder %s22, 0
          %s221 = scalar_select %p220, %s22, 0
          %p222 = scmp.lt.s32.totalorder %s219, 143
          %s223 = scalar_select %p222, %s219, 143
          %s224 = smul.addr %s221, 144
          %s225 = sadd.s32 %s223, %s224
          %s226 = smul.addr %s225, 4
          %s227 = scalar_lea.vmem %s0, %s226
          %s228 = smul.u32 18, %s23
        $region32: #{model_cnn_forward.3} parent=27 // pred_fallthru
          _
        // Predicated region
        $region33: #{model_cnn_forward.3} parent=27 // pred_check
          %p229 = pneg %p75
        $region34: #{model_cnn_forward.3} parent=27 // pred_check_branch
          %231 = sbr.rel (%p229) target = $region36
        $region35: #{model_cnn_forward.3} parent=27 // pred_region
          %s232 = sand.u32 %s65, 1
          %s233 = scalar_lea.sflag [#allocation4], %s232
          %s234 = sand.u32 %s65, 1
          %s235 = smul.addr %s234, 2304
          %s236 = scalar_lea.vmem [#allocation3], %s235
          %s237 = smul.u32 288, %s23
          %239 = vsyncadd %s233, 0
          %s240 = smul.addr %s237, 2
          %s241 = smul.addr %s240, 4
          %s242 = scalar_lea.hbm %s1, %s241
          %s243 = sshll.u32 %s242, 4
          %s244 = int_to_ptr.hbm [resolvable:$true] %s243
          %s245 = sshll.u32 %s236, 4
          %s246 = int_to_ptr.vmem [resolvable:$true] %s245
          %251 = dma.hbm_to_vmem [thread:$0]  %s244, 36864, %s246, %s233, 128, 128, 8
        $region36: #{model_cnn_forward.3} parent=27 // pred_fallthru
          _
      $region28: #{model_cnn_forward.3} parent=5 // pred_fallthru
        _
      %p252 = scmp.le.s32.totalorder 1, %s15
      %p253 = scmp.lt.s32.totalorder %s15, 9
      %p254 = pnand %p252, %p253
      %p255 = pneg %p254
      // Predicated region
      $region37: #{model_cnn_forward.3} parent=5 // pred_check
        _
      $region38: #{model_cnn_forward.3} parent=5 // pred_check_branch
        %257 = sbr.rel (%p254) target = $region40
      $region39: #{model_cnn_forward.3} parent=5 // pred_region
        %s258 = ssub.s32 %s15, 1
        %s259 = sand.u32 %s68, 1
        %s260 = scalar_lea.sflag [#allocation4], %s259
        %s261 = sand.u32 %s68, 1
        %s262 = smul.addr %s261, 2304
        %s263 = scalar_lea.vmem [#allocation3], %s262
        // Predicated region
        $region41: #{model_cnn_forward.3} parent=39 // pred_check
          %p264 = pneg %p81
        $region42: #{model_cnn_forward.3} parent=39 // pred_check_branch
          %266 = sbr.rel (%p264) target = $region44
        $region43: #{model_cnn_forward.3} parent=39 // pred_region
          %268 = dma.done %s260, 36864
        $region44: #{model_cnn_forward.3} parent=39 // pred_fallthru
          _
        // Predicated region
        $region45: #{model_cnn_forward.3} parent=39 // pred_check
          %p269 = pneg %p102
        $region46: #{model_cnn_forward.3} parent=39 // pred_check_branch
          %271 = sbr.rel (%p269) target = $region48
        $region47: #{model_cnn_forward.3} parent=39 // pred_region
          %273 = dma.done [#allocation6], 32
        $region48: #{model_cnn_forward.3} parent=39 // pred_fallthru
          _
        // Predicated region
        $region49: #{model_cnn_forward.3} parent=39 // pred_check
          %p274 = pneg %p144
        $region50: #{model_cnn_forward.3} parent=39 // pred_check_branch
          %276 = sbr.rel (%p274) target = $region52
        $region51: #{model_cnn_forward.3} parent=39 // pred_region
          %278 = dma.done [#allocation6], 16
        $region52: #{model_cnn_forward.3} parent=39 // pred_fallthru
          _
        %s279 = smul.u32 18, %s25
        %p280 = scmp.lt.s32.totalorder %s24, 0
        %s281 = scalar_select %p280, %s24, 0
        %p282 = scmp.lt.s32.totalorder %s279, 143
        %s283 = scalar_select %p282, %s279, 143
        %s284 = smul.addr %s281, 144
        %s285 = sadd.s32 %s283, %s284
        %s286 = smul.addr %s285, 4
        %s287 = scalar_lea.vmem %s0, %s286
        %p288 = pneg %p55
        %p289 = pneg %p52
        %s290 = sand.u32 %s68, 1
        %s291 = scalar_lea.sflag [#allocation4], %s290
        %s292 = sand.u32 %s68, 1
        %s293 = smul.addr %s292, 2304
        %s294 = scalar_lea.vmem [#allocation3], %s293
        %p295 = pneg %p81
        %p296 = pneg %p78
        %p297 = pneg %p102
        %p298 = pneg %p99
        %p299 = pneg %p123
        %p300 = pneg %p120
        %p301 = pneg %p144
        %p302 = pneg %p141
        %p303 = pneg %p170
        %p304 = pneg %p167
        %p305 = scmp.lt.s32.totalorder %s24, 0
        %s306 = scalar_select %p305, %s24, 0
        %s307 = smul.addr %s306, 8
        %s308 = scalar_lea.vmem %s5, %s307
        %s309 = smul.u32 18, %s25
        %p310 = scmp.lt.s32.totalorder %s24, 0
        %s311 = scalar_select %p310, %s24, 0
        %p312 = scmp.lt.s32.totalorder %s309, 143
        %s313 = scalar_select %p312, %s309, 143
        %s314 = smul.addr %s311, 144
        %s315 = sadd.s32 %s313, %s314
        %s316 = smul.addr %s315, 4
        %s317 = scalar_lea.vmem %s0, %s316
        %s318 = smul.u32 18, %s25
        %s319 = smul.u32 288, %s25
        %p320 = scmp.lt.s32.totalorder %s24, 0
        %s321 = scalar_select %p320, %s24, 0
        %s322 = smul.addr %s321, 8
        %s323 = scalar_lea.vmem %s5, %s322
        %p324 = scmp.eq.s32.totalorder %s25, 0
        // Predicated region
        $region53: #{model_cnn_forward.3} parent=39 // pred_check
          %p325 = pneg %p324
        $region54: #{model_cnn_forward.3} parent=39 // pred_check_branch
          %327 = sbr.rel (%p325) target = $region56
        $region55: #{model_cnn_forward.3} parent=39 // pred_region
          %v328 = vld [vmem:[#allocation5] sm:$0x3]
          %v330 = vperm.slane %v328, 0
          %v331 = vperm.slane %v328, 1
          %334 = vst [vmem:[#allocation2] sm:$0xff] %v330
          %335 = vst [vmem:[#allocation2 + $0x8] sm:$0xff] %v331
        $region56: #{model_cnn_forward.3} parent=39 // pred_fallthru
          _
        %v336 = vld [vmem:[#allocation2] sm:$0xff]
        %v337 = vld [vmem:[#allocation2 + $0x8] sm:$0xff]
        %v338 = vld [vmem:[%s317] sm:$0xff]
        %v339 = vld [vmem:[%s317 + $0x8] sm:$0xff]
        %v340 = vld [vmem:[%s317 + $0x10] sm:$0xff]
        %v341 = vld [vmem:[%s317 + $0x18] sm:$0xff]
        %v342 = vld [vmem:[%s317 + $0x20] sm:$0xff]
        %v343 = vld [vmem:[%s317 + $0x28] sm:$0xff]
        %v344 = vld [vmem:[%s317 + $0x30] sm:$0xff]
        %v345 = vld [vmem:[%s317 + $0x38] sm:$0xff]
        %v346 = vld [vmem:[%s317 + $0x40] sm:$0xff]
        %v347 = vld [vmem:[%s263] sm:$0xff]
        %v348 = vld [vmem:[%s263 + $0x8] sm:$0xff]
        %v349 = vld [vmem:[%s263 + $0x10] sm:$0xff]
        %v350 = vld [vmem:[%s263 + $0x18] sm:$0xff]
        %v351 = vld [vmem:[%s263 + $0x20] sm:$0xff]
        %v352 = vld [vmem:[%s263 + $0x28] sm:$0xff]
        %v353 = vld [vmem:[%s263 + $0x30] sm:$0xff]
        %v354 = vld [vmem:[%s263 + $0x38] sm:$0xff]
        %v355 = vld [vmem:[%s263 + $0x40] sm:$0xff]
        %v356 = vld [vmem:[%s263 + $0x48] sm:$0xff]
        %v357 = vld [vmem:[%s263 + $0x50] sm:$0xff]
        %v358 = vld [vmem:[%s263 + $0x58] sm:$0xff]
        %v359 = vld [vmem:[%s263 + $0x60] sm:$0xff]
        %v360 = vld [vmem:[%s263 + $0x68] sm:$0xff]
        %v361 = vld [vmem:[%s263 + $0x70] sm:$0xff]
        %v362 = vld [vmem:[%s263 + $0x78] sm:$0xff]
        %v363 = vld [vmem:[%s263 + $0x80] sm:$0xff]
        %v364 = vld [vmem:[%s263 + $0x88] sm:$0xff]
        %v365 = vld [vmem:[%s263 + $0x90] sm:$0xff]
        %v366 = vld [vmem:[%s263 + $0x98] sm:$0xff]
        %v367 = vld [vmem:[%s263 + $0xa0] sm:$0xff]
        %v368 = vld [vmem:[%s263 + $0xa8] sm:$0xff]
        %v369 = vld [vmem:[%s263 + $0xb0] sm:$0xff]
        %v370 = vld [vmem:[%s263 + $0xb8] sm:$0xff]
        %v371 = vld [vmem:[%s263 + $0xc0] sm:$0xff]
        %v372 = vld [vmem:[%s263 + $0xc8] sm:$0xff]
        %v373 = vld [vmem:[%s263 + $0xd0] sm:$0xff]
        %v374 = vld [vmem:[%s263 + $0xd8] sm:$0xff]
        %v375 = vld [vmem:[%s263 + $0xe0] sm:$0xff]
        %v376 = vld [vmem:[%s263 + $0xe8] sm:$0xff]
        %v377 = vld [vmem:[%s263 + $0xf0] sm:$0xff]
        %v378 = vld [vmem:[%s263 + $0xf8] sm:$0xff]
        %v379 = vld [vmem:[%s263 + $0x100] sm:$0xff]
        %v380 = vld [vmem:[%s263 + $0x108] sm:$0xff]
        %v381 = vld [vmem:[%s263 + $0x110] sm:$0xff]
        %v382 = vld [vmem:[%s263 + $0x118] sm:$0xff]
        %v383 = vld [vmem:[%s263 + $0x120] sm:$0xff]
        %v384 = vld [vmem:[%s263 + $0x128] sm:$0xff]
        %v385 = vld [vmem:[%s263 + $0x130] sm:$0xff]
        %v386 = vld [vmem:[%s263 + $0x138] sm:$0xff]
        %v387 = vld [vmem:[%s263 + $0x140] sm:$0xff]
        %v388 = vld [vmem:[%s263 + $0x148] sm:$0xff]
        %v389 = vld [vmem:[%s263 + $0x150] sm:$0xff]
        %v390 = vld [vmem:[%s263 + $0x158] sm:$0xff]
        %v391 = vld [vmem:[%s263 + $0x160] sm:$0xff]
        %v392 = vld [vmem:[%s263 + $0x168] sm:$0xff]
        %v393 = vld [vmem:[%s263 + $0x170] sm:$0xff]
        %v394 = vld [vmem:[%s263 + $0x178] sm:$0xff]
        %v395 = vld [vmem:[%s263 + $0x180] sm:$0xff]
        %v396 = vld [vmem:[%s263 + $0x188] sm:$0xff]
        %v397 = vld [vmem:[%s263 + $0x190] sm:$0xff]
        %v398 = vld [vmem:[%s263 + $0x198] sm:$0xff]
        %v399 = vld [vmem:[%s263 + $0x1a0] sm:$0xff]
        %v400 = vld [vmem:[%s263 + $0x1a8] sm:$0xff]
        %v401 = vld [vmem:[%s263 + $0x1b0] sm:$0xff]
        %v402 = vld [vmem:[%s263 + $0x1b8] sm:$0xff]
        %v403 = vld [vmem:[%s263 + $0x1c0] sm:$0xff]
        %v404 = vld [vmem:[%s263 + $0x1c8] sm:$0xff]
        %v405 = vld [vmem:[%s263 + $0x1d0] sm:$0xff]
        %v406 = vld [vmem:[%s263 + $0x1d8] sm:$0xff]
        %v407 = vld [vmem:[%s263 + $0x1e0] sm:$0xff]
        %v408 = vld [vmem:[%s263 + $0x1e8] sm:$0xff]
        %v409 = vld [vmem:[%s263 + $0x1f0] sm:$0xff]
        %v410 = vld [vmem:[%s263 + $0x1f8] sm:$0xff]
        %v411 = vld [vmem:[%s263 + $0x200] sm:$0xff]
        %v412 = vld [vmem:[%s263 + $0x208] sm:$0xff]
        %v413 = vld [vmem:[%s263 + $0x210] sm:$0xff]
        %v414 = vld [vmem:[%s263 + $0x218] sm:$0xff]
        %v415 = vld [vmem:[%s263 + $0x220] sm:$0xff]
        %v416 = vld [vmem:[%s263 + $0x228] sm:$0xff]
        %v417 = vld [vmem:[%s263 + $0x230] sm:$0xff]
        %v418 = vld [vmem:[%s263 + $0x238] sm:$0xff]
        %v419 = vld [vmem:[%s263 + $0x240] sm:$0xff]
        %v420 = vld [vmem:[%s263 + $0x248] sm:$0xff]
        %v421 = vld [vmem:[%s263 + $0x250] sm:$0xff]
        %v422 = vld [vmem:[%s263 + $0x258] sm:$0xff]
        %v423 = vld [vmem:[%s263 + $0x260] sm:$0xff]
        %v424 = vld [vmem:[%s263 + $0x268] sm:$0xff]
        %v425 = vld [vmem:[%s263 + $0x270] sm:$0xff]
        %v426 = vld [vmem:[%s263 + $0x278] sm:$0xff]
        %v427 = vld [vmem:[%s263 + $0x280] sm:$0xff]
        %v428 = vld [vmem:[%s263 + $0x288] sm:$0xff]
        %v429 = vld [vmem:[%s263 + $0x290] sm:$0xff]
        %v430 = vld [vmem:[%s263 + $0x298] sm:$0xff]
        %v431 = vld [vmem:[%s263 + $0x2a0] sm:$0xff]
        %v432 = vld [vmem:[%s263 + $0x2a8] sm:$0xff]
        %v433 = vld [vmem:[%s263 + $0x2b0] sm:$0xff]
        %v434 = vld [vmem:[%s263 + $0x2b8] sm:$0xff]
        %v435 = vld [vmem:[%s263 + $0x2c0] sm:$0xff]
        %v436 = vld [vmem:[%s263 + $0x2c8] sm:$0xff]
        %v437 = vld [vmem:[%s263 + $0x2d0] sm:$0xff]
        %v438 = vld [vmem:[%s263 + $0x2d8] sm:$0xff]
        %v439 = vld [vmem:[%s263 + $0x2e0] sm:$0xff]
        %v440 = vld [vmem:[%s263 + $0x2e8] sm:$0xff]
        %v441 = vld [vmem:[%s263 + $0x2f0] sm:$0xff]
        %v442 = vld [vmem:[%s263 + $0x2f8] sm:$0xff]
        %v443 = vld [vmem:[%s263 + $0x300] sm:$0xff]
        %v444 = vld [vmem:[%s263 + $0x308] sm:$0xff]
        %v445 = vld [vmem:[%s263 + $0x310] sm:$0xff]
        %v446 = vld [vmem:[%s263 + $0x318] sm:$0xff]
        %v447 = vld [vmem:[%s263 + $0x320] sm:$0xff]
        %v448 = vld [vmem:[%s263 + $0x328] sm:$0xff]
        %v449 = vld [vmem:[%s263 + $0x330] sm:$0xff]
        %v450 = vld [vmem:[%s263 + $0x338] sm:$0xff]
        %v451 = vld [vmem:[%s263 + $0x340] sm:$0xff]
        %v452 = vld [vmem:[%s263 + $0x348] sm:$0xff]
        %v453 = vld [vmem:[%s263 + $0x350] sm:$0xff]
        %v454 = vld [vmem:[%s263 + $0x358] sm:$0xff]
        %v455 = vld [vmem:[%s263 + $0x360] sm:$0xff]
        %v456 = vld [vmem:[%s263 + $0x368] sm:$0xff]
        %v457 = vld [vmem:[%s263 + $0x370] sm:$0xff]
        %v458 = vld [vmem:[%s263 + $0x378] sm:$0xff]
        %v459 = vld [vmem:[%s263 + $0x380] sm:$0xff]
        %v460 = vld [vmem:[%s263 + $0x388] sm:$0xff]
        %v461 = vld [vmem:[%s263 + $0x390] sm:$0xff]
        %v462 = vld [vmem:[%s263 + $0x398] sm:$0xff]
        %v463 = vld [vmem:[%s263 + $0x3a0] sm:$0xff]
        %v464 = vld [vmem:[%s263 + $0x3a8] sm:$0xff]
        %v465 = vld [vmem:[%s263 + $0x3b0] sm:$0xff]
        %v466 = vld [vmem:[%s263 + $0x3b8] sm:$0xff]
        %v467 = vld [vmem:[%s263 + $0x3c0] sm:$0xff]
        %v468 = vld [vmem:[%s263 + $0x3c8] sm:$0xff]
        %v469 = vld [vmem:[%s263 + $0x3d0] sm:$0xff]
        %v470 = vld [vmem:[%s263 + $0x3d8] sm:$0xff]
        %v471 = vld [vmem:[%s263 + $0x3e0] sm:$0xff]
        %v472 = vld [vmem:[%s263 + $0x3e8] sm:$0xff]
        %v473 = vld [vmem:[%s263 + $0x3f0] sm:$0xff]
        %v474 = vld [vmem:[%s263 + $0x3f8] sm:$0xff]
        %v475 = vld [vmem:[%s263 + $0x400] sm:$0xff]
        %v476 = vld [vmem:[%s263 + $0x408] sm:$0xff]
        %v477 = vld [vmem:[%s263 + $0x410] sm:$0xff]
        %v478 = vld [vmem:[%s263 + $0x418] sm:$0xff]
        %v479 = vld [vmem:[%s263 + $0x420] sm:$0xff]
        %v480 = vld [vmem:[%s263 + $0x428] sm:$0xff]
        %v481 = vld [vmem:[%s263 + $0x430] sm:$0xff]
        %v482 = vld [vmem:[%s263 + $0x438] sm:$0xff]
        %v483 = vld [vmem:[%s263 + $0x440] sm:$0xff]
        %v484 = vld [vmem:[%s263 + $0x448] sm:$0xff]
        %v485 = vld [vmem:[%s263 + $0x450] sm:$0xff]
        %v486 = vld [vmem:[%s263 + $0x458] sm:$0xff]
        %v487 = vld [vmem:[%s263 + $0x460] sm:$0xff]
        %v488 = vld [vmem:[%s263 + $0x468] sm:$0xff]
        %v489 = vld [vmem:[%s263 + $0x470] sm:$0xff]
        %v490 = vld [vmem:[%s263 + $0x478] sm:$0xff]
        %v491 = vld [vmem:[%s263 + $0x480] sm:$0xff]
        %v492 = vld [vmem:[%s263 + $0x488] sm:$0xff]
        %v493 = vld [vmem:[%s263 + $0x490] sm:$0xff]
        %v494 = vld [vmem:[%s263 + $0x498] sm:$0xff]
        %v495 = vld [vmem:[%s263 + $0x4a0] sm:$0xff]
        %v496 = vld [vmem:[%s263 + $0x4a8] sm:$0xff]
        %v497 = vld [vmem:[%s263 + $0x4b0] sm:$0xff]
        %v498 = vld [vmem:[%s263 + $0x4b8] sm:$0xff]
        %v499 = vld [vmem:[%s263 + $0x4c0] sm:$0xff]
        %v500 = vld [vmem:[%s263 + $0x4c8] sm:$0xff]
        %v501 = vld [vmem:[%s263 + $0x4d0] sm:$0xff]
        %v502 = vld [vmem:[%s263 + $0x4d8] sm:$0xff]
        %v503 = vld [vmem:[%s263 + $0x4e0] sm:$0xff]
        %v504 = vld [vmem:[%s263 + $0x4e8] sm:$0xff]
        %v505 = vld [vmem:[%s263 + $0x4f0] sm:$0xff]
        %v506 = vld [vmem:[%s263 + $0x4f8] sm:$0xff]
        %v507 = vld [vmem:[%s263 + $0x500] sm:$0xff]
        %v508 = vld [vmem:[%s263 + $0x508] sm:$0xff]
        %v509 = vld [vmem:[%s263 + $0x510] sm:$0xff]
        %v510 = vld [vmem:[%s263 + $0x518] sm:$0xff]
        %v511 = vld [vmem:[%s263 + $0x520] sm:$0xff]
        %v512 = vld [vmem:[%s263 + $0x528] sm:$0xff]
        %v513 = vld [vmem:[%s263 + $0x530] sm:$0xff]
        %v514 = vld [vmem:[%s263 + $0x538] sm:$0xff]
        %v515 = vld [vmem:[%s263 + $0x540] sm:$0xff]
        %v516 = vld [vmem:[%s263 + $0x548] sm:$0xff]
        %v517 = vld [vmem:[%s263 + $0x550] sm:$0xff]
        %v518 = vld [vmem:[%s263 + $0x558] sm:$0xff]
        %v519 = vld [vmem:[%s263 + $0x560] sm:$0xff]
        %v520 = vld [vmem:[%s263 + $0x568] sm:$0xff]
        %v521 = vld [vmem:[%s263 + $0x570] sm:$0xff]
        %v522 = vld [vmem:[%s263 + $0x578] sm:$0xff]
        %v523 = vld [vmem:[%s263 + $0x580] sm:$0xff]
        %v524 = vld [vmem:[%s263 + $0x588] sm:$0xff]
        %v525 = vld [vmem:[%s263 + $0x590] sm:$0xff]
        %v526 = vld [vmem:[%s263 + $0x598] sm:$0xff]
        %v527 = vld [vmem:[%s263 + $0x5a0] sm:$0xff]
        %v528 = vld [vmem:[%s263 + $0x5a8] sm:$0xff]
        %v529 = vld [vmem:[%s263 + $0x5b0] sm:$0xff]
        %v530 = vld [vmem:[%s263 + $0x5b8] sm:$0xff]
        %v531 = vld [vmem:[%s263 + $0x5c0] sm:$0xff]
        %v532 = vld [vmem:[%s263 + $0x5c8] sm:$0xff]
        %v533 = vld [vmem:[%s263 + $0x5d0] sm:$0xff]
        %v534 = vld [vmem:[%s263 + $0x5d8] sm:$0xff]
        %v535 = vld [vmem:[%s263 + $0x5e0] sm:$0xff]
        %v536 = vld [vmem:[%s263 + $0x5e8] sm:$0xff]
        %v537 = vld [vmem:[%s263 + $0x5f0] sm:$0xff]
        %v538 = vld [vmem:[%s263 + $0x5f8] sm:$0xff]
        %v539 = vld [vmem:[%s263 + $0x600] sm:$0xff]
        %v540 = vld [vmem:[%s263 + $0x608] sm:$0xff]
        %v541 = vld [vmem:[%s263 + $0x610] sm:$0xff]
        %v542 = vld [vmem:[%s263 + $0x618] sm:$0xff]
        %v543 = vld [vmem:[%s263 + $0x620] sm:$0xff]
        %v544 = vld [vmem:[%s263 + $0x628] sm:$0xff]
        %v545 = vld [vmem:[%s263 + $0x630] sm:$0xff]
        %v546 = vld [vmem:[%s263 + $0x638] sm:$0xff]
        %v547 = vld [vmem:[%s263 + $0x640] sm:$0xff]
        %v548 = vld [vmem:[%s263 + $0x648] sm:$0xff]
        %v549 = vld [vmem:[%s263 + $0x650] sm:$0xff]
        %v550 = vld [vmem:[%s263 + $0x658] sm:$0xff]
        %v551 = vld [vmem:[%s263 + $0x660] sm:$0xff]
        %v552 = vld [vmem:[%s263 + $0x668] sm:$0xff]
        %v553 = vld [vmem:[%s263 + $0x670] sm:$0xff]
        %v554 = vld [vmem:[%s263 + $0x678] sm:$0xff]
        %v555 = vld [vmem:[%s263 + $0x680] sm:$0xff]
        %v556 = vld [vmem:[%s263 + $0x688] sm:$0xff]
        %v557 = vld [vmem:[%s263 + $0x690] sm:$0xff]
        %v558 = vld [vmem:[%s263 + $0x698] sm:$0xff]
        %v559 = vld [vmem:[%s263 + $0x6a0] sm:$0xff]
        %v560 = vld [vmem:[%s263 + $0x6a8] sm:$0xff]
        %v561 = vld [vmem:[%s263 + $0x6b0] sm:$0xff]
        %v562 = vld [vmem:[%s263 + $0x6b8] sm:$0xff]
        %v563 = vld [vmem:[%s263 + $0x6c0] sm:$0xff]
        %v564 = vld [vmem:[%s263 + $0x6c8] sm:$0xff]
        %v565 = vld [vmem:[%s263 + $0x6d0] sm:$0xff]
        %v566 = vld [vmem:[%s263 + $0x6d8] sm:$0xff]
        %v567 = vld [vmem:[%s263 + $0x6e0] sm:$0xff]
        %v568 = vld [vmem:[%s263 + $0x6e8] sm:$0xff]
        %v569 = vld [vmem:[%s263 + $0x6f0] sm:$0xff]
        %v570 = vld [vmem:[%s263 + $0x6f8] sm:$0xff]
        %v571 = vld [vmem:[%s263 + $0x700] sm:$0xff]
        %v572 = vld [vmem:[%s263 + $0x708] sm:$0xff]
        %v573 = vld [vmem:[%s263 + $0x710] sm:$0xff]
        %v574 = vld [vmem:[%s263 + $0x718] sm:$0xff]
        %v575 = vld [vmem:[%s263 + $0x720] sm:$0xff]
        %v576 = vld [vmem:[%s263 + $0x728] sm:$0xff]
        %v577 = vld [vmem:[%s263 + $0x730] sm:$0xff]
        %v578 = vld [vmem:[%s263 + $0x738] sm:$0xff]
        %v579 = vld [vmem:[%s263 + $0x740] sm:$0xff]
        %v580 = vld [vmem:[%s263 + $0x748] sm:$0xff]
        %v581 = vld [vmem:[%s263 + $0x750] sm:$0xff]
        %v582 = vld [vmem:[%s263 + $0x758] sm:$0xff]
        %v583 = vld [vmem:[%s263 + $0x760] sm:$0xff]
        %v584 = vld [vmem:[%s263 + $0x768] sm:$0xff]
        %v585 = vld [vmem:[%s263 + $0x770] sm:$0xff]
        %v586 = vld [vmem:[%s263 + $0x778] sm:$0xff]
        %v587 = vld [vmem:[%s263 + $0x780] sm:$0xff]
        %v588 = vld [vmem:[%s263 + $0x788] sm:$0xff]
        %v589 = vld [vmem:[%s263 + $0x790] sm:$0xff]
        %v590 = vld [vmem:[%s263 + $0x798] sm:$0xff]
        %v591 = vld [vmem:[%s263 + $0x7a0] sm:$0xff]
        %v592 = vld [vmem:[%s263 + $0x7a8] sm:$0xff]
        %v593 = vld [vmem:[%s263 + $0x7b0] sm:$0xff]
        %v594 = vld [vmem:[%s263 + $0x7b8] sm:$0xff]
        %v595 = vld [vmem:[%s263 + $0x7c0] sm:$0xff]
        %v596 = vld [vmem:[%s263 + $0x7c8] sm:$0xff]
        %v597 = vld [vmem:[%s263 + $0x7d0] sm:$0xff]
        %v598 = vld [vmem:[%s263 + $0x7d8] sm:$0xff]
        %v599 = vld [vmem:[%s263 + $0x7e0] sm:$0xff]
        %v600 = vld [vmem:[%s263 + $0x7e8] sm:$0xff]
        %v601 = vld [vmem:[%s263 + $0x7f0] sm:$0xff]
        %v602 = vld [vmem:[%s263 + $0x7f8] sm:$0xff]
        %v603 = vld [vmem:[%s263 + $0x800] sm:$0xff]
        %v604 = vld [vmem:[%s263 + $0x808] sm:$0xff]
        %v605 = vld [vmem:[%s263 + $0x810] sm:$0xff]
        %v606 = vld [vmem:[%s263 + $0x818] sm:$0xff]
        %v607 = vld [vmem:[%s263 + $0x820] sm:$0xff]
        %v608 = vld [vmem:[%s263 + $0x828] sm:$0xff]
        %v609 = vld [vmem:[%s263 + $0x830] sm:$0xff]
        %v610 = vld [vmem:[%s263 + $0x838] sm:$0xff]
        %v611 = vld [vmem:[%s263 + $0x840] sm:$0xff]
        %v612 = vld [vmem:[%s263 + $0x848] sm:$0xff]
        %v613 = vld [vmem:[%s263 + $0x850] sm:$0xff]
        %v614 = vld [vmem:[%s263 + $0x858] sm:$0xff]
        %v615 = vld [vmem:[%s263 + $0x860] sm:$0xff]
        %v616 = vld [vmem:[%s263 + $0x868] sm:$0xff]
        %v617 = vld [vmem:[%s263 + $0x870] sm:$0xff]
        %v618 = vld [vmem:[%s263 + $0x878] sm:$0xff]
        %v619 = vld [vmem:[%s263 + $0x880] sm:$0xff]
        %v620 = vld [vmem:[%s263 + $0x888] sm:$0xff]
        %v621 = vld [vmem:[%s263 + $0x890] sm:$0xff]
        %v622 = vld [vmem:[%s263 + $0x898] sm:$0xff]
        %v623 = vld [vmem:[%s263 + $0x8a0] sm:$0xff]
        %v624 = vld [vmem:[%s263 + $0x8a8] sm:$0xff]
        %v625 = vld [vmem:[%s263 + $0x8b0] sm:$0xff]
        %v626 = vld [vmem:[%s263 + $0x8b8] sm:$0xff]
        %v627 = vld [vmem:[%s263 + $0x8c0] sm:$0xff]
        %v628 = vld [vmem:[%s263 + $0x8c8] sm:$0xff]
        %v629 = vld [vmem:[%s263 + $0x8d0] sm:$0xff]
        %v630 = vld [vmem:[%s263 + $0x8d8] sm:$0xff]
        %v631 = vld [vmem:[%s263 + $0x8e0] sm:$0xff]
        %v632 = vld [vmem:[%s263 + $0x8e8] sm:$0xff]
        %v633 = vld [vmem:[%s263 + $0x8f0] sm:$0xff]
        %v634 = vld [vmem:[%s263 + $0x8f8] sm:$0xff]
        %v644 = vunpack.c.l.b16 %v338
        %v645 = vunpack.c.h.b16 %v338
        %v646 = vunpack.c.l.b16 %v339
        %v647 = vunpack.c.h.b16 %v339
        %v648 = vunpack.c.l.b16 %v340
        %v649 = vunpack.c.h.b16 %v340
        %v650 = vunpack.c.l.b16 %v341
        %v651 = vunpack.c.h.b16 %v341
        %v652 = vunpack.c.l.b16 %v342
        %v653 = vunpack.c.h.b16 %v342
        %v654 = vunpack.c.l.b16 %v343
        %v655 = vunpack.c.h.b16 %v343
        %v656 = vunpack.c.l.b16 %v344
        %v657 = vunpack.c.h.b16 %v344
        %v658 = vunpack.c.l.b16 %v345
        %v659 = vunpack.c.h.b16 %v345
        %v660 = vunpack.c.l.b16 %v346
        %v661 = vunpack.c.h.b16 %v346
        %v662 = vpack.c.b16 %v644, %v644
        %v663 = vpack.c.b16 %v645, %v645
        %v664 = vpack.c.b16 %v646, %v646
        %v665 = vpack.c.b16 %v647, %v647
        %v666 = vpack.c.b16 %v648, %v648
        %v667 = vpack.c.b16 %v649, %v649
        %v668 = vpack.c.b16 %v650, %v650
        %v669 = vpack.c.b16 %v651, %v651
        %v670 = vpack.c.b16 %v652, %v652
        %v671 = vpack.c.b16 %v653, %v653
        %v672 = vpack.c.b16 %v654, %v654
        %v673 = vpack.c.b16 %v655, %v655
        %v674 = vpack.c.b16 %v656, %v656
        %v675 = vpack.c.b16 %v657, %v657
        %v676 = vpack.c.b16 %v658, %v658
        %v677 = vpack.c.b16 %v659, %v659
        %v678 = vpack.c.b16 %v660, %v660
        %v679 = vpack.c.b16 %v661, %v661
        %v986 = vunpack.c.l.b16 %v347
        %v987 = vunpack.c.h.b16 %v347
        %v988 = vunpack.c.l.b16 %v348
        %v989 = vunpack.c.h.b16 %v348
        %v990 = vunpack.c.l.b16 %v349
        %v991 = vunpack.c.h.b16 %v349
        %v992 = vunpack.c.l.b16 %v350
        %v993 = vunpack.c.h.b16 %v350
        %v994 = vunpack.c.l.b16 %v351
        %v995 = vunpack.c.h.b16 %v351
        %v996 = vunpack.c.l.b16 %v352
        %v997 = vunpack.c.h.b16 %v352
        %v998 = vunpack.c.l.b16 %v353
        %v999 = vunpack.c.h.b16 %v353
        %v1000 = vunpack.c.l.b16 %v354
        %v1001 = vunpack.c.h.b16 %v354
        %v1002 = vunpack.c.l.b16 %v355
        %v1003 = vunpack.c.h.b16 %v355
        %v1004 = vunpack.c.l.b16 %v356
        %v1005 = vunpack.c.h.b16 %v356
        %v1006 = vunpack.c.l.b16 %v357
        %v1007 = vunpack.c.h.b16 %v357
        %v1008 = vunpack.c.l.b16 %v358
        %v1009 = vunpack.c.h.b16 %v358
        %v1010 = vunpack.c.l.b16 %v359
        %v1011 = vunpack.c.h.b16 %v359
        %v1012 = vunpack.c.l.b16 %v360
        %v1013 = vunpack.c.h.b16 %v360
        %v1014 = vunpack.c.l.b16 %v361
        %v1015 = vunpack.c.h.b16 %v361
        %v1016 = vunpack.c.l.b16 %v362
        %v1017 = vunpack.c.h.b16 %v362
        %v1018 = vunpack.c.l.b16 %v363
        %v1019 = vunpack.c.h.b16 %v363
        %v1020 = vunpack.c.l.b16 %v364
        %v1021 = vunpack.c.h.b16 %v364
        %v1022 = vunpack.c.l.b16 %v365
        %v1023 = vunpack.c.h.b16 %v365
        %v1024 = vunpack.c.l.b16 %v366
        %v1025 = vunpack.c.h.b16 %v366
        %v1026 = vunpack.c.l.b16 %v367
        %v1027 = vunpack.c.h.b16 %v367
        %v1028 = vunpack.c.l.b16 %v368
        %v1029 = vunpack.c.h.b16 %v368
        %v1030 = vunpack.c.l.b16 %v369
        %v1031 = vunpack.c.h.b16 %v369
        %v1032 = vunpack.c.l.b16 %v370
        %v1033 = vunpack.c.h.b16 %v370
        %v1034 = vunpack.c.l.b16 %v371
        %v1035 = vunpack.c.h.b16 %v371
        %v1036 = vunpack.c.l.b16 %v372
        %v1037 = vunpack.c.h.b16 %v372
        %v1038 = vunpack.c.l.b16 %v373
        %v1039 = vunpack.c.h.b16 %v373
        %v1040 = vunpack.c.l.b16 %v374
        %v1041 = vunpack.c.h.b16 %v374
        %v1042 = vunpack.c.l.b16 %v375
        %v1043 = vunpack.c.h.b16 %v375
        %v1044 = vunpack.c.l.b16 %v376
        %v1045 = vunpack.c.h.b16 %v376
        %v1046 = vunpack.c.l.b16 %v377
        %v1047 = vunpack.c.h.b16 %v377
        %v1048 = vunpack.c.l.b16 %v378
        %v1049 = vunpack.c.h.b16 %v378
        %v1050 = vunpack.c.l.b16 %v379
        %v1051 = vunpack.c.h.b16 %v379
        %v1052 = vunpack.c.l.b16 %v380
        %v1053 = vunpack.c.h.b16 %v380
        %v1054 = vunpack.c.l.b16 %v381
        %v1055 = vunpack.c.h.b16 %v381
        %v1056 = vunpack.c.l.b16 %v382
        %v1057 = vunpack.c.h.b16 %v382
        %v1058 = vunpack.c.l.b16 %v383
        %v1059 = vunpack.c.h.b16 %v383
        %v1060 = vunpack.c.l.b16 %v384
        %v1061 = vunpack.c.h.b16 %v384
        %v1062 = vunpack.c.l.b16 %v385
        %v1063 = vunpack.c.h.b16 %v385
        %v1064 = vunpack.c.l.b16 %v386
        %v1065 = vunpack.c.h.b16 %v386
        %v1066 = vunpack.c.l.b16 %v387
        %v1067 = vunpack.c.h.b16 %v387
        %v1068 = vunpack.c.l.b16 %v388
        %v1069 = vunpack.c.h.b16 %v388
        %v1070 = vunpack.c.l.b16 %v389
        %v1071 = vunpack.c.h.b16 %v389
        %v1072 = vunpack.c.l.b16 %v390
        %v1073 = vunpack.c.h.b16 %v390
        %v1074 = vunpack.c.l.b16 %v391
        %v1075 = vunpack.c.h.b16 %v391
        %v1076 = vunpack.c.l.b16 %v392
        %v1077 = vunpack.c.h.b16 %v392
        %v1078 = vunpack.c.l.b16 %v393
        %v1079 = vunpack.c.h.b16 %v393
        %v1080 = vunpack.c.l.b16 %v394
        %v1081 = vunpack.c.h.b16 %v394
        %v1082 = vunpack.c.l.b16 %v395
        %v1083 = vunpack.c.h.b16 %v395
        %v1084 = vunpack.c.l.b16 %v396
        %v1085 = vunpack.c.h.b16 %v396
        %v1086 = vunpack.c.l.b16 %v397
        %v1087 = vunpack.c.h.b16 %v397
        %v1088 = vunpack.c.l.b16 %v398
        %v1089 = vunpack.c.h.b16 %v398
        %v1090 = vunpack.c.l.b16 %v399
        %v1091 = vunpack.c.h.b16 %v399
        %v1092 = vunpack.c.l.b16 %v400
        %v1093 = vunpack.c.h.b16 %v400
        %v1094 = vunpack.c.l.b16 %v401
        %v1095 = vunpack.c.h.b16 %v401
        %v1096 = vunpack.c.l.b16 %v402
        %v1097 = vunpack.c.h.b16 %v402
        %v1098 = vunpack.c.l.b16 %v403
        %v1099 = vunpack.c.h.b16 %v403
        %v1100 = vunpack.c.l.b16 %v404
        %v1101 = vunpack.c.h.b16 %v404
        %v1102 = vunpack.c.l.b16 %v405
        %v1103 = vunpack.c.h.b16 %v405
        %v1104 = vunpack.c.l.b16 %v406
        %v1105 = vunpack.c.h.b16 %v406
        %v1106 = vunpack.c.l.b16 %v407
        %v1107 = vunpack.c.h.b16 %v407
        %v1108 = vunpack.c.l.b16 %v408
        %v1109 = vunpack.c.h.b16 %v408
        %v1110 = vunpack.c.l.b16 %v409
        %v1111 = vunpack.c.h.b16 %v409
        %v1112 = vunpack.c.l.b16 %v410
        %v1113 = vunpack.c.h.b16 %v410
        %v1114 = vunpack.c.l.b16 %v411
        %v1115 = vunpack.c.h.b16 %v411
        %v1116 = vunpack.c.l.b16 %v412
        %v1117 = vunpack.c.h.b16 %v412
        %v1118 = vunpack.c.l.b16 %v413
        %v1119 = vunpack.c.h.b16 %v413
        %v1120 = vunpack.c.l.b16 %v414
        %v1121 = vunpack.c.h.b16 %v414
        %v1122 = vunpack.c.l.b16 %v415
        %v1123 = vunpack.c.h.b16 %v415
        %v1124 = vunpack.c.l.b16 %v416
        %v1125 = vunpack.c.h.b16 %v416
        %v1126 = vunpack.c.l.b16 %v417
        %v1127 = vunpack.c.h.b16 %v417
        %v1128 = vunpack.c.l.b16 %v418
        %v1129 = vunpack.c.h.b16 %v418
        %v1130 = vunpack.c.l.b16 %v419
        %v1131 = vunpack.c.h.b16 %v419
        %v1132 = vunpack.c.l.b16 %v420
        %v1133 = vunpack.c.h.b16 %v420
        %v1134 = vunpack.c.l.b16 %v421
        %v1135 = vunpack.c.h.b16 %v421
        %v1136 = vunpack.c.l.b16 %v422
        %v1137 = vunpack.c.h.b16 %v422
        %v1138 = vunpack.c.l.b16 %v423
        %v1139 = vunpack.c.h.b16 %v423
        %v1140 = vunpack.c.l.b16 %v424
        %v1141 = vunpack.c.h.b16 %v424
        %v1142 = vunpack.c.l.b16 %v425
        %v1143 = vunpack.c.h.b16 %v425
        %v1144 = vunpack.c.l.b16 %v426
        %v1145 = vunpack.c.h.b16 %v426
        %v1146 = vunpack.c.l.b16 %v427
        %v1147 = vunpack.c.h.b16 %v427
        %v1148 = vunpack.c.l.b16 %v428
        %v1149 = vunpack.c.h.b16 %v428
        %v1150 = vunpack.c.l.b16 %v429
        %v1151 = vunpack.c.h.b16 %v429
        %v1152 = vunpack.c.l.b16 %v430
        %v1153 = vunpack.c.h.b16 %v430
        %v1154 = vunpack.c.l.b16 %v431
        %v1155 = vunpack.c.h.b16 %v431
        %v1156 = vunpack.c.l.b16 %v432
        %v1157 = vunpack.c.h.b16 %v432
        %v1158 = vunpack.c.l.b16 %v433
        %v1159 = vunpack.c.h.b16 %v433
        %v1160 = vunpack.c.l.b16 %v434
        %v1161 = vunpack.c.h.b16 %v434
        %v1162 = vunpack.c.l.b16 %v435
        %v1163 = vunpack.c.h.b16 %v435
        %v1164 = vunpack.c.l.b16 %v436
        %v1165 = vunpack.c.h.b16 %v436
        %v1166 = vunpack.c.l.b16 %v437
        %v1167 = vunpack.c.h.b16 %v437
        %v1168 = vunpack.c.l.b16 %v438
        %v1169 = vunpack.c.h.b16 %v438
        %v1170 = vunpack.c.l.b16 %v439
        %v1171 = vunpack.c.h.b16 %v439
        %v1172 = vunpack.c.l.b16 %v440
        %v1173 = vunpack.c.h.b16 %v440
        %v1174 = vunpack.c.l.b16 %v441
        %v1175 = vunpack.c.h.b16 %v441
        %v1176 = vunpack.c.l.b16 %v442
        %v1177 = vunpack.c.h.b16 %v442
        %v1178 = vunpack.c.l.b16 %v443
        %v1179 = vunpack.c.h.b16 %v443
        %v1180 = vunpack.c.l.b16 %v444
        %v1181 = vunpack.c.h.b16 %v444
        %v1182 = vunpack.c.l.b16 %v445
        %v1183 = vunpack.c.h.b16 %v445
        %v1184 = vunpack.c.l.b16 %v446
        %v1185 = vunpack.c.h.b16 %v446
        %v1186 = vunpack.c.l.b16 %v447
        %v1187 = vunpack.c.h.b16 %v447
        %v1188 = vunpack.c.l.b16 %v448
        %v1189 = vunpack.c.h.b16 %v448
        %v1190 = vunpack.c.l.b16 %v449
        %v1191 = vunpack.c.h.b16 %v449
        %v1192 = vunpack.c.l.b16 %v450
        %v1193 = vunpack.c.h.b16 %v450
        %v1194 = vunpack.c.l.b16 %v451
        %v1195 = vunpack.c.h.b16 %v451
        %v1196 = vunpack.c.l.b16 %v452
        %v1197 = vunpack.c.h.b16 %v452
        %v1198 = vunpack.c.l.b16 %v453
        %v1199 = vunpack.c.h.b16 %v453
        %v1200 = vunpack.c.l.b16 %v454
        %v1201 = vunpack.c.h.b16 %v454
        %v1202 = vunpack.c.l.b16 %v455
        %v1203 = vunpack.c.h.b16 %v455
        %v1204 = vunpack.c.l.b16 %v456
        %v1205 = vunpack.c.h.b16 %v456
        %v1206 = vunpack.c.l.b16 %v457
        %v1207 = vunpack.c.h.b16 %v457
        %v1208 = vunpack.c.l.b16 %v458
        %v1209 = vunpack.c.h.b16 %v458
        %v1210 = vunpack.c.l.b16 %v459
        %v1211 = vunpack.c.h.b16 %v459
        %v1212 = vunpack.c.l.b16 %v460
        %v1213 = vunpack.c.h.b16 %v460
        %v1214 = vunpack.c.l.b16 %v461
        %v1215 = vunpack.c.h.b16 %v461
        %v1216 = vunpack.c.l.b16 %v462
        %v1217 = vunpack.c.h.b16 %v462
        %v1218 = vunpack.c.l.b16 %v463
        %v1219 = vunpack.c.h.b16 %v463
        %v1220 = vunpack.c.l.b16 %v464
        %v1221 = vunpack.c.h.b16 %v464
        %v1222 = vunpack.c.l.b16 %v465
        %v1223 = vunpack.c.h.b16 %v465
        %v1224 = vunpack.c.l.b16 %v466
        %v1225 = vunpack.c.h.b16 %v466
        %v1226 = vunpack.c.l.b16 %v467
        %v1227 = vunpack.c.h.b16 %v467
        %v1228 = vunpack.c.l.b16 %v468
        %v1229 = vunpack.c.h.b16 %v468
        %v1230 = vunpack.c.l.b16 %v469
        %v1231 = vunpack.c.h.b16 %v469
        %v1232 = vunpack.c.l.b16 %v470
        %v1233 = vunpack.c.h.b16 %v470
        %v1234 = vunpack.c.l.b16 %v471
        %v1235 = vunpack.c.h.b16 %v471
        %v1236 = vunpack.c.l.b16 %v472
        %v1237 = vunpack.c.h.b16 %v472
        %v1238 = vunpack.c.l.b16 %v473
        %v1239 = vunpack.c.h.b16 %v473
        %v1240 = vunpack.c.l.b16 %v474
        %v1241 = vunpack.c.h.b16 %v474
        %v1242 = vunpack.c.l.b16 %v475
        %v1243 = vunpack.c.h.b16 %v475
        %v1244 = vunpack.c.l.b16 %v476
        %v1245 = vunpack.c.h.b16 %v476
        %v1246 = vunpack.c.l.b16 %v477
        %v1247 = vunpack.c.h.b16 %v477
        %v1248 = vunpack.c.l.b16 %v478
        %v1249 = vunpack.c.h.b16 %v478
        %v1250 = vunpack.c.l.b16 %v479
        %v1251 = vunpack.c.h.b16 %v479
        %v1252 = vunpack.c.l.b16 %v480
        %v1253 = vunpack.c.h.b16 %v480
        %v1254 = vunpack.c.l.b16 %v481
        %v1255 = vunpack.c.h.b16 %v481
        %v1256 = vunpack.c.l.b16 %v482
        %v1257 = vunpack.c.h.b16 %v482
        %v1258 = vunpack.c.l.b16 %v483
        %v1259 = vunpack.c.h.b16 %v483
        %v1260 = vunpack.c.l.b16 %v484
        %v1261 = vunpack.c.h.b16 %v484
        %v1262 = vunpack.c.l.b16 %v485
        %v1263 = vunpack.c.h.b16 %v485
        %v1264 = vunpack.c.l.b16 %v486
        %v1265 = vunpack.c.h.b16 %v486
        %v1266 = vunpack.c.l.b16 %v487
        %v1267 = vunpack.c.h.b16 %v487
        %v1268 = vunpack.c.l.b16 %v488
        %v1269 = vunpack.c.h.b16 %v488
        %v1270 = vunpack.c.l.b16 %v489
        %v1271 = vunpack.c.h.b16 %v489
        %v1272 = vunpack.c.l.b16 %v490
        %v1273 = vunpack.c.h.b16 %v490
        %v1274 = vunpack.c.l.b16 %v491
        %v1275 = vunpack.c.h.b16 %v491
        %v1276 = vunpack.c.l.b16 %v492
        %v1277 = vunpack.c.h.b16 %v492
        %v1278 = vunpack.c.l.b16 %v493
        %v1279 = vunpack.c.h.b16 %v493
        %v1280 = vunpack.c.l.b16 %v494
        %v1281 = vunpack.c.h.b16 %v494
        %v1282 = vunpack.c.l.b16 %v495
        %v1283 = vunpack.c.h.b16 %v495
        %v1284 = vunpack.c.l.b16 %v496
        %v1285 = vunpack.c.h.b16 %v496
        %v1286 = vunpack.c.l.b16 %v497
        %v1287 = vunpack.c.h.b16 %v497
        %v1288 = vunpack.c.l.b16 %v498
        %v1289 = vunpack.c.h.b16 %v498
        %v1290 = vunpack.c.l.b16 %v499
        %v1291 = vunpack.c.h.b16 %v499
        %v1292 = vunpack.c.l.b16 %v500
        %v1293 = vunpack.c.h.b16 %v500
        %v1294 = vunpack.c.l.b16 %v501
        %v1295 = vunpack.c.h.b16 %v501
        %v1296 = vunpack.c.l.b16 %v502
        %v1297 = vunpack.c.h.b16 %v502
        %v1298 = vunpack.c.l.b16 %v503
        %v1299 = vunpack.c.h.b16 %v503
        %v1300 = vunpack.c.l.b16 %v504
        %v1301 = vunpack.c.h.b16 %v504
        %v1302 = vunpack.c.l.b16 %v505
        %v1303 = vunpack.c.h.b16 %v505
        %v1304 = vunpack.c.l.b16 %v506
        %v1305 = vunpack.c.h.b16 %v506
        %v1306 = vunpack.c.l.b16 %v507
        %v1307 = vunpack.c.h.b16 %v507
        %v1308 = vunpack.c.l.b16 %v508
        %v1309 = vunpack.c.h.b16 %v508
        %v1310 = vunpack.c.l.b16 %v509
        %v1311 = vunpack.c.h.b16 %v509
        %v1312 = vunpack.c.l.b16 %v510
        %v1313 = vunpack.c.h.b16 %v510
        %v1314 = vunpack.c.l.b16 %v511
        %v1315 = vunpack.c.h.b16 %v511
        %v1316 = vunpack.c.l.b16 %v512
        %v1317 = vunpack.c.h.b16 %v512
        %v1318 = vunpack.c.l.b16 %v513
        %v1319 = vunpack.c.h.b16 %v513
        %v1320 = vunpack.c.l.b16 %v514
        %v1321 = vunpack.c.h.b16 %v514
        %v1322 = vunpack.c.l.b16 %v515
        %v1323 = vunpack.c.h.b16 %v515
        %v1324 = vunpack.c.l.b16 %v516
        %v1325 = vunpack.c.h.b16 %v516
        %v1326 = vunpack.c.l.b16 %v517
        %v1327 = vunpack.c.h.b16 %v517
        %v1328 = vunpack.c.l.b16 %v518
        %v1329 = vunpack.c.h.b16 %v518
        %v1330 = vunpack.c.l.b16 %v519
        %v1331 = vunpack.c.h.b16 %v519
        %v1332 = vunpack.c.l.b16 %v520
        %v1333 = vunpack.c.h.b16 %v520
        %v1334 = vunpack.c.l.b16 %v521
        %v1335 = vunpack.c.h.b16 %v521
        %v1336 = vunpack.c.l.b16 %v522
        %v1337 = vunpack.c.h.b16 %v522
        %v1338 = vunpack.c.l.b16 %v523
        %v1339 = vunpack.c.h.b16 %v523
        %v1340 = vunpack.c.l.b16 %v524
        %v1341 = vunpack.c.h.b16 %v524
        %v1342 = vunpack.c.l.b16 %v525
        %v1343 = vunpack.c.h.b16 %v525
        %v1344 = vunpack.c.l.b16 %v526
        %v1345 = vunpack.c.h.b16 %v526
        %v1346 = vunpack.c.l.b16 %v527
        %v1347 = vunpack.c.h.b16 %v527
        %v1348 = vunpack.c.l.b16 %v528
        %v1349 = vunpack.c.h.b16 %v528
        %v1350 = vunpack.c.l.b16 %v529
        %v1351 = vunpack.c.h.b16 %v529
        %v1352 = vunpack.c.l.b16 %v530
        %v1353 = vunpack.c.h.b16 %v530
        %v1354 = vunpack.c.l.b16 %v531
        %v1355 = vunpack.c.h.b16 %v531
        %v1356 = vunpack.c.l.b16 %v532
        %v1357 = vunpack.c.h.b16 %v532
        %v1358 = vunpack.c.l.b16 %v533
        %v1359 = vunpack.c.h.b16 %v533
        %v1360 = vunpack.c.l.b16 %v534
        %v1361 = vunpack.c.h.b16 %v534
        %v1362 = vunpack.c.l.b16 %v535
        %v1363 = vunpack.c.h.b16 %v535
        %v1364 = vunpack.c.l.b16 %v536
        %v1365 = vunpack.c.h.b16 %v536
        %v1366 = vunpack.c.l.b16 %v537
        %v1367 = vunpack.c.h.b16 %v537
        %v1368 = vunpack.c.l.b16 %v538
        %v1369 = vunpack.c.h.b16 %v538
        %v1370 = vunpack.c.l.b16 %v539
        %v1371 = vunpack.c.h.b16 %v539
        %v1372 = vunpack.c.l.b16 %v540
        %v1373 = vunpack.c.h.b16 %v540
        %v1374 = vunpack.c.l.b16 %v541
        %v1375 = vunpack.c.h.b16 %v541
        %v1376 = vunpack.c.l.b16 %v542
        %v1377 = vunpack.c.h.b16 %v542
        %v1378 = vunpack.c.l.b16 %v543
        %v1379 = vunpack.c.h.b16 %v543
        %v1380 = vunpack.c.l.b16 %v544
        %v1381 = vunpack.c.h.b16 %v544
        %v1382 = vunpack.c.l.b16 %v545
        %v1383 = vunpack.c.h.b16 %v545
        %v1384 = vunpack.c.l.b16 %v546
        %v1385 = vunpack.c.h.b16 %v546
        %v1386 = vunpack.c.l.b16 %v547
        %v1387 = vunpack.c.h.b16 %v547
        %v1388 = vunpack.c.l.b16 %v548
        %v1389 = vunpack.c.h.b16 %v548
        %v1390 = vunpack.c.l.b16 %v549
        %v1391 = vunpack.c.h.b16 %v549
        %v1392 = vunpack.c.l.b16 %v550
        %v1393 = vunpack.c.h.b16 %v550
        %v1394 = vunpack.c.l.b16 %v551
        %v1395 = vunpack.c.h.b16 %v551
        %v1396 = vunpack.c.l.b16 %v552
        %v1397 = vunpack.c.h.b16 %v552
        %v1398 = vunpack.c.l.b16 %v553
        %v1399 = vunpack.c.h.b16 %v553
        %v1400 = vunpack.c.l.b16 %v554
        %v1401 = vunpack.c.h.b16 %v554
        %v1402 = vunpack.c.l.b16 %v555
        %v1403 = vunpack.c.h.b16 %v555
        %v1404 = vunpack.c.l.b16 %v556
        %v1405 = vunpack.c.h.b16 %v556
        %v1406 = vunpack.c.l.b16 %v557
        %v1407 = vunpack.c.h.b16 %v557
        %v1408 = vunpack.c.l.b16 %v558
        %v1409 = vunpack.c.h.b16 %v558
        %v1410 = vunpack.c.l.b16 %v559
        %v1411 = vunpack.c.h.b16 %v559
        %v1412 = vunpack.c.l.b16 %v560
        %v1413 = vunpack.c.h.b16 %v560
        %v1414 = vunpack.c.l.b16 %v561
        %v1415 = vunpack.c.h.b16 %v561
        %v1416 = vunpack.c.l.b16 %v562
        %v1417 = vunpack.c.h.b16 %v562
        %v1418 = vunpack.c.l.b16 %v563
        %v1419 = vunpack.c.h.b16 %v563
        %v1420 = vunpack.c.l.b16 %v564
        %v1421 = vunpack.c.h.b16 %v564
        %v1422 = vunpack.c.l.b16 %v565
        %v1423 = vunpack.c.h.b16 %v565
        %v1424 = vunpack.c.l.b16 %v566
        %v1425 = vunpack.c.h.b16 %v566
        %v1426 = vunpack.c.l.b16 %v567
        %v1427 = vunpack.c.h.b16 %v567
        %v1428 = vunpack.c.l.b16 %v568
        %v1429 = vunpack.c.h.b16 %v568
        %v1430 = vunpack.c.l.b16 %v569
        %v1431 = vunpack.c.h.b16 %v569
        %v1432 = vunpack.c.l.b16 %v570
        %v1433 = vunpack.c.h.b16 %v570
        %v1434 = vunpack.c.l.b16 %v571
        %v1435 = vunpack.c.h.b16 %v571
        %v1436 = vunpack.c.l.b16 %v572
        %v1437 = vunpack.c.h.b16 %v572
        %v1438 = vunpack.c.l.b16 %v573
        %v1439 = vunpack.c.h.b16 %v573
        %v1440 = vunpack.c.l.b16 %v574
        %v1441 = vunpack.c.h.b16 %v574
        %v1442 = vunpack.c.l.b16 %v575
        %v1443 = vunpack.c.h.b16 %v575
        %v1444 = vunpack.c.l.b16 %v576
        %v1445 = vunpack.c.h.b16 %v576
        %v1446 = vunpack.c.l.b16 %v577
        %v1447 = vunpack.c.h.b16 %v577
        %v1448 = vunpack.c.l.b16 %v578
        %v1449 = vunpack.c.h.b16 %v578
        %v1450 = vunpack.c.l.b16 %v579
        %v1451 = vunpack.c.h.b16 %v579
        %v1452 = vunpack.c.l.b16 %v580
        %v1453 = vunpack.c.h.b16 %v580
        %v1454 = vunpack.c.l.b16 %v581
        %v1455 = vunpack.c.h.b16 %v581
        %v1456 = vunpack.c.l.b16 %v582
        %v1457 = vunpack.c.h.b16 %v582
        %v1458 = vunpack.c.l.b16 %v583
        %v1459 = vunpack.c.h.b16 %v583
        %v1460 = vunpack.c.l.b16 %v584
        %v1461 = vunpack.c.h.b16 %v584
        %v1462 = vunpack.c.l.b16 %v585
        %v1463 = vunpack.c.h.b16 %v585
        %v1464 = vunpack.c.l.b16 %v586
        %v1465 = vunpack.c.h.b16 %v586
        %v1466 = vunpack.c.l.b16 %v587
        %v1467 = vunpack.c.h.b16 %v587
        %v1468 = vunpack.c.l.b16 %v588
        %v1469 = vunpack.c.h.b16 %v588
        %v1470 = vunpack.c.l.b16 %v589
        %v1471 = vunpack.c.h.b16 %v589
        %v1472 = vunpack.c.l.b16 %v590
        %v1473 = vunpack.c.h.b16 %v590
        %v1474 = vunpack.c.l.b16 %v591
        %v1475 = vunpack.c.h.b16 %v591
        %v1476 = vunpack.c.l.b16 %v592
        %v1477 = vunpack.c.h.b16 %v592
        %v1478 = vunpack.c.l.b16 %v593
        %v1479 = vunpack.c.h.b16 %v593
        %v1480 = vunpack.c.l.b16 %v594
        %v1481 = vunpack.c.h.b16 %v594
        %v1482 = vunpack.c.l.b16 %v595
        %v1483 = vunpack.c.h.b16 %v595
        %v1484 = vunpack.c.l.b16 %v596
        %v1485 = vunpack.c.h.b16 %v596
        %v1486 = vunpack.c.l.b16 %v597
        %v1487 = vunpack.c.h.b16 %v597
        %v1488 = vunpack.c.l.b16 %v598
        %v1489 = vunpack.c.h.b16 %v598
        %v1490 = vunpack.c.l.b16 %v599
        %v1491 = vunpack.c.h.b16 %v599
        %v1492 = vunpack.c.l.b16 %v600
        %v1493 = vunpack.c.h.b16 %v600
        %v1494 = vunpack.c.l.b16 %v601
        %v1495 = vunpack.c.h.b16 %v601
        %v1496 = vunpack.c.l.b16 %v602
        %v1497 = vunpack.c.h.b16 %v602
        %v1498 = vunpack.c.l.b16 %v603
        %v1499 = vunpack.c.h.b16 %v603
        %v1500 = vunpack.c.l.b16 %v604
        %v1501 = vunpack.c.h.b16 %v604
        %v1502 = vunpack.c.l.b16 %v605
        %v1503 = vunpack.c.h.b16 %v605
        %v1504 = vunpack.c.l.b16 %v606
        %v1505 = vunpack.c.h.b16 %v606
        %v1506 = vunpack.c.l.b16 %v607
        %v1507 = vunpack.c.h.b16 %v607
        %v1508 = vunpack.c.l.b16 %v608
        %v1509 = vunpack.c.h.b16 %v608
        %v1510 = vunpack.c.l.b16 %v609
        %v1511 = vunpack.c.h.b16 %v609
        %v1512 = vunpack.c.l.b16 %v610
        %v1513 = vunpack.c.h.b16 %v610
        %v1514 = vunpack.c.l.b16 %v611
        %v1515 = vunpack.c.h.b16 %v611
        %v1516 = vunpack.c.l.b16 %v612
        %v1517 = vunpack.c.h.b16 %v612
        %v1518 = vunpack.c.l.b16 %v613
        %v1519 = vunpack.c.h.b16 %v613
        %v1520 = vunpack.c.l.b16 %v614
        %v1521 = vunpack.c.h.b16 %v614
        %v1522 = vunpack.c.l.b16 %v615
        %v1523 = vunpack.c.h.b16 %v615
        %v1524 = vunpack.c.l.b16 %v616
        %v1525 = vunpack.c.h.b16 %v616
        %v1526 = vunpack.c.l.b16 %v617
        %v1527 = vunpack.c.h.b16 %v617
        %v1528 = vunpack.c.l.b16 %v618
        %v1529 = vunpack.c.h.b16 %v618
        %v1530 = vunpack.c.l.b16 %v619
        %v1531 = vunpack.c.h.b16 %v619
        %v1532 = vunpack.c.l.b16 %v620
        %v1533 = vunpack.c.h.b16 %v620
        %v1534 = vunpack.c.l.b16 %v621
        %v1535 = vunpack.c.h.b16 %v621
        %v1536 = vunpack.c.l.b16 %v622
        %v1537 = vunpack.c.h.b16 %v622
        %v1538 = vunpack.c.l.b16 %v623
        %v1539 = vunpack.c.h.b16 %v623
        %v1540 = vunpack.c.l.b16 %v624
        %v1541 = vunpack.c.h.b16 %v624
        %v1542 = vunpack.c.l.b16 %v625
        %v1543 = vunpack.c.h.b16 %v625
        %v1544 = vunpack.c.l.b16 %v626
        %v1545 = vunpack.c.h.b16 %v626
        %v1546 = vunpack.c.l.b16 %v627
        %v1547 = vunpack.c.h.b16 %v627
        %v1548 = vunpack.c.l.b16 %v628
        %v1549 = vunpack.c.h.b16 %v628
        %v1550 = vunpack.c.l.b16 %v629
        %v1551 = vunpack.c.h.b16 %v629
        %v1552 = vunpack.c.l.b16 %v630
        %v1553 = vunpack.c.h.b16 %v630
        %v1554 = vunpack.c.l.b16 %v631
        %v1555 = vunpack.c.h.b16 %v631
        %v1556 = vunpack.c.l.b16 %v632
        %v1557 = vunpack.c.h.b16 %v632
        %v1558 = vunpack.c.l.b16 %v633
        %v1559 = vunpack.c.h.b16 %v633
        %v1560 = vunpack.c.l.b16 %v634
        %v1561 = vunpack.c.h.b16 %v634
        %v1562 = vpack.c.b16 %v988, %v986
        %v1563 = vpack.c.b16 %v989, %v987
        %v1564 = vpack.c.b16 %v992, %v990
        %v1565 = vpack.c.b16 %v993, %v991
        %v1566 = vpack.c.b16 %v996, %v994
        %v1567 = vpack.c.b16 %v997, %v995
        %v1568 = vpack.c.b16 %v1000, %v998
        %v1569 = vpack.c.b16 %v1001, %v999
        %v1570 = vpack.c.b16 %v1004, %v1002
        %v1571 = vpack.c.b16 %v1005, %v1003
        %v1572 = vpack.c.b16 %v1008, %v1006
        %v1573 = vpack.c.b16 %v1009, %v1007
        %v1574 = vpack.c.b16 %v1012, %v1010
        %v1575 = vpack.c.b16 %v1013, %v1011
        %v1576 = vpack.c.b16 %v1016, %v1014
        %v1577 = vpack.c.b16 %v1017, %v1015
        %v1578 = vpack.c.b16 %v1020, %v1018
        %v1579 = vpack.c.b16 %v1021, %v1019
        %v1580 = vpack.c.b16 %v1024, %v1022
        %v1581 = vpack.c.b16 %v1025, %v1023
        %v1582 = vpack.c.b16 %v1028, %v1026
        %v1583 = vpack.c.b16 %v1029, %v1027
        %v1584 = vpack.c.b16 %v1032, %v1030
        %v1585 = vpack.c.b16 %v1033, %v1031
        %v1586 = vpack.c.b16 %v1036, %v1034
        %v1587 = vpack.c.b16 %v1037, %v1035
        %v1588 = vpack.c.b16 %v1040, %v1038
        %v1589 = vpack.c.b16 %v1041, %v1039
        %v1590 = vpack.c.b16 %v1044, %v1042
        %v1591 = vpack.c.b16 %v1045, %v1043
        %v1592 = vpack.c.b16 %v1048, %v1046
        %v1593 = vpack.c.b16 %v1049, %v1047
        %v1594 = vpack.c.b16 %v1052, %v1050
        %v1595 = vpack.c.b16 %v1053, %v1051
        %v1596 = vpack.c.b16 %v1056, %v1054
        %v1597 = vpack.c.b16 %v1057, %v1055
        %v1598 = vpack.c.b16 %v1060, %v1058
        %v1599 = vpack.c.b16 %v1061, %v1059
        %v1600 = vpack.c.b16 %v1064, %v1062
        %v1601 = vpack.c.b16 %v1065, %v1063
        %v1602 = vpack.c.b16 %v1068, %v1066
        %v1603 = vpack.c.b16 %v1069, %v1067
        %v1604 = vpack.c.b16 %v1072, %v1070
        %v1605 = vpack.c.b16 %v1073, %v1071
        %v1606 = vpack.c.b16 %v1076, %v1074
        %v1607 = vpack.c.b16 %v1077, %v1075
        %v1608 = vpack.c.b16 %v1080, %v1078
        %v1609 = vpack.c.b16 %v1081, %v1079
        %v1610 = vpack.c.b16 %v1084, %v1082
        %v1611 = vpack.c.b16 %v1085, %v1083
        %v1612 = vpack.c.b16 %v1088, %v1086
        %v1613 = vpack.c.b16 %v1089, %v1087
        %v1614 = vpack.c.b16 %v1092, %v1090
        %v1615 = vpack.c.b16 %v1093, %v1091
        %v1616 = vpack.c.b16 %v1096, %v1094
        %v1617 = vpack.c.b16 %v1097, %v1095
        %v1618 = vpack.c.b16 %v1100, %v1098
        %v1619 = vpack.c.b16 %v1101, %v1099
        %v1620 = vpack.c.b16 %v1104, %v1102
        %v1621 = vpack.c.b16 %v1105, %v1103
        %v1622 = vpack.c.b16 %v1108, %v1106
        %v1623 = vpack.c.b16 %v1109, %v1107
        %v1624 = vpack.c.b16 %v1112, %v1110
        %v1625 = vpack.c.b16 %v1113, %v1111
        %v1626 = vpack.c.b16 %v1116, %v1114
        %v1627 = vpack.c.b16 %v1117, %v1115
        %v1628 = vpack.c.b16 %v1120, %v1118
        %v1629 = vpack.c.b16 %v1121, %v1119
        %v1630 = vpack.c.b16 %v1124, %v1122
        %v1631 = vpack.c.b16 %v1125, %v1123
        %v1632 = vpack.c.b16 %v1128, %v1126
        %v1633 = vpack.c.b16 %v1129, %v1127
        %v1634 = vpack.c.b16 %v1132, %v1130
        %v1635 = vpack.c.b16 %v1133, %v1131
        %v1636 = vpack.c.b16 %v1136, %v1134
        %v1637 = vpack.c.b16 %v1137, %v1135
        %v1638 = vpack.c.b16 %v1140, %v1138
        %v1639 = vpack.c.b16 %v1141, %v1139
        %v1640 = vpack.c.b16 %v1144, %v1142
        %v1641 = vpack.c.b16 %v1145, %v1143
        %v1642 = vpack.c.b16 %v1148, %v1146
        %v1643 = vpack.c.b16 %v1149, %v1147
        %v1644 = vpack.c.b16 %v1152, %v1150
        %v1645 = vpack.c.b16 %v1153, %v1151
        %v1646 = vpack.c.b16 %v1156, %v1154
        %v1647 = vpack.c.b16 %v1157, %v1155
        %v1648 = vpack.c.b16 %v1160, %v1158
        %v1649 = vpack.c.b16 %v1161, %v1159
        %v1650 = vpack.c.b16 %v1164, %v1162
        %v1651 = vpack.c.b16 %v1165, %v1163
        %v1652 = vpack.c.b16 %v1168, %v1166
        %v1653 = vpack.c.b16 %v1169, %v1167
        %v1654 = vpack.c.b16 %v1172, %v1170
        %v1655 = vpack.c.b16 %v1173, %v1171
        %v1656 = vpack.c.b16 %v1176, %v1174
        %v1657 = vpack.c.b16 %v1177, %v1175
        %v1658 = vpack.c.b16 %v1180, %v1178
        %v1659 = vpack.c.b16 %v1181, %v1179
        %v1660 = vpack.c.b16 %v1184, %v1182
        %v1661 = vpack.c.b16 %v1185, %v1183
        %v1662 = vpack.c.b16 %v1188, %v1186
        %v1663 = vpack.c.b16 %v1189, %v1187
        %v1664 = vpack.c.b16 %v1192, %v1190
        %v1665 = vpack.c.b16 %v1193, %v1191
        %v1666 = vpack.c.b16 %v1196, %v1194
        %v1667 = vpack.c.b16 %v1197, %v1195
        %v1668 = vpack.c.b16 %v1200, %v1198
        %v1669 = vpack.c.b16 %v1201, %v1199
        %v1670 = vpack.c.b16 %v1204, %v1202
        %v1671 = vpack.c.b16 %v1205, %v1203
        %v1672 = vpack.c.b16 %v1208, %v1206
        %v1673 = vpack.c.b16 %v1209, %v1207
        %v1674 = vpack.c.b16 %v1212, %v1210
        %v1675 = vpack.c.b16 %v1213, %v1211
        %v1676 = vpack.c.b16 %v1216, %v1214
        %v1677 = vpack.c.b16 %v1217, %v1215
        %v1678 = vpack.c.b16 %v1220, %v1218
        %v1679 = vpack.c.b16 %v1221, %v1219
        %v1680 = vpack.c.b16 %v1224, %v1222
        %v1681 = vpack.c.b16 %v1225, %v1223
        %v1682 = vpack.c.b16 %v1228, %v1226
        %v1683 = vpack.c.b16 %v1229, %v1227
        %v1684 = vpack.c.b16 %v1232, %v1230
        %v1685 = vpack.c.b16 %v1233, %v1231
        %v1686 = vpack.c.b16 %v1236, %v1234
        %v1687 = vpack.c.b16 %v1237, %v1235
        %v1688 = vpack.c.b16 %v1240, %v1238
        %v1689 = vpack.c.b16 %v1241, %v1239
        %v1690 = vpack.c.b16 %v1244, %v1242
        %v1691 = vpack.c.b16 %v1245, %v1243
        %v1692 = vpack.c.b16 %v1248, %v1246
        %v1693 = vpack.c.b16 %v1249, %v1247
        %v1694 = vpack.c.b16 %v1252, %v1250
        %v1695 = vpack.c.b16 %v1253, %v1251
        %v1696 = vpack.c.b16 %v1256, %v1254
        %v1697 = vpack.c.b16 %v1257, %v1255
        %v1698 = vpack.c.b16 %v1260, %v1258
        %v1699 = vpack.c.b16 %v1261, %v1259
        %v1700 = vpack.c.b16 %v1264, %v1262
        %v1701 = vpack.c.b16 %v1265, %v1263
        %v1702 = vpack.c.b16 %v1268, %v1266
        %v1703 = vpack.c.b16 %v1269, %v1267
        %v1704 = vpack.c.b16 %v1272, %v1270
        %v1705 = vpack.c.b16 %v1273, %v1271
        %v1706 = vpack.c.b16 %v1276, %v1274
        %v1707 = vpack.c.b16 %v1277, %v1275
        %v1708 = vpack.c.b16 %v1280, %v1278
        %v1709 = vpack.c.b16 %v1281, %v1279
        %v1710 = vpack.c.b16 %v1284, %v1282
        %v1711 = vpack.c.b16 %v1285, %v1283
        %v1712 = vpack.c.b16 %v1288, %v1286
        %v1713 = vpack.c.b16 %v1289, %v1287
        %v1714 = vpack.c.b16 %v1292, %v1290
        %v1715 = vpack.c.b16 %v1293, %v1291
        %v1716 = vpack.c.b16 %v1296, %v1294
        %v1717 = vpack.c.b16 %v1297, %v1295
        %v1718 = vpack.c.b16 %v1300, %v1298
        %v1719 = vpack.c.b16 %v1301, %v1299
        %v1720 = vpack.c.b16 %v1304, %v1302
        %v1721 = vpack.c.b16 %v1305, %v1303
        %v1722 = vpack.c.b16 %v1308, %v1306
        %v1723 = vpack.c.b16 %v1309, %v1307
        %v1724 = vpack.c.b16 %v1312, %v1310
        %v1725 = vpack.c.b16 %v1313, %v1311
        %v1726 = vpack.c.b16 %v1316, %v1314
        %v1727 = vpack.c.b16 %v1317, %v1315
        %v1728 = vpack.c.b16 %v1320, %v1318
        %v1729 = vpack.c.b16 %v1321, %v1319
        %v1730 = vpack.c.b16 %v1324, %v1322
        %v1731 = vpack.c.b16 %v1325, %v1323
        %v1732 = vpack.c.b16 %v1328, %v1326
        %v1733 = vpack.c.b16 %v1329, %v1327
        %v1734 = vpack.c.b16 %v1332, %v1330
        %v1735 = vpack.c.b16 %v1333, %v1331
        %v1736 = vpack.c.b16 %v1336, %v1334
        %v1737 = vpack.c.b16 %v1337, %v1335
        %v1738 = vpack.c.b16 %v1340, %v1338
        %v1739 = vpack.c.b16 %v1341, %v1339
        %v1740 = vpack.c.b16 %v1344, %v1342
        %v1741 = vpack.c.b16 %v1345, %v1343
        %v1742 = vpack.c.b16 %v1348, %v1346
        %v1743 = vpack.c.b16 %v1349, %v1347
        %v1744 = vpack.c.b16 %v1352, %v1350
        %v1745 = vpack.c.b16 %v1353, %v1351
        %v1746 = vpack.c.b16 %v1356, %v1354
        %v1747 = vpack.c.b16 %v1357, %v1355
        %v1748 = vpack.c.b16 %v1360, %v1358
        %v1749 = vpack.c.b16 %v1361, %v1359
        %v1750 = vpack.c.b16 %v1364, %v1362
        %v1751 = vpack.c.b16 %v1365, %v1363
        %v1752 = vpack.c.b16 %v1368, %v1366
        %v1753 = vpack.c.b16 %v1369, %v1367
        %v1754 = vpack.c.b16 %v1372, %v1370
        %v1755 = vpack.c.b16 %v1373, %v1371
        %v1756 = vpack.c.b16 %v1376, %v1374
        %v1757 = vpack.c.b16 %v1377, %v1375
        %v1758 = vpack.c.b16 %v1380, %v1378
        %v1759 = vpack.c.b16 %v1381, %v1379
        %v1760 = vpack.c.b16 %v1384, %v1382
        %v1761 = vpack.c.b16 %v1385, %v1383
        %v1762 = vpack.c.b16 %v1388, %v1386
        %v1763 = vpack.c.b16 %v1389, %v1387
        %v1764 = vpack.c.b16 %v1392, %v1390
        %v1765 = vpack.c.b16 %v1393, %v1391
        %v1766 = vpack.c.b16 %v1396, %v1394
        %v1767 = vpack.c.b16 %v1397, %v1395
        %v1768 = vpack.c.b16 %v1400, %v1398
        %v1769 = vpack.c.b16 %v1401, %v1399
        %v1770 = vpack.c.b16 %v1404, %v1402
        %v1771 = vpack.c.b16 %v1405, %v1403
        %v1772 = vpack.c.b16 %v1408, %v1406
        %v1773 = vpack.c.b16 %v1409, %v1407
        %v1774 = vpack.c.b16 %v1412, %v1410
        %v1775 = vpack.c.b16 %v1413, %v1411
        %v1776 = vpack.c.b16 %v1416, %v1414
        %v1777 = vpack.c.b16 %v1417, %v1415
        %v1778 = vpack.c.b16 %v1420, %v1418
        %v1779 = vpack.c.b16 %v1421, %v1419
        %v1780 = vpack.c.b16 %v1424, %v1422
        %v1781 = vpack.c.b16 %v1425, %v1423
        %v1782 = vpack.c.b16 %v1428, %v1426
        %v1783 = vpack.c.b16 %v1429, %v1427
        %v1784 = vpack.c.b16 %v1432, %v1430
        %v1785 = vpack.c.b16 %v1433, %v1431
        %v1786 = vpack.c.b16 %v1436, %v1434
        %v1787 = vpack.c.b16 %v1437, %v1435
        %v1788 = vpack.c.b16 %v1440, %v1438
        %v1789 = vpack.c.b16 %v1441, %v1439
        %v1790 = vpack.c.b16 %v1444, %v1442
        %v1791 = vpack.c.b16 %v1445, %v1443
        %v1792 = vpack.c.b16 %v1448, %v1446
        %v1793 = vpack.c.b16 %v1449, %v1447
        %v1794 = vpack.c.b16 %v1452, %v1450
        %v1795 = vpack.c.b16 %v1453, %v1451
        %v1796 = vpack.c.b16 %v1456, %v1454
        %v1797 = vpack.c.b16 %v1457, %v1455
        %v1798 = vpack.c.b16 %v1460, %v1458
        %v1799 = vpack.c.b16 %v1461, %v1459
        %v1800 = vpack.c.b16 %v1464, %v1462
        %v1801 = vpack.c.b16 %v1465, %v1463
        %v1802 = vpack.c.b16 %v1468, %v1466
        %v1803 = vpack.c.b16 %v1469, %v1467
        %v1804 = vpack.c.b16 %v1472, %v1470
        %v1805 = vpack.c.b16 %v1473, %v1471
        %v1806 = vpack.c.b16 %v1476, %v1474
        %v1807 = vpack.c.b16 %v1477, %v1475
        %v1808 = vpack.c.b16 %v1480, %v1478
        %v1809 = vpack.c.b16 %v1481, %v1479
        %v1810 = vpack.c.b16 %v1484, %v1482
        %v1811 = vpack.c.b16 %v1485, %v1483
        %v1812 = vpack.c.b16 %v1488, %v1486
        %v1813 = vpack.c.b16 %v1489, %v1487
        %v1814 = vpack.c.b16 %v1492, %v1490
        %v1815 = vpack.c.b16 %v1493, %v1491
        %v1816 = vpack.c.b16 %v1496, %v1494
        %v1817 = vpack.c.b16 %v1497, %v1495
        %v1818 = vpack.c.b16 %v1500, %v1498
        %v1819 = vpack.c.b16 %v1501, %v1499
        %v1820 = vpack.c.b16 %v1504, %v1502
        %v1821 = vpack.c.b16 %v1505, %v1503
        %v1822 = vpack.c.b16 %v1508, %v1506
        %v1823 = vpack.c.b16 %v1509, %v1507
        %v1824 = vpack.c.b16 %v1512, %v1510
        %v1825 = vpack.c.b16 %v1513, %v1511
        %v1826 = vpack.c.b16 %v1516, %v1514
        %v1827 = vpack.c.b16 %v1517, %v1515
        %v1828 = vpack.c.b16 %v1520, %v1518
        %v1829 = vpack.c.b16 %v1521, %v1519
        %v1830 = vpack.c.b16 %v1524, %v1522
        %v1831 = vpack.c.b16 %v1525, %v1523
        %v1832 = vpack.c.b16 %v1528, %v1526
        %v1833 = vpack.c.b16 %v1529, %v1527
        %v1834 = vpack.c.b16 %v1532, %v1530
        %v1835 = vpack.c.b16 %v1533, %v1531
        %v1836 = vpack.c.b16 %v1536, %v1534
        %v1837 = vpack.c.b16 %v1537, %v1535
        %v1838 = vpack.c.b16 %v1540, %v1538
        %v1839 = vpack.c.b16 %v1541, %v1539
        %v1840 = vpack.c.b16 %v1544, %v1542
        %v1841 = vpack.c.b16 %v1545, %v1543
        %v1842 = vpack.c.b16 %v1548, %v1546
        %v1843 = vpack.c.b16 %v1549, %v1547
        %v1844 = vpack.c.b16 %v1552, %v1550
        %v1845 = vpack.c.b16 %v1553, %v1551
        %v1846 = vpack.c.b16 %v1556, %v1554
        %v1847 = vpack.c.b16 %v1557, %v1555
        %v1848 = vpack.c.b16 %v1560, %v1558
        %v1849 = vpack.c.b16 %v1561, %v1559
        %2138 = vmatpush.bf16.msra.mxu0 %v1576
        %2139 = vmatpush.bf16.msra.mxu0 %v1574
        %2140 = vmatpush.bf16.msra.mxu0 %v1572
        %2141 = vmatpush.bf16.msra.mxu0 %v1570
        %2142 = vmatpush.bf16.msra.mxu0 %v1568
        %2143 = vmatpush.bf16.msra.mxu0 %v1566
        %2144 = vmatpush.bf16.msra.mxu0 %v1564
        %2145 = vmatpush.bf16.msra.mxu0 %v1562
        %2146 = vmatmul.bf16.gmra.mxu0 %v662
        %v2147 = vpop.f32.mrf.mxu0
        %v2148 = vadd.f32 0.0, %v2147
        %v2149 = vpop.f32.mrf.mxu0
        %2150 = vdwg.mxu0
        %2151 = vmatpush.bf16.msra.mxu0 %v1592
        %2152 = vmatpush.bf16.msra.mxu0 %v1590
        %2153 = vmatpush.bf16.msra.mxu0 %v1588
        %2154 = vmatpush.bf16.msra.mxu0 %v1586
        %2155 = vmatpush.bf16.msra.mxu0 %v1584
        %2156 = vmatpush.bf16.msra.mxu0 %v1582
        %2157 = vmatpush.bf16.msra.mxu0 %v1580
        %2158 = vmatpush.bf16.msra.mxu0 %v1578
        %2159 = vmatmul.bf16.gmra.mxu0 %v663
        %v2160 = vpop.f32.mrf.mxu0
        %v2161 = vadd.f32 %v2148, %v2160
        %v2162 = vpop.f32.mrf.mxu0
        %2163 = vdwg.mxu0
        %2164 = vmatpush.bf16.msra.mxu0 %v1608
        %2165 = vmatpush.bf16.msra.mxu0 %v1606
        %2166 = vmatpush.bf16.msra.mxu0 %v1604
        %2167 = vmatpush.bf16.msra.mxu0 %v1602
        %2168 = vmatpush.bf16.msra.mxu0 %v1600
        %2169 = vmatpush.bf16.msra.mxu0 %v1598
        %2170 = vmatpush.bf16.msra.mxu0 %v1596
        %2171 = vmatpush.bf16.msra.mxu0 %v1594
        %2172 = vmatmul.bf16.gmra.mxu0 %v664
        %v2173 = vpop.f32.mrf.mxu0
        %v2174 = vadd.f32 %v2161, %v2173
        %v2175 = vpop.f32.mrf.mxu0
        %2176 = vdwg.mxu0
        %2177 = vmatpush.bf16.msra.mxu0 %v1624
        %2178 = vmatpush.bf16.msra.mxu0 %v1622
        %2179 = vmatpush.bf16.msra.mxu0 %v1620
        %2180 = vmatpush.bf16.msra.mxu0 %v1618
        %2181 = vmatpush.bf16.msra.mxu0 %v1616
        %2182 = vmatpush.bf16.msra.mxu0 %v1614
        %2183 = vmatpush.bf16.msra.mxu0 %v1612
        %2184 = vmatpush.bf16.msra.mxu0 %v1610
        %2185 = vmatmul.bf16.gmra.mxu0 %v665
        %v2186 = vpop.f32.mrf.mxu0
        %v2187 = vadd.f32 %v2174, %v2186
        %v2188 = vpop.f32.mrf.mxu0
        %2189 = vdwg.mxu0
        %2190 = vmatpush.bf16.msra.mxu0 %v1640
        %2191 = vmatpush.bf16.msra.mxu0 %v1638
        %2192 = vmatpush.bf16.msra.mxu0 %v1636
        %2193 = vmatpush.bf16.msra.mxu0 %v1634
        %2194 = vmatpush.bf16.msra.mxu0 %v1632
        %2195 = vmatpush.bf16.msra.mxu0 %v1630
        %2196 = vmatpush.bf16.msra.mxu0 %v1628
        %2197 = vmatpush.bf16.msra.mxu0 %v1626
        %2198 = vmatmul.bf16.gmra.mxu0 %v666
        %v2199 = vpop.f32.mrf.mxu0
        %v2200 = vadd.f32 %v2187, %v2199
        %v2201 = vpop.f32.mrf.mxu0
        %2202 = vdwg.mxu0
        %2203 = vmatpush.bf16.msra.mxu0 %v1656
        %2204 = vmatpush.bf16.msra.mxu0 %v1654
        %2205 = vmatpush.bf16.msra.mxu0 %v1652
        %2206 = vmatpush.bf16.msra.mxu0 %v1650
        %2207 = vmatpush.bf16.msra.mxu0 %v1648
        %2208 = vmatpush.bf16.msra.mxu0 %v1646
        %2209 = vmatpush.bf16.msra.mxu0 %v1644
        %2210 = vmatpush.bf16.msra.mxu0 %v1642
        %2211 = vmatmul.bf16.gmra.mxu0 %v667
        %v2212 = vpop.f32.mrf.mxu0
        %v2213 = vadd.f32 %v2200, %v2212
        %v2214 = vpop.f32.mrf.mxu0
        %2215 = vdwg.mxu0
        %2216 = vmatpush.bf16.msra.mxu0 %v1672
        %2217 = vmatpush.bf16.msra.mxu0 %v1670
        %2218 = vmatpush.bf16.msra.mxu0 %v1668
        %2219 = vmatpush.bf16.msra.mxu0 %v1666
        %2220 = vmatpush.bf16.msra.mxu0 %v1664
        %2221 = vmatpush.bf16.msra.mxu0 %v1662
        %2222 = vmatpush.bf16.msra.mxu0 %v1660
        %2223 = vmatpush.bf16.msra.mxu0 %v1658
        %2224 = vmatmul.bf16.gmra.mxu0 %v668
        %v2225 = vpop.f32.mrf.mxu0
        %v2226 = vadd.f32 %v2213, %v2225
        %v2227 = vpop.f32.mrf.mxu0
        %2228 = vdwg.mxu0
        %2229 = vmatpush.bf16.msra.mxu0 %v1688
        %2230 = vmatpush.bf16.msra.mxu0 %v1686
        %2231 = vmatpush.bf16.msra.mxu0 %v1684
        %2232 = vmatpush.bf16.msra.mxu0 %v1682
        %2233 = vmatpush.bf16.msra.mxu0 %v1680
        %2234 = vmatpush.bf16.msra.mxu0 %v1678
        %2235 = vmatpush.bf16.msra.mxu0 %v1676
        %2236 = vmatpush.bf16.msra.mxu0 %v1674
        %2237 = vmatmul.bf16.gmra.mxu0 %v669
        %v2238 = vpop.f32.mrf.mxu0
        %v2239 = vadd.f32 %v2226, %v2238
        %v2240 = vpop.f32.mrf.mxu0
        %2241 = vdwg.mxu0
        %2242 = vmatpush.bf16.msra.mxu0 %v1704
        %2243 = vmatpush.bf16.msra.mxu0 %v1702
        %2244 = vmatpush.bf16.msra.mxu0 %v1700
        %2245 = vmatpush.bf16.msra.mxu0 %v1698
        %2246 = vmatpush.bf16.msra.mxu0 %v1696
        %2247 = vmatpush.bf16.msra.mxu0 %v1694
        %2248 = vmatpush.bf16.msra.mxu0 %v1692
        %2249 = vmatpush.bf16.msra.mxu0 %v1690
        %2250 = vmatmul.bf16.gmra.mxu0 %v670
        %v2251 = vpop.f32.mrf.mxu0
        %v2252 = vadd.f32 %v2239, %v2251
        %v2253 = vpop.f32.mrf.mxu0
        %2254 = vdwg.mxu0
        %2255 = vmatpush.bf16.msra.mxu0 %v1720
        %2256 = vmatpush.bf16.msra.mxu0 %v1718
        %2257 = vmatpush.bf16.msra.mxu0 %v1716
        %2258 = vmatpush.bf16.msra.mxu0 %v1714
        %2259 = vmatpush.bf16.msra.mxu0 %v1712
        %2260 = vmatpush.bf16.msra.mxu0 %v1710
        %2261 = vmatpush.bf16.msra.mxu0 %v1708
        %2262 = vmatpush.bf16.msra.mxu0 %v1706
        %2263 = vmatmul.bf16.gmra.mxu0 %v671
        %v2264 = vpop.f32.mrf.mxu0
        %v2265 = vadd.f32 %v2252, %v2264
        %v2266 = vpop.f32.mrf.mxu0
        %2267 = vdwg.mxu0
        %2268 = vmatpush.bf16.msra.mxu0 %v1736
        %2269 = vmatpush.bf16.msra.mxu0 %v1734
        %2270 = vmatpush.bf16.msra.mxu0 %v1732
        %2271 = vmatpush.bf16.msra.mxu0 %v1730
        %2272 = vmatpush.bf16.msra.mxu0 %v1728
        %2273 = vmatpush.bf16.msra.mxu0 %v1726
        %2274 = vmatpush.bf16.msra.mxu0 %v1724
        %2275 = vmatpush.bf16.msra.mxu0 %v1722
        %2276 = vmatmul.bf16.gmra.mxu0 %v672
        %v2277 = vpop.f32.mrf.mxu0
        %v2278 = vadd.f32 %v2265, %v2277
        %v2279 = vpop.f32.mrf.mxu0
        %2280 = vdwg.mxu0
        %2281 = vmatpush.bf16.msra.mxu0 %v1752
        %2282 = vmatpush.bf16.msra.mxu0 %v1750
        %2283 = vmatpush.bf16.msra.mxu0 %v1748
        %2284 = vmatpush.bf16.msra.mxu0 %v1746
        %2285 = vmatpush.bf16.msra.mxu0 %v1744
        %2286 = vmatpush.bf16.msra.mxu0 %v1742
        %2287 = vmatpush.bf16.msra.mxu0 %v1740
        %2288 = vmatpush.bf16.msra.mxu0 %v1738
        %2289 = vmatmul.bf16.gmra.mxu0 %v673
        %v2290 = vpop.f32.mrf.mxu0
        %v2291 = vadd.f32 %v2278, %v2290
        %v2292 = vpop.f32.mrf.mxu0
        %2293 = vdwg.mxu0
        %2294 = vmatpush.bf16.msra.mxu0 %v1768
        %2295 = vmatpush.bf16.msra.mxu0 %v1766
        %2296 = vmatpush.bf16.msra.mxu0 %v1764
        %2297 = vmatpush.bf16.msra.mxu0 %v1762
        %2298 = vmatpush.bf16.msra.mxu0 %v1760
        %2299 = vmatpush.bf16.msra.mxu0 %v1758
        %2300 = vmatpush.bf16.msra.mxu0 %v1756
        %2301 = vmatpush.bf16.msra.mxu0 %v1754
        %2302 = vmatmul.bf16.gmra.mxu0 %v674
        %v2303 = vpop.f32.mrf.mxu0
        %v2304 = vadd.f32 %v2291, %v2303
        %v2305 = vpop.f32.mrf.mxu0
        %2306 = vdwg.mxu0
        %2307 = vmatpush.bf16.msra.mxu0 %v1784
        %2308 = vmatpush.bf16.msra.mxu0 %v1782
        %2309 = vmatpush.bf16.msra.mxu0 %v1780
        %2310 = vmatpush.bf16.msra.mxu0 %v1778
        %2311 = vmatpush.bf16.msra.mxu0 %v1776
        %2312 = vmatpush.bf16.msra.mxu0 %v1774
        %2313 = vmatpush.bf16.msra.mxu0 %v1772
        %2314 = vmatpush.bf16.msra.mxu0 %v1770
        %2315 = vmatmul.bf16.gmra.mxu0 %v675
        %v2316 = vpop.f32.mrf.mxu0
        %v2317 = vadd.f32 %v2304, %v2316
        %v2318 = vpop.f32.mrf.mxu0
        %2319 = vdwg.mxu0
        %2320 = vmatpush.bf16.msra.mxu0 %v1800
        %2321 = vmatpush.bf16.msra.mxu0 %v1798
        %2322 = vmatpush.bf16.msra.mxu0 %v1796
        %2323 = vmatpush.bf16.msra.mxu0 %v1794
        %2324 = vmatpush.bf16.msra.mxu0 %v1792
        %2325 = vmatpush.bf16.msra.mxu0 %v1790
        %2326 = vmatpush.bf16.msra.mxu0 %v1788
        %2327 = vmatpush.bf16.msra.mxu0 %v1786
        %2328 = vmatmul.bf16.gmra.mxu0 %v676
        %v2329 = vpop.f32.mrf.mxu0
        %v2330 = vadd.f32 %v2317, %v2329
        %v2331 = vpop.f32.mrf.mxu0
        %2332 = vdwg.mxu0
        %2333 = vmatpush.bf16.msra.mxu0 %v1816
        %2334 = vmatpush.bf16.msra.mxu0 %v1814
        %2335 = vmatpush.bf16.msra.mxu0 %v1812
        %2336 = vmatpush.bf16.msra.mxu0 %v1810
        %2337 = vmatpush.bf16.msra.mxu0 %v1808
        %2338 = vmatpush.bf16.msra.mxu0 %v1806
        %2339 = vmatpush.bf16.msra.mxu0 %v1804
        %2340 = vmatpush.bf16.msra.mxu0 %v1802
        %2341 = vmatmul.bf16.gmra.mxu0 %v677
        %v2342 = vpop.f32.mrf.mxu0
        %v2343 = vadd.f32 %v2330, %v2342
        %v2344 = vpop.f32.mrf.mxu0
        %2345 = vdwg.mxu0
        %2346 = vmatpush.bf16.msra.mxu0 %v1832
        %2347 = vmatpush.bf16.msra.mxu0 %v1830
        %2348 = vmatpush.bf16.msra.mxu0 %v1828
        %2349 = vmatpush.bf16.msra.mxu0 %v1826
        %2350 = vmatpush.bf16.msra.mxu0 %v1824
        %2351 = vmatpush.bf16.msra.mxu0 %v1822
        %2352 = vmatpush.bf16.msra.mxu0 %v1820
        %2353 = vmatpush.bf16.msra.mxu0 %v1818
        %2354 = vmatmul.bf16.gmra.mxu0 %v678
        %v2355 = vpop.f32.mrf.mxu0
        %v2356 = vadd.f32 %v2343, %v2355
        %v2357 = vpop.f32.mrf.mxu0
        %2358 = vdwg.mxu0
        %2359 = vmatpush.bf16.msra.mxu0 %v1848
        %2360 = vmatpush.bf16.msra.mxu0 %v1846
        %2361 = vmatpush.bf16.msra.mxu0 %v1844
        %2362 = vmatpush.bf16.msra.mxu0 %v1842
        %2363 = vmatpush.bf16.msra.mxu0 %v1840
        %2364 = vmatpush.bf16.msra.mxu0 %v1838
        %2365 = vmatpush.bf16.msra.mxu0 %v1836
        %2366 = vmatpush.bf16.msra.mxu0 %v1834
        %2367 = vmatmul.bf16.gmra.mxu0 %v679
        %v2368 = vpop.f32.mrf.mxu0
        %v2369 = vadd.f32 %v2356, %v2368
        %v2370 = vpop.f32.mrf.mxu0
        %2371 = vdwg.mxu0
        %2372 = vmatpush.bf16.msra.mxu0 %v1577
        %2373 = vmatpush.bf16.msra.mxu0 %v1575
        %2374 = vmatpush.bf16.msra.mxu0 %v1573
        %2375 = vmatpush.bf16.msra.mxu0 %v1571
        %2376 = vmatpush.bf16.msra.mxu0 %v1569
        %2377 = vmatpush.bf16.msra.mxu0 %v1567
        %2378 = vmatpush.bf16.msra.mxu0 %v1565
        %2379 = vmatpush.bf16.msra.mxu0 %v1563
        %2380 = vmatmul.bf16.gmra.mxu0 %v662
        %v2381 = vpop.f32.mrf.mxu0
        %v2382 = vadd.f32 0.0, %v2381
        %v2383 = vpop.f32.mrf.mxu0
        %2384 = vdwg.mxu0
        %2385 = vmatpush.bf16.msra.mxu0 %v1593
        %2386 = vmatpush.bf16.msra.mxu0 %v1591
        %2387 = vmatpush.bf16.msra.mxu0 %v1589
        %2388 = vmatpush.bf16.msra.mxu0 %v1587
        %2389 = vmatpush.bf16.msra.mxu0 %v1585
        %2390 = vmatpush.bf16.msra.mxu0 %v1583
        %2391 = vmatpush.bf16.msra.mxu0 %v1581
        %2392 = vmatpush.bf16.msra.mxu0 %v1579
        %2393 = vmatmul.bf16.gmra.mxu0 %v663
        %v2394 = vpop.f32.mrf.mxu0
        %v2395 = vadd.f32 %v2382, %v2394
        %v2396 = vpop.f32.mrf.mxu0
        %2397 = vdwg.mxu0
        %2398 = vmatpush.bf16.msra.mxu0 %v1609
        %2399 = vmatpush.bf16.msra.mxu0 %v1607
        %2400 = vmatpush.bf16.msra.mxu0 %v1605
        %2401 = vmatpush.bf16.msra.mxu0 %v1603
        %2402 = vmatpush.bf16.msra.mxu0 %v1601
        %2403 = vmatpush.bf16.msra.mxu0 %v1599
        %2404 = vmatpush.bf16.msra.mxu0 %v1597
        %2405 = vmatpush.bf16.msra.mxu0 %v1595
        %2406 = vmatmul.bf16.gmra.mxu0 %v664
        %v2407 = vpop.f32.mrf.mxu0
        %v2408 = vadd.f32 %v2395, %v2407
        %v2409 = vpop.f32.mrf.mxu0
        %2410 = vdwg.mxu0
        %2411 = vmatpush.bf16.msra.mxu0 %v1625
        %2412 = vmatpush.bf16.msra.mxu0 %v1623
        %2413 = vmatpush.bf16.msra.mxu0 %v1621
        %2414 = vmatpush.bf16.msra.mxu0 %v1619
        %2415 = vmatpush.bf16.msra.mxu0 %v1617
        %2416 = vmatpush.bf16.msra.mxu0 %v1615
        %2417 = vmatpush.bf16.msra.mxu0 %v1613
        %2418 = vmatpush.bf16.msra.mxu0 %v1611
        %2419 = vmatmul.bf16.gmra.mxu0 %v665
        %v2420 = vpop.f32.mrf.mxu0
        %v2421 = vadd.f32 %v2408, %v2420
        %v2422 = vpop.f32.mrf.mxu0
        %2423 = vdwg.mxu0
        %2424 = vmatpush.bf16.msra.mxu0 %v1641
        %2425 = vmatpush.bf16.msra.mxu0 %v1639
        %2426 = vmatpush.bf16.msra.mxu0 %v1637
        %2427 = vmatpush.bf16.msra.mxu0 %v1635
        %2428 = vmatpush.bf16.msra.mxu0 %v1633
        %2429 = vmatpush.bf16.msra.mxu0 %v1631
        %2430 = vmatpush.bf16.msra.mxu0 %v1629
        %2431 = vmatpush.bf16.msra.mxu0 %v1627
        %2432 = vmatmul.bf16.gmra.mxu0 %v666
        %v2433 = vpop.f32.mrf.mxu0
        %v2434 = vadd.f32 %v2421, %v2433
        %v2435 = vpop.f32.mrf.mxu0
        %2436 = vdwg.mxu0
        %2437 = vmatpush.bf16.msra.mxu0 %v1657
        %2438 = vmatpush.bf16.msra.mxu0 %v1655
        %2439 = vmatpush.bf16.msra.mxu0 %v1653
        %2440 = vmatpush.bf16.msra.mxu0 %v1651
        %2441 = vmatpush.bf16.msra.mxu0 %v1649
        %2442 = vmatpush.bf16.msra.mxu0 %v1647
        %2443 = vmatpush.bf16.msra.mxu0 %v1645
        %2444 = vmatpush.bf16.msra.mxu0 %v1643
        %2445 = vmatmul.bf16.gmra.mxu0 %v667
        %v2446 = vpop.f32.mrf.mxu0
        %v2447 = vadd.f32 %v2434, %v2446
        %v2448 = vpop.f32.mrf.mxu0
        %2449 = vdwg.mxu0
        %2450 = vmatpush.bf16.msra.mxu0 %v1673
        %2451 = vmatpush.bf16.msra.mxu0 %v1671
        %2452 = vmatpush.bf16.msra.mxu0 %v1669
        %2453 = vmatpush.bf16.msra.mxu0 %v1667
        %2454 = vmatpush.bf16.msra.mxu0 %v1665
        %2455 = vmatpush.bf16.msra.mxu0 %v1663
        %2456 = vmatpush.bf16.msra.mxu0 %v1661
        %2457 = vmatpush.bf16.msra.mxu0 %v1659
        %2458 = vmatmul.bf16.gmra.mxu0 %v668
        %v2459 = vpop.f32.mrf.mxu0
        %v2460 = vadd.f32 %v2447, %v2459
        %v2461 = vpop.f32.mrf.mxu0
        %2462 = vdwg.mxu0
        %2463 = vmatpush.bf16.msra.mxu0 %v1689
        %2464 = vmatpush.bf16.msra.mxu0 %v1687
        %2465 = vmatpush.bf16.msra.mxu0 %v1685
        %2466 = vmatpush.bf16.msra.mxu0 %v1683
        %2467 = vmatpush.bf16.msra.mxu0 %v1681
        %2468 = vmatpush.bf16.msra.mxu0 %v1679
        %2469 = vmatpush.bf16.msra.mxu0 %v1677
        %2470 = vmatpush.bf16.msra.mxu0 %v1675
        %2471 = vmatmul.bf16.gmra.mxu0 %v669
        %v2472 = vpop.f32.mrf.mxu0
        %v2473 = vadd.f32 %v2460, %v2472
        %v2474 = vpop.f32.mrf.mxu0
        %2475 = vdwg.mxu0
        %2476 = vmatpush.bf16.msra.mxu0 %v1705
        %2477 = vmatpush.bf16.msra.mxu0 %v1703
        %2478 = vmatpush.bf16.msra.mxu0 %v1701
        %2479 = vmatpush.bf16.msra.mxu0 %v1699
        %2480 = vmatpush.bf16.msra.mxu0 %v1697
        %2481 = vmatpush.bf16.msra.mxu0 %v1695
        %2482 = vmatpush.bf16.msra.mxu0 %v1693
        %2483 = vmatpush.bf16.msra.mxu0 %v1691
        %2484 = vmatmul.bf16.gmra.mxu0 %v670
        %v2485 = vpop.f32.mrf.mxu0
        %v2486 = vadd.f32 %v2473, %v2485
        %v2487 = vpop.f32.mrf.mxu0
        %2488 = vdwg.mxu0
        %2489 = vmatpush.bf16.msra.mxu0 %v1721
        %2490 = vmatpush.bf16.msra.mxu0 %v1719
        %2491 = vmatpush.bf16.msra.mxu0 %v1717
        %2492 = vmatpush.bf16.msra.mxu0 %v1715
        %2493 = vmatpush.bf16.msra.mxu0 %v1713
        %2494 = vmatpush.bf16.msra.mxu0 %v1711
        %2495 = vmatpush.bf16.msra.mxu0 %v1709
        %2496 = vmatpush.bf16.msra.mxu0 %v1707
        %2497 = vmatmul.bf16.gmra.mxu0 %v671
        %v2498 = vpop.f32.mrf.mxu0
        %v2499 = vadd.f32 %v2486, %v2498
        %v2500 = vpop.f32.mrf.mxu0
        %2501 = vdwg.mxu0
        %2502 = vmatpush.bf16.msra.mxu0 %v1737
        %2503 = vmatpush.bf16.msra.mxu0 %v1735
        %2504 = vmatpush.bf16.msra.mxu0 %v1733
        %2505 = vmatpush.bf16.msra.mxu0 %v1731
        %2506 = vmatpush.bf16.msra.mxu0 %v1729
        %2507 = vmatpush.bf16.msra.mxu0 %v1727
        %2508 = vmatpush.bf16.msra.mxu0 %v1725
        %2509 = vmatpush.bf16.msra.mxu0 %v1723
        %2510 = vmatmul.bf16.gmra.mxu0 %v672
        %v2511 = vpop.f32.mrf.mxu0
        %v2512 = vadd.f32 %v2499, %v2511
        %v2513 = vpop.f32.mrf.mxu0
        %2514 = vdwg.mxu0
        %2515 = vmatpush.bf16.msra.mxu0 %v1753
        %2516 = vmatpush.bf16.msra.mxu0 %v1751
        %2517 = vmatpush.bf16.msra.mxu0 %v1749
        %2518 = vmatpush.bf16.msra.mxu0 %v1747
        %2519 = vmatpush.bf16.msra.mxu0 %v1745
        %2520 = vmatpush.bf16.msra.mxu0 %v1743
        %2521 = vmatpush.bf16.msra.mxu0 %v1741
        %2522 = vmatpush.bf16.msra.mxu0 %v1739
        %2523 = vmatmul.bf16.gmra.mxu0 %v673
        %v2524 = vpop.f32.mrf.mxu0
        %v2525 = vadd.f32 %v2512, %v2524
        %v2526 = vpop.f32.mrf.mxu0
        %2527 = vdwg.mxu0
        %2528 = vmatpush.bf16.msra.mxu0 %v1769
        %2529 = vmatpush.bf16.msra.mxu0 %v1767
        %2530 = vmatpush.bf16.msra.mxu0 %v1765
        %2531 = vmatpush.bf16.msra.mxu0 %v1763
        %2532 = vmatpush.bf16.msra.mxu0 %v1761
        %2533 = vmatpush.bf16.msra.mxu0 %v1759
        %2534 = vmatpush.bf16.msra.mxu0 %v1757
        %2535 = vmatpush.bf16.msra.mxu0 %v1755
        %2536 = vmatmul.bf16.gmra.mxu0 %v674
        %v2537 = vpop.f32.mrf.mxu0
        %v2538 = vadd.f32 %v2525, %v2537
        %v2539 = vpop.f32.mrf.mxu0
        %2540 = vdwg.mxu0
        %2541 = vmatpush.bf16.msra.mxu0 %v1785
        %2542 = vmatpush.bf16.msra.mxu0 %v1783
        %2543 = vmatpush.bf16.msra.mxu0 %v1781
        %2544 = vmatpush.bf16.msra.mxu0 %v1779
        %2545 = vmatpush.bf16.msra.mxu0 %v1777
        %2546 = vmatpush.bf16.msra.mxu0 %v1775
        %2547 = vmatpush.bf16.msra.mxu0 %v1773
        %2548 = vmatpush.bf16.msra.mxu0 %v1771
        %2549 = vmatmul.bf16.gmra.mxu0 %v675
        %v2550 = vpop.f32.mrf.mxu0
        %v2551 = vadd.f32 %v2538, %v2550
        %v2552 = vpop.f32.mrf.mxu0
        %2553 = vdwg.mxu0
        %2554 = vmatpush.bf16.msra.mxu0 %v1801
        %2555 = vmatpush.bf16.msra.mxu0 %v1799
        %2556 = vmatpush.bf16.msra.mxu0 %v1797
        %2557 = vmatpush.bf16.msra.mxu0 %v1795
        %2558 = vmatpush.bf16.msra.mxu0 %v1793
        %2559 = vmatpush.bf16.msra.mxu0 %v1791
        %2560 = vmatpush.bf16.msra.mxu0 %v1789
        %2561 = vmatpush.bf16.msra.mxu0 %v1787
        %2562 = vmatmul.bf16.gmra.mxu0 %v676
        %v2563 = vpop.f32.mrf.mxu0
        %v2564 = vadd.f32 %v2551, %v2563
        %v2565 = vpop.f32.mrf.mxu0
        %2566 = vdwg.mxu0
        %2567 = vmatpush.bf16.msra.mxu0 %v1817
        %2568 = vmatpush.bf16.msra.mxu0 %v1815
        %2569 = vmatpush.bf16.msra.mxu0 %v1813
        %2570 = vmatpush.bf16.msra.mxu0 %v1811
        %2571 = vmatpush.bf16.msra.mxu0 %v1809
        %2572 = vmatpush.bf16.msra.mxu0 %v1807
        %2573 = vmatpush.bf16.msra.mxu0 %v1805
        %2574 = vmatpush.bf16.msra.mxu0 %v1803
        %2575 = vmatmul.bf16.gmra.mxu0 %v677
        %v2576 = vpop.f32.mrf.mxu0
        %v2577 = vadd.f32 %v2564, %v2576
        %v2578 = vpop.f32.mrf.mxu0
        %2579 = vdwg.mxu0
        %2580 = vmatpush.bf16.msra.mxu0 %v1833
        %2581 = vmatpush.bf16.msra.mxu0 %v1831
        %2582 = vmatpush.bf16.msra.mxu0 %v1829
        %2583 = vmatpush.bf16.msra.mxu0 %v1827
        %2584 = vmatpush.bf16.msra.mxu0 %v1825
        %2585 = vmatpush.bf16.msra.mxu0 %v1823
        %2586 = vmatpush.bf16.msra.mxu0 %v1821
        %2587 = vmatpush.bf16.msra.mxu0 %v1819
        %2588 = vmatmul.bf16.gmra.mxu0 %v678
        %v2589 = vpop.f32.mrf.mxu0
        %v2590 = vadd.f32 %v2577, %v2589
        %v2591 = vpop.f32.mrf.mxu0
        %2592 = vdwg.mxu0
        %2593 = vmatpush.bf16.msra.mxu0 %v1849
        %2594 = vmatpush.bf16.msra.mxu0 %v1847
        %2595 = vmatpush.bf16.msra.mxu0 %v1845
        %2596 = vmatpush.bf16.msra.mxu0 %v1843
        %2597 = vmatpush.bf16.msra.mxu0 %v1841
        %2598 = vmatpush.bf16.msra.mxu0 %v1839
        %2599 = vmatpush.bf16.msra.mxu0 %v1837
        %2600 = vmatpush.bf16.msra.mxu0 %v1835
        %2601 = vmatmul.bf16.gmra.mxu0 %v679
        %v2602 = vpop.f32.mrf.mxu0
        %v2603 = vadd.f32 %v2590, %v2602
        %v2604 = vpop.f32.mrf.mxu0
        %2605 = vdwg.mxu0
        %v2606 = vadd.f32 %v336, %v2369
        %v2607 = vadd.f32 %v337, %v2603
        %2608 = vst [vmem:[#allocation2] sm:$0xff] %v2606
        %2609 = vst [vmem:[#allocation2 + $0x8] sm:$0xff] %v2607
        %p2610 = scmp.eq.s32.totalorder %s25, 7
        // Predicated region
        $region57: #{model_cnn_forward.3} parent=39 // pred_check
          %p2611 = pneg %p2610
        $region58: #{model_cnn_forward.3} parent=39 // pred_check_branch
          %2613 = sbr.rel (%p2611) target = $region60
        $region59: #{model_cnn_forward.3} parent=39 // pred_region
          %v2614 = vld [vmem:[#allocation2] sm:$0xff]
          %v2615 = vld [vmem:[#allocation2 + $0x8] sm:$0xff]
          %v2616 = vmax.f32 %v2614, 0.0
          %v2617 = vmax.f32 %v2615, 0.0
          %v2618 = vld [vmem:[%s3] sm:$0xff]
          %v2619 = vld [vmem:[%s3 + $0x8] sm:$0xff]
          %v2620 = vld [vmem:[%s3 + $0x10] sm:$0xff]
          %v2621 = vld [vmem:[%s3 + $0x18] sm:$0xff]
          %v2622 = vld [vmem:[%s3 + $0x20] sm:$0xff]
          %v2623 = vld [vmem:[%s3 + $0x28] sm:$0xff]
          %v2624 = vld [vmem:[%s3 + $0x30] sm:$0xff]
          %v2625 = vld [vmem:[%s3 + $0x38] sm:$0xff]
          %v2626 = vld [vmem:[%s3 + $0x40] sm:$0xff]
          %v2627 = vld [vmem:[%s3 + $0x48] sm:$0xff]
          %v2628 = vld [vmem:[%s3 + $0x50] sm:$0xff]
          %v2629 = vld [vmem:[%s3 + $0x58] sm:$0xff]
          %v2630 = vld [vmem:[%s3 + $0x60] sm:$0xff]
          %v2631 = vld [vmem:[%s3 + $0x68] sm:$0xff]
          %v2632 = vld [vmem:[%s3 + $0x70] sm:$0xff]
          %v2633 = vld [vmem:[%s3 + $0x78] sm:$0xff]
          %v2634 = vld [vmem:[%s3 + $0x80] sm:$0xff]
          %v2635 = vld [vmem:[%s3 + $0x88] sm:$0xff]
          %v2636 = vld [vmem:[%s3 + $0x90] sm:$0xff]
          %v2637 = vld [vmem:[%s3 + $0x98] sm:$0xff]
          %v2638 = vld [vmem:[%s3 + $0xa0] sm:$0xff]
          %v2639 = vld [vmem:[%s3 + $0xa8] sm:$0xff]
          %v2640 = vld [vmem:[%s3 + $0xb0] sm:$0xff]
          %v2641 = vld [vmem:[%s3 + $0xb8] sm:$0xff]
          %v2642 = vld [vmem:[%s3 + $0xc0] sm:$0xff]
          %v2643 = vld [vmem:[%s3 + $0xc8] sm:$0xff]
          %v2644 = vld [vmem:[%s3 + $0xd0] sm:$0xff]
          %v2645 = vld [vmem:[%s3 + $0xd8] sm:$0xff]
          %v2646 = vld [vmem:[%s3 + $0xe0] sm:$0xff]
          %v2647 = vld [vmem:[%s3 + $0xe8] sm:$0xff]
          %v2648 = vld [vmem:[%s3 + $0xf0] sm:$0xff]
          %v2649 = vld [vmem:[%s3 + $0xf8] sm:$0xff]
          %v2650 = vld [vmem:[#allocation7] sm:$0x1]
          %v2652 = vperm.slane %v2650, 0
          %2654 = vmatpush.msra.mxu0 %v2633
          %2655 = vmatpush.msra.mxu0 %v2632
          %2656 = vmatpush.msra.mxu0 %v2631
          %2657 = vmatpush.msra.mxu0 %v2630
          %2658 = vmatpush.msra.mxu0 %v2629
          %2659 = vmatpush.msra.mxu0 %v2628
          %2660 = vmatpush.msra.mxu0 %v2627
          %2661 = vmatpush.msra.mxu0 %v2626
          %2662 = vmatpush.msra.mxu0 %v2625
          %2663 = vmatpush.msra.mxu0 %v2624
          %2664 = vmatpush.msra.mxu0 %v2623
          %2665 = vmatpush.msra.mxu0 %v2622
          %2666 = vmatpush.msra.mxu0 %v2621
          %2667 = vmatpush.msra.mxu0 %v2620
          %2668 = vmatpush.msra.mxu0 %v2619
          %2669 = vmatpush.msra.mxu0 %v2618
          %2670 = vmatmul.f32.gmra.mxu0 %v2616
          %v2671 = vpop.f32.mrf.mxu0
          %v2672 = vadd.f32 %v2652, %v2671
          %2673 = vdwg.mxu0
          %2674 = vmatpush.msra.mxu0 %v2649
          %2675 = vmatpush.msra.mxu0 %v2648
          %2676 = vmatpush.msra.mxu0 %v2647
          %2677 = vmatpush.msra.mxu0 %v2646
          %2678 = vmatpush.msra.mxu0 %v2645
          %2679 = vmatpush.msra.mxu0 %v2644
          %2680 = vmatpush.msra.mxu0 %v2643
          %2681 = vmatpush.msra.mxu0 %v2642
          %2682 = vmatpush.msra.mxu0 %v2641
          %2683 = vmatpush.msra.mxu0 %v2640
          %2684 = vmatpush.msra.mxu0 %v2639
          %2685 = vmatpush.msra.mxu0 %v2638
          %2686 = vmatpush.msra.mxu0 %v2637
          %2687 = vmatpush.msra.mxu0 %v2636
          %2688 = vmatpush.msra.mxu0 %v2635
          %2689 = vmatpush.msra.mxu0 %v2634
          %2690 = vmatmul.f32.gmra.mxu0 %v2617
          %v2691 = vpop.f32.mrf.mxu0
          %v2692 = vadd.f32 %v2672, %v2691
          %2693 = vdwg.mxu0
          %vm2694 = vcmask 80896
          %v2695 = vsel %vm2694, %v2692, -inf
          %2696 = vmax.xlane.f32.xlu0 %v2695
          %v2697 = vpop.xlane.xlu0 %2696
          %v2698 = vsub.f32 %v2692, %v2697
          %v2699 = vmul.f32 %v2698, 1.442695
          %v2700 = vpow.pop %v2699
          %v2701 = vsel %vm2694, %v2700, 0.0
          %2702 = vadd.xlane.f32.xlu0 %v2701
          %v2703 = vpop.xlane.xlu0 %2702
          %v2704 = vlog2.pop %v2703
          %v2705 = vmul.f32 %v2704, 0.6931472
          %v2706 = vsub.f32 %v2698, %v2705
          %2707 = vst.msk [vmem:[%s323] sm:$0xff] %vm2694, %v2706
        $region60: #{model_cnn_forward.3} parent=39 // pred_fallthru
          _
        %p2708 = scmp.lt.s32.totalorder %s24, 0
        %s2709 = scalar_select %p2708, %s24, 0
        %s2710 = smul.addr %s2709, 8
        %s2711 = scalar_lea.vmem %s5, %s2710
        // Predicated region
        $region61: #{model_cnn_forward.3} parent=39 // pred_check
          %p2712 = pneg %p167
        $region62: #{model_cnn_forward.3} parent=39 // pred_check_branch
          %2714 = sbr.rel (%p2712) target = $region64
        $region63: #{model_cnn_forward.3} parent=39 // pred_region
          _
        $region64: #{model_cnn_forward.3} parent=39 // pred_fallthru
          _
        // Predicated region
        $region65: #{model_cnn_forward.3} parent=39 // pred_check
          %p2715 = pneg %p167
        $region66: #{model_cnn_forward.3} parent=39 // pred_check_branch
          %2717 = sbr.rel (%p2715) target = $region68
        $region67: #{model_cnn_forward.3} parent=39 // pred_region
          %p2718 = scmp.lt.s32.totalorder %s24, 0
          %s2719 = scalar_select %p2718, %s24, 0
          %s2720 = smul.addr %s2719, 8
          %s2721 = scalar_lea.vmem %s5, %s2720
        $region68: #{model_cnn_forward.3} parent=39 // pred_fallthru
          _
      $region40: #{model_cnn_forward.3} parent=5 // pred_fallthru
        _
      %p2722 = scmp.le.s32.totalorder 2, %s15
      // Predicated region
      $region69: #{model_cnn_forward.3} parent=5 // pred_check
        %p2723 = pneg %p2722
      $region70: #{model_cnn_forward.3} parent=5 // pred_check_branch
        %2725 = sbr.rel (%p2723) target = $region72
      $region71: #{model_cnn_forward.3} parent=5 // pred_region
        %s2726 = ssub.s32 %s15, 2
      $region72: #{model_cnn_forward.3} parent=5 // pred_fallthru
        _
    $region6: #{model_cnn_forward.3} parent=1 // loop_footer
      %s19 = sadd.s32 1, %s15
    $region7: #{model_cnn_forward.3} parent=1 // loop_footer_branch
      %14 = sbr.rel target = $region3
    $region8: #{model_cnn_forward.3} parent=1 // loop_exit
      _
    %2727 = vsyncpa [#allocation4], 1
    %s2728 = scalar_lea.sflag [#allocation4], 1
    %2729 = vsyncpa %s2728, 1
    %2730 = vsyncpa [#allocation6], 1

</llo_original>
